<compile_context>
chip_gen: v7x
topology: tpu7x:2x2x1
jax: 0.10.0
libtpu: 0.0.40
codegen_flags: <defaults>
</compile_context>

<pallas_src>
import functools

import jax
import jax.numpy as jnp
import numpy as np
from jax.experimental import pallas as pl
from jax.experimental.pallas import tpu as pltpu


# ---------------------------------------------------------------------------
# Kernels
# ---------------------------------------------------------------------------

def _score_kernel(h_ref, w_ref, b_ref, out_ref):
    """scores = sigmoid(h @ w + b) for one N row-block.

    h_ref : (tm, D)  -- natural layout, no wrapper transpose
    w_ref : (1, D)   -- Linear(in_dim, 1) weight as a broadcast row
    b_ref : (1,)     -- bias scalar in SMEM
    Width-1 output: VPU broadcast-multiply + lane reduce (no 1-wide MXU pass);
    sigmoid's exp goes to the EUP slot.
    """
    z = jnp.sum(h_ref[...] * w_ref[...], axis=1, keepdims=True)   # (tm, 1)
    out_ref[...] = jax.nn.sigmoid(z + b_ref[0])


def _pool_kernel(ar_ref, ac_ref, subh_ref, vals_ref,
                 g_out_ref, h_out_ref, acc_ref):
    """Fused top_k_graph tail, tiled over the N contraction axis.

    ar_ref  : (K, tn)  0/1 bf16 = (g[idx, :] != 0) tile
    ac_ref  : (tn, K)  0/1 bf16 = (g[:, idx] != 0) tile
    subh_ref: (K, D)   f32      = h[idx, :]
    vals_ref: (K, 1)   f32      = top-k scores
    acc_ref : (K, K)   f32 scratch accumulator (counts of 2-hop paths)
    """
    j = pl.program_id(0)

    @pl.when(j == 0)
    def _():
        acc_ref[...] = jnp.zeros_like(acc_ref)

    # counts += A[idx, n_tile] @ A[n_tile, idx]  (MXU, exact: 0/1 in bf16, f32 acc)
    acc_ref[...] += jnp.dot(ar_ref[...], ac_ref[...],
                            preferred_element_type=jnp.float32)

    @pl.when(j == pl.num_programs(0) - 1)
    def _():
        # sub_g = bool(counts) : 2-hop reachability among selected nodes.
        sub_g = (acc_ref[...] != 0.0).astype(jnp.float32)          # (K, K)
        # norm_g: torch's `g / sum(g, 1)` broadcasts the row-sums as a (1, K)
        # row, i.e. column c is scaled by 1/deg[c] — reproduced faithfully.
        # NOTE: like the torch reference there is no zero-degree guard.
        deg = jnp.sum(sub_g, axis=1).reshape(1, sub_g.shape[0])    # (1, K), 2-D
        g_out_ref[...] = sub_g * pl.reciprocal(deg, approx=False)
        # new_h = h[idx, :] * values
        h_out_ref[...] = subh_ref[...] * vals_ref[...]


# ---------------------------------------------------------------------------
# Tile selection (respecting the (8, 128) constraint; fall back to full dim)
# ---------------------------------------------------------------------------

def _pick_row_tile(n):
    # second-to-last block dim: must be a multiple of 8 (or the full dim)
    for t in (512, 256, 128, 64, 32, 16, 8):
        if n % t == 0:
            return t
    return n


def _pick_lane_tile(n):
    # last block dim: must be a multiple of 128 (or the full dim)
    for t in (512, 256, 128):
        if n % t == 0:
            return t
    return n


# ---------------------------------------------------------------------------
# pallas_call wrappers
# ---------------------------------------------------------------------------

def compute_scores(h, w_row, b):
    N, D = h.shape
    tm = _pick_row_tile(N)
    return pl.pallas_call(
        _score_kernel,
        out_shape=jax.ShapeDtypeStruct((N, 1), jnp.float32),
        grid=(N // tm,),
        in_specs=[
            pl.BlockSpec((tm, D), lambda i: (i, 0)),
            pl.BlockSpec((1, D), lambda i: (0, 0)),
            pl.BlockSpec(memory_space=pltpu.MemorySpace.SMEM),   # bias scalar
        ],
        out_specs=pl.BlockSpec((tm, 1), lambda i: (i, 0)),
        compiler_params=pltpu.CompilerParams(
            dimension_semantics=("parallel",)),
        cost_estimate=pl.CostEstimate(
            flops=2 * N * D + 4 * N,
            transcendentals=N,
            bytes_accessed=N * D * 4 + D * 4 + 4 + N * 4),
    )(h, w_row, b)


def fused_topk_graph(a_rows, a_cols, sub_h, values_col):
    K, N = a_rows.shape
    D = sub_h.shape[1]
    tn = _pick_lane_tile(N)

    return pl.pallas_call(
        _pool_kernel,
        out_shape=(jax.ShapeDtypeStruct((K, K), jnp.float32),
                   jax.ShapeDtypeStruct((K, D), jnp.float32)),
        grid=(N // tn,),
        in_specs=[
            pl.BlockSpec((K, tn), lambda j: (0, j)),    # (g[idx, :] != 0) bf16
            pl.BlockSpec((tn, K), lambda j: (j, 0)),    # (g[:, idx] != 0) bf16
            pl.BlockSpec((K, D), lambda j: (0, 0)),     # h[idx, :]
            pl.BlockSpec((K, 1), lambda j: (0, 0)),     # top-k values
        ],
        out_specs=(pl.BlockSpec((K, K), lambda j: (0, 0)),
                   pl.BlockSpec((K, D), lambda j: (0, 0))),
        scratch_shapes=[pltpu.VMEM((K, K), jnp.float32)],
        compiler_params=pltpu.CompilerParams(
            dimension_semantics=("arbitrary",),          # N is a reduction axis
            vmem_limit_bytes=48 * 1024 * 1024),          # above defaults, v7x-safe
        cost_estimate=pl.CostEstimate(
            flops=2 * K * N * K + 4 * K * K + 2 * K * D,
            transcendentals=0,
            bytes_accessed=2 * K * N * 2 + K * D * 8 + K * 4 + K * K * 4),
    )(a_rows, a_cols, sub_h, values_col)


@functools.partial(jax.jit, static_argnums=(4,))
def pool_forward(g, h, w, b, k_ratio):
    """Equivalent of Pool(k, in_dim, p=0).forward(g, h)."""
    N = g.shape[0]
    K = max(2, int(k_ratio * N))

    w_row = jnp.reshape(w, (1, -1))                    # (1, D): D floats, trivial
    scores = compute_scores(h, w_row, b)               # (N, 1)
    values, idx = jax.lax.top_k(scores[:, 0], K)       # torch.topk (descending)

    # TODO(synk): the row gather g[idx, :] could be folded into the kernel's DMA
    # via PrefetchScalarGridSpec(num_scalar_prefetch=1) + a pl.Element row
    # index_map (and a_cols dropped entirely when g is symmetric); left as XLA
    # glue because the column gather g[:, idx] is not expressible with an
    # index_map alone.  The 0/1 compare + bf16 narrowing IS fused with the
    # gathers so the kernel's dominant operands move at half the DMA bytes.
    a_rows = (g[idx, :] != 0).astype(jnp.bfloat16)     # (K, N)
    a_cols = (g[:, idx] != 0).astype(jnp.bfloat16)     # (N, K)
    sub_h = h[idx, :]                                  # (K, D)

    new_g, new_h = fused_topk_graph(a_rows, a_cols, sub_h, values[:, None])
    return new_g, new_h, idx


# ---------------------------------------------------------------------------
# Demo / self-check
# ---------------------------------------------------------------------------

if __name__ == "__main__":
    key = jax.random.PRNGKey(0)
    N, D = 1024, 64        # num_nodes, in_dim (small; exercises both grids)
    k_ratio = 0.25         # Pool(k=0.25, in_dim=64, p=0.0) -> K = 256

    k1, k2, k3, k4 = jax.random.split(key, 4)
    # Random undirected adjacency with self-loops (degrees never zero).
    a = (jax.random.uniform(k1, (N, N)) < 0.05).astype(jnp.float32)
    g = jnp.clip(a + a.T + jnp.eye(N, dtype=jnp.float32), 0.0, 1.0)
    h = jax.random.normal(k2, (N, D), dtype=jnp.float32)

    # Deterministic Linear(in_dim, 1) parameters.
    w = (jax.random.normal(k3, (D, 1)) / jnp.sqrt(D)).astype(jnp.float32)
    b = (jax.random.normal(k4, (1,)) * 0.01).astype(jnp.float32)

    new_g, new_h, idx = pool_forward(g, h, w, b, k_ratio)
    jax.block_until_ready((new_g, new_h, idx))

    # Pure-JAX reference (mirrors the torch code exactly).
    scores_ref = jax.nn.sigmoid(h @ w + b)[:, 0]
    K = max(2, int(k_ratio * N))
    vals_ref, idx_ref = jax.lax.top_k(scores_ref, K)
    un = (g != 0).astype(jnp.float32)
    un2_ref = ((un @ un) != 0).astype(jnp.float32)
    sub_g_ref = un2_ref[idx_ref, :][:, idx_ref]
    g_ref_out = sub_g_ref / jnp.sum(sub_g_ref, axis=1)   # torch-style broadcast
    h_ref_out = h[idx_ref, :] * vals_ref[:, None]

    assert np.array_equal(np.asarray(idx), np.asarray(idx_ref))
    assert np.allclose(np.asarray(new_g), np.asarray(g_ref_out), atol=1e-5)
    assert np.allclose(np.asarray(new_h), np.asarray(h_ref_out), atol=1e-5)

    print("KERNEL_OK")
</pallas_src>

<mosaic_0001>
module attributes {stable_mosaic.version = 11 : i64} {
  func.func @_score_kernel(%arg0: i32, %arg1: memref<512x64xf32, #tpu.memory_space<vmem>>, %arg2: memref<1x64xf32, #tpu.memory_space<vmem>>, %arg3: memref<1xf32, #tpu.memory_space<smem>>, %arg4: memref<512x1xf32, #tpu.memory_space<vmem>>) attributes {dimension_semantics = [#tpu.dimension_semantics<parallel>], iteration_bounds = array<i64: 2>, scalar_prefetch = 0 : i64, scratch_operands = 0 : i64, tpu.core_type = #tpu.core_type<tc>, window_params = [{transform_indices = @transform_0, window_bounds = array<i64: 512, 64>}, {pipeline_mode = #tpu.pipeline_mode<synchronous>, transform_indices = @transform_1, window_bounds = array<i64: 1, 64>}, {transform_indices = @transform_2, window_bounds = array<i64: 1>}, {transform_indices = @transform_3, window_bounds = array<i64: 512, 1>}]} {
    %c0 = arith.constant 0 : index
    %c0_0 = arith.constant 0 : index
    %0 = vector.load %arg1[%c0, %c0_0] : memref<512x64xf32, #tpu.memory_space<vmem>>, vector<512x64xf32>
    %c0_1 = arith.constant 0 : index
    %c0_2 = arith.constant 0 : index
    %1 = vector.load %arg2[%c0_1, %c0_2] : memref<1x64xf32, #tpu.memory_space<vmem>>, vector<1x64xf32>
    %2 = vector.broadcast %1 : vector<1x64xf32> to vector<512x64xf32>
    %3 = arith.mulf %0, %2 : vector<512x64xf32>
    %cst = arith.constant dense<0.000000e+00> : vector<512xf32>
    %4 = vector.multi_reduction <add>, %3, %cst [1] : vector<512x64xf32> to vector<512xf32>
    %5 = vector.shape_cast %4 : vector<512xf32> to vector<512x1xf32>
    %c0_3 = arith.constant 0 : index
    %6 = memref.load %arg3[%c0_3] : memref<1xf32, #tpu.memory_space<smem>>
    %7 = vector.broadcast %6 : f32 to vector<512x1xf32>
    %8 = arith.addf %5, %7 : vector<512x1xf32>
    %9 = arith.negf %8 : vector<512x1xf32>
    %10 = math.exp %9 : vector<512x1xf32>
    %cst_4 = arith.constant 1.000000e+00 : f32
    %11 = vector.broadcast %cst_4 : f32 to vector<512x1xf32>
    %12 = arith.addf %11, %10 : vector<512x1xf32>
    %13 = arith.divf %11, %12 : vector<512x1xf32>
    %c0_5 = arith.constant 0 : index
    %c0_6 = arith.constant 0 : index
    %14 = vector.load %arg4[%c0_5, %c0_6] : memref<512x1xf32, #tpu.memory_space<vmem>>, vector<512x1xf32>
    tpu.vector_store %arg4[%c0_5, %c0_6], %13 {strides = array<i32>} : memref<512x1xf32, #tpu.memory_space<vmem>>, vector<512x1xf32>,
    return
  }
  func.func @transform_0(%arg0: i32) -> (i32, i32) {
    %c0_i32 = arith.constant 0 : i32
    %c0_i32_0 = arith.constant 0 : i32
    return %arg0, %c0_i32 : i32, i32
  }
  func.func @transform_1(%arg0: i32) -> (i32, i32) {
    %c0_i32 = arith.constant 0 : i32
    %c0_i32_0 = arith.constant 0 : i32
    %c0_i32_1 = arith.constant 0 : i32
    return %c0_i32, %c0_i32_0 : i32, i32
  }
  func.func @transform_2(%arg0: i32) -> i32 {
    %c0_i32 = arith.constant 0 : i32
    %c0_i32_0 = arith.constant 0 : i32
    return %c0_i32 : i32
  }
  func.func @transform_3(%arg0: i32) -> (i32, i32) {
    %c0_i32 = arith.constant 0 : i32
    %c0_i32_0 = arith.constant 0 : i32
    return %arg0, %c0_i32 : i32, i32
  }
}

module attributes {stable_mosaic.version = 11 : i64} {
  func.func @_pool_kernel(%arg0: i32, %arg1: memref<256x512xbf16, #tpu.memory_space<vmem>>, %arg2: memref<512x256xbf16, #tpu.memory_space<vmem>>, %arg3: memref<256x64xf32, #tpu.memory_space<vmem>>, %arg4: memref<256x1xf32, #tpu.memory_space<vmem>>, %arg5: memref<256x256xf32, #tpu.memory_space<vmem>>, %arg6: memref<256x64xf32, #tpu.memory_space<vmem>>, %arg7: memref<256x256xf32, #tpu.memory_space<vmem>>) attributes {dimension_semantics = [#tpu.dimension_semantics<arbitrary>], iteration_bounds = array<i64: 2>, scalar_prefetch = 0 : i64, scratch_operands = 1 : i64, tpu.core_type = #tpu.core_type<tc>, window_params = [{transform_indices = @transform_0, window_bounds = array<i64: 256, 512>}, {transform_indices = @transform_1, window_bounds = array<i64: 512, 256>}, {pipeline_mode = #tpu.pipeline_mode<synchronous>, transform_indices = @transform_2, window_bounds = array<i64: 256, 64>}, {pipeline_mode = #tpu.pipeline_mode<synchronous>, transform_indices = @transform_3, window_bounds = array<i64: 256, 1>}, {pipeline_mode = #tpu.pipeline_mode<synchronous>, transform_indices = @transform_4, window_bounds = array<i64: 256, 256>}, {pipeline_mode = #tpu.pipeline_mode<synchronous>, transform_indices = @transform_5, window_bounds = array<i64: 256, 64>}]} {
    %c0_i32 = arith.constant 0 : i32
    %0 = arith.cmpi eq, %arg0, %c0_i32 : i32
    %1 = arith.extui %0 : i1 to i32
    %c0_i32_0 = arith.constant 0 : i32
    %2 = arith.cmpi ne, %1, %c0_i32_0 : i32
    scf.if %2 {
      %cst_9 = arith.constant 0.000000e+00 : f32
      %12 = vector.broadcast %cst_9 : f32 to vector<256x256xf32>
      %c0_10 = arith.constant 0 : index
      %c0_11 = arith.constant 0 : index
      %13 = vector.load %arg7[%c0_10, %c0_11] : memref<256x256xf32, #tpu.memory_space<vmem>>, vector<256x256xf32>
      tpu.vector_store %arg7[%c0_10, %c0_11], %12 {strides = array<i32>} : memref<256x256xf32, #tpu.memory_space<vmem>>, vector<256x256xf32>,
    } else {
    }
    %c0 = arith.constant 0 : index
    %c0_1 = arith.constant 0 : index
    %3 = vector.load %arg7[%c0, %c0_1] : memref<256x256xf32, #tpu.memory_space<vmem>>, vector<256x256xf32>
    %c0_2 = arith.constant 0 : index
    %c0_3 = arith.constant 0 : index
    %4 = vector.load %arg1[%c0_2, %c0_3] : memref<256x512xbf16, #tpu.memory_space<vmem>>, vector<256x512xbf16>
    %c0_4 = arith.constant 0 : index
    %c0_5 = arith.constant 0 : index
    %5 = vector.load %arg2[%c0_4, %c0_5] : memref<512x256xbf16, #tpu.memory_space<vmem>>, vector<512x256xbf16>
    %cst = arith.constant dense<0.000000e+00> : vector<256x256xf32>
    %6 = tpu.matmul %4, %5, %cst {dimension_numbers = #tpu.dot_dimension_numbers<[1], [0], [0], [1], [0, 0, 1, 1], [], []>} : vector<256x512xbf16>, vector<512x256xbf16>, vector<256x256xf32> -> vector<256x256xf32>
    %7 = arith.addf %3, %6 : vector<256x256xf32>
    %c0_6 = arith.constant 0 : index
    %c0_7 = arith.constant 0 : index
    %8 = vector.load %arg7[%c0_6, %c0_7] : memref<256x256xf32, #tpu.memory_space<vmem>>, vector<256x256xf32>
    tpu.vector_store %arg7[%c0_6, %c0_7], %7 {strides = array<i32>} : memref<256x256xf32, #tpu.memory_space<vmem>>, vector<256x256xf32>,
    %c1_i32 = arith.constant 1 : i32
    %9 = arith.cmpi eq, %arg0, %c1_i32 : i32
    %10 = arith.extui %9 : i1 to i32
    %c0_i32_8 = arith.constant 0 : i32
    %11 = arith.cmpi ne, %10, %c0_i32_8 : i32
    scf.if %11 {
      %c0_9 = arith.constant 0 : index
      %c0_10 = arith.constant 0 : index
      %12 = vector.load %arg7[%c0_9, %c0_10] : memref<256x256xf32, #tpu.memory_space<vmem>>, vector<256x256xf32>
      %cst_11 = arith.constant 0.000000e+00 : f32
      %13 = vector.broadcast %cst_11 : f32 to vector<256x256xf32>
      %14 = arith.cmpf one, %12, %13 : vector<256x256xf32>
      %15 = arith.extui %14 : vector<256x256xi1> to vector<256x256xi32>
      %16 = arith.sitofp %15 : vector<256x256xi32> to vector<256x256xf32>
      %cst_12 = arith.constant dense<0.000000e+00> : vector<256xf32>
      %17 = vector.multi_reduction <add>, %16, %cst_12 [1] : vector<256x256xf32> to vector<256xf32>
      %18 = vector.shape_cast %17 : vector<256xf32> to vector<1x256xf32>
      %19 = tpu.reciprocal %18 : vector<1x256xf32> -> vector<1x256xf32>
      %20 = vector.broadcast %19 : vector<1x256xf32> to vector<256x256xf32>
      %21 = arith.mulf %16, %20 : vector<256x256xf32>
      %c0_13 = arith.constant 0 : index
      %c0_14 = arith.constant 0 : index
      %22 = vector.load %arg5[%c0_13, %c0_14] : memref<256x256xf32, #tpu.memory_space<vmem>>, vector<256x256xf32>
      tpu.vector_store %arg5[%c0_13, %c0_14], %21 {strides = array<i32>} : memref<256x256xf32, #tpu.memory_space<vmem>>, vector<256x256xf32>,
      %c0_15 = arith.constant 0 : index
      %c0_16 = arith.constant 0 : index
      %23 = vector.load %arg3[%c0_15, %c0_16] : memref<256x64xf32, #tpu.memory_space<vmem>>, vector<256x64xf32>
      %c0_17 = arith.constant 0 : index
      %c0_18 = arith.constant 0 : index
      %24 = vector.load %arg4[%c0_17, %c0_18] : memref<256x1xf32, #tpu.memory_space<vmem>>, vector<256x1xf32>
      %25 = vector.broadcast %24 : vector<256x1xf32> to vector<256x64xf32>
      %26 = arith.mulf %23, %25 : vector<256x64xf32>
      %c0_19 = arith.constant 0 : index
      %c0_20 = arith.constant 0 : index
      %27 = vector.load %arg6[%c0_19, %c0_20] : memref<256x64xf32, #tpu.memory_space<vmem>>, vector<256x64xf32>
      tpu.vector_store %arg6[%c0_19, %c0_20], %26 {strides = array<i32>} : memref<256x64xf32, #tpu.memory_space<vmem>>, vector<256x64xf32>,
    } else {
    }
    return
  }
  func.func @transform_0(%arg0: i32) -> (i32, i32) {
    %c0_i32 = arith.constant 0 : i32
    %c0_i32_0 = arith.constant 0 : i32
    return %c0_i32, %arg0 : i32, i32
  }
  func.func @transform_1(%arg0: i32) -> (i32, i32) {
    %c0_i32 = arith.constant 0 : i32
    %c0_i32_0 = arith.constant 0 : i32
    return %arg0, %c0_i32 : i32, i32
  }
  func.func @transform_2(%arg0: i32) -> (i32, i32) {
    %c0_i32 = arith.constant 0 : i32
    %c0_i32_0 = arith.constant 0 : i32
    %c0_i32_1 = arith.constant 0 : i32
    return %c0_i32, %c0_i32_0 : i32, i32
  }
  func.func @transform_3(%arg0: i32) -> (i32, i32) {
    %c0_i32 = arith.constant 0 : i32
    %c0_i32_0 = arith.constant 0 : i32
    %c0_i32_1 = arith.constant 0 : i32
    return %c0_i32, %c0_i32_0 : i32, i32
  }
  func.func @transform_4(%arg0: i32) -> (i32, i32) {
    %c0_i32 = arith.constant 0 : i32
    %c0_i32_0 = arith.constant 0 : i32
    %c0_i32_1 = arith.constant 0 : i32
    return %c0_i32, %c0_i32_0 : i32, i32
  }
  func.func @transform_5(%arg0: i32) -> (i32, i32) {
    %c0_i32 = arith.constant 0 : i32
    %c0_i32_0 = arith.constant 0 : i32
    %c0_i32_1 = arith.constant 0 : i32
    return %c0_i32, %c0_i32_0 : i32, i32
  }
}

</mosaic_0001>

<llo_original>
// kernel: pool_forward.2
$region0: #{pool_forward.2}
  #allocation0 [shape = 'u32[]', space=smem, size = 0x4, offset = 0x4, fixed_abs, tag = 'smem constant byte address 0x4 - core index']
  #allocation1 [shape = 'u32[144,128]{1,0:T(1,128)}', space=vmem, size = 0x12000, scoped, tag = 'internal scratch']
  #allocation2 [shape = 'f32[1]{0:T(128)S(6)}', space=smem, size = 0x200, scoped, tag = 'scoped memory for pool_forward.2']
  %s0 = inlined_call_operand.vmem [shape: f32[1024,64], index: 0, kind: input, shape index: {}]
  %s1 = inlined_call_operand.hbm [shape: f32[1,64], index: 1, kind: input, shape index: {}]
  %s2 = inlined_call_operand.<no memory space> [shape: f32[1], index: 2, kind: input, shape index: {}]
  %s3 = inlined_call_operand.vmem [shape: f32[1024,1], index: 3, kind: output, shape index: {}]
  %s4 = sld [smem:[#allocation0]]
  $region49: #{pool_forward.2} parent=0
    _
  %s6 = ssub.s32 1, %s4
  %s7 = scalar_select 0, %s6, %s4
  %8 = sst [smem:[#allocation2]] %s2
  $region1: #{pool_forward.2} parent=0
    #allocation3 [shape = 'u8[512]{0}', space=vmem, size = 0x400, scoped, tag = 'input window, operand 1, single buffered']
    #allocation4 [shape = 's32[2]{0}', space=sflag, size = 0x8, scoped, tag = 'scoped memory for pool_forward.2']
    %9 = vsyncpa [#allocation4], 0
    loop: start=0, step=1, limit=4
    $region2: #{pool_forward.2} parent=1 // loop_pre_header
      _
    $region3: #{pool_forward.2} parent=1 // loop_header
      %s11 = sphi 0, %s15
      %p12 = scmp.ge.s32.totalorder %s11, 4
      %s21 = sphi 0, %s23
      %s24 = sphi 0, %s21
      %s25 = sphi 0, %s24
      %s41 = sphi 0, %s25
      %s45 = sphi 0, %s45
      %s47 = sphi 0, %s45
      %s48 = sphi 0, %s47
      %s62 = sphi 0, %s48
      %s66 = sphi 0, %s66
      %s68 = sphi 0, %s66
      %s69 = sphi 0, %s68
      %s83 = sphi 0, %s69
      %s89 = sphi 0, %s91
      %s92 = sphi 0, %s89
      %s93 = sphi 0, %s92
      %s109 = sphi 0, %s93
    $region4: #{pool_forward.2} parent=1 // loop_header_branch
      %14 = sbr.rel (%p12) target = $region8
    $region5: #{pool_forward.2} parent=1 // loop_body
      %s16 = ssub.s32 %s11, 1
      %s17 = ssub.s32 %s11, 2
      %s18 = sadd.s32 %s11, 1
      %s19 = ssub.s32 %s11, %s18
      %p20 = scmp.eq.s32.totalorder %s19, 0
      %s22 = sadd.s32 %s21, 1
      %s23 = scalar_select %p20, %s21, %s22
      %p26 = pneg %p20
      %p27 = scmp.eq.s32.totalorder %s11, 1
      %p28 = por %p26, %p27
      %p29 = scmp.ne.s32.totalorder %s21, %s24
      %p30 = scmp.eq.s32.totalorder %s11, 0
      %p31 = por %p29, %p30
      %p32 = scmp.ne.s32.totalorder %s21, %s24
      %p33 = scmp.eq.s32.totalorder %s16, 1
      %p34 = por %p32, %p33
      %p35 = scmp.ne.s32.totalorder %s24, %s25
      %p36 = scmp.eq.s32.totalorder %s16, 0
      %p37 = por %p35, %p36
      %p38 = scmp.ne.s32.totalorder %s24, %s25
      %p39 = scmp.eq.s32.totalorder %s17, 1
      %p40 = por %p38, %p39
      %p42 = scmp.ne.s32.totalorder %s25, %s41
      %p43 = scmp.eq.s32.totalorder %s17, 0
      %p44 = por %p42, %p43
      %s46 = sadd.s32 %s45, 1
      %p49 = scmp.eq.s32.totalorder %s11, 1
      %p50 = scmp.ne.s32.totalorder %s45, %s47
      %p51 = scmp.eq.s32.totalorder %s11, 0
      %p52 = por %p50, %p51
      %p53 = scmp.ne.s32.totalorder %s45, %s47
      %p54 = scmp.eq.s32.totalorder %s16, 1
      %p55 = por %p53, %p54
      %p56 = scmp.ne.s32.totalorder %s47, %s48
      %p57 = scmp.eq.s32.totalorder %s16, 0
      %p58 = por %p56, %p57
      %p59 = scmp.ne.s32.totalorder %s47, %s48
      %p60 = scmp.eq.s32.totalorder %s17, 1
      %p61 = por %p59, %p60
      %p63 = scmp.ne.s32.totalorder %s48, %s62
      %p64 = scmp.eq.s32.totalorder %s17, 0
      %p65 = por %p63, %p64
      %s67 = sadd.s32 %s66, 1
      %p70 = scmp.eq.s32.totalorder %s11, 1
      %p71 = scmp.ne.s32.totalorder %s66, %s68
      %p72 = scmp.eq.s32.totalorder %s11, 0
      %p73 = por %p71, %p72
      %p74 = scmp.ne.s32.totalorder %s66, %s68
      %p75 = scmp.eq.s32.totalorder %s16, 1
      %p76 = por %p74, %p75
      %p77 = scmp.ne.s32.totalorder %s68, %s69
      %p78 = scmp.eq.s32.totalorder %s16, 0
      %p79 = por %p77, %p78
      %p80 = scmp.ne.s32.totalorder %s68, %s69
      %p81 = scmp.eq.s32.totalorder %s17, 1
      %p82 = por %p80, %p81
      %p84 = scmp.ne.s32.totalorder %s69, %s83
      %p85 = scmp.eq.s32.totalorder %s17, 0
      %p86 = por %p84, %p85
      %s87 = ssub.s32 %s11, %s18
      %p88 = scmp.eq.s32.totalorder %s87, 0
      %s90 = sadd.s32 %s89, 1
      %s91 = scalar_select %p88, %s89, %s90
      %p94 = pneg %p88
      %p95 = scmp.eq.s32.totalorder %s11, 1
      %p96 = por %p94, %p95
      %p97 = scmp.ne.s32.totalorder %s89, %s92
      %p98 = scmp.eq.s32.totalorder %s11, 0
      %p99 = por %p97, %p98
      %p100 = scmp.ne.s32.totalorder %s89, %s92
      %p101 = scmp.eq.s32.totalorder %s16, 1
      %p102 = por %p100, %p101
      %p103 = scmp.ne.s32.totalorder %s92, %s93
      %p104 = scmp.eq.s32.totalorder %s16, 0
      %p105 = por %p103, %p104
      %p106 = scmp.ne.s32.totalorder %s92, %s93
      %p107 = scmp.eq.s32.totalorder %s17, 1
      %p108 = por %p106, %p107
      %p110 = scmp.ne.s32.totalorder %s93, %s109
      %p111 = scmp.eq.s32.totalorder %s17, 0
      %p112 = por %p110, %p111
      %p113 = scmp.le.s32.totalorder 1, %s11
      %p114 = scmp.lt.s32.totalorder %s11, 3
      %p115 = pnand %p113, %p114
      %p116 = pneg %p115
      // Predicated region
      $region9: #{pool_forward.2} parent=5 // pred_check
        _
      $region10: #{pool_forward.2} parent=5 // pred_check_branch
        %118 = sbr.rel (%p115) target = $region12
      $region11: #{pool_forward.2} parent=5 // pred_region
        %s119 = ssub.s32 %s11, 1
        // Predicated region
        $region13: #{pool_forward.2} parent=11 // pred_check
          %p120 = pneg %p58
        $region14: #{pool_forward.2} parent=11 // pred_check_branch
          %122 = sbr.rel (%p120) target = $region16
        $region15: #{pool_forward.2} parent=11 // pred_region
          %s124 = ssub.s32 16, 16
          %125 = vsyncadd [#allocation4], %s124
          %s127 = sshll.u32 [#allocation3], 4
          %s128 = int_to_ptr.vmem [resolvable:$true] %s127
          %130 = dma.hbm_to_vmem [thread:$0]  %s1, 16, %s128, [#allocation4]
        $region16: #{pool_forward.2} parent=11 // pred_fallthru
          _
        // Predicated region
        $region17: #{pool_forward.2} parent=11 // pred_check
          %p131 = pneg %p79
        $region18: #{pool_forward.2} parent=11 // pred_check_branch
          %133 = sbr.rel (%p131) target = $region20
        $region19: #{pool_forward.2} parent=11 // pred_region
          _
        $region20: #{pool_forward.2} parent=11 // pred_fallthru
          _
      $region12: #{pool_forward.2} parent=5 // pred_fallthru
        _
      %p134 = scmp.lt.s32.totalorder %s11, 2
      // Predicated region
      $region21: #{pool_forward.2} parent=5 // pred_check
        %p135 = pneg %p134
      $region22: #{pool_forward.2} parent=5 // pred_check_branch
        %137 = sbr.rel (%p135) target = $region24
      $region23: #{pool_forward.2} parent=5 // pred_region
        // Predicated region
        $region25: #{pool_forward.2} parent=23 // pred_check
          %p138 = pneg %p31
        $region26: #{pool_forward.2} parent=23 // pred_check_branch
          %140 = sbr.rel (%p138) target = $region28
        $region27: #{pool_forward.2} parent=23 // pred_region
          %s141 = smul.u32 64, %s11
          %p142 = scmp.lt.s32.totalorder %s141, 127
          %s143 = scalar_select %p142, %s141, 127
          %s144 = smul.addr %s143, 8
          %s145 = scalar_lea.vmem %s0, %s144
          %s146 = smul.u32 64, %s11
        $region28: #{pool_forward.2} parent=23 // pred_fallthru
          _
      $region24: #{pool_forward.2} parent=5 // pred_fallthru
        _
      %p147 = scmp.le.s32.totalorder 1, %s11
      %p148 = scmp.lt.s32.totalorder %s11, 3
      %p149 = pnand %p147, %p148
      %p150 = pneg %p149
      // Predicated region
      $region29: #{pool_forward.2} parent=5 // pred_check
        _
      $region30: #{pool_forward.2} parent=5 // pred_check_branch
        %152 = sbr.rel (%p149) target = $region32
      $region31: #{pool_forward.2} parent=5 // pred_region
        %s153 = ssub.s32 %s11, 1
        // Predicated region
        $region33: #{pool_forward.2} parent=31 // pred_check
          %p154 = pneg %p58
        $region34: #{pool_forward.2} parent=31 // pred_check_branch
          %156 = sbr.rel (%p154) target = $region36
        $region35: #{pool_forward.2} parent=31 // pred_region
          %157 = dma.done [#allocation4], 16
        $region36: #{pool_forward.2} parent=31 // pred_fallthru
          _
        %s158 = smul.u32 64, %s16
        %p159 = scmp.lt.s32.totalorder %s158, 127
        %s160 = scalar_select %p159, %s158, 127
        %s161 = smul.addr %s160, 8
        %s162 = scalar_lea.vmem %s0, %s161
        %p163 = pneg %p37
        %p164 = pneg %p34
        %p165 = pneg %p58
        %p166 = pneg %p55
        %p167 = pneg %p79
        %p168 = pneg %p76
        %p169 = pneg %p105
        %p170 = pneg %p102
        %s171 = smul.u32 64, %s16
        %p172 = scmp.lt.s32.totalorder %s171, 127
        %s173 = scalar_select %p172, %s171, 127
        %s174 = smul.addr %s173, 8
        %s175 = scalar_lea.vmem %s3, %s174
        %s176 = smul.u32 64, %s16
        %p177 = scmp.lt.s32.totalorder %s176, 127
        %s178 = scalar_select %p177, %s176, 127
        %s179 = smul.addr %s178, 8
        %s180 = scalar_lea.vmem %s0, %s179
        %s181 = smul.u32 64, %s16
        %s182 = smul.u32 64, %s16
        %p183 = scmp.lt.s32.totalorder %s182, 127
        %s184 = scalar_select %p183, %s182, 127
        %s185 = smul.addr %s184, 8
        %s186 = scalar_lea.vmem %s3, %s185
        %s187 = smul.u32 64, %s16
        %v188 = vld [vmem:[%s180] sm:$0xff]
        %v189 = vld [vmem:[%s180 + $0x8] sm:$0xff]
        %v190 = vld [vmem:[%s180 + $0x10] sm:$0xff]
        %v191 = vld [vmem:[%s180 + $0x18] sm:$0xff]
        %v192 = vld [vmem:[%s180 + $0x20] sm:$0xff]
        %v193 = vld [vmem:[%s180 + $0x28] sm:$0xff]
        %v194 = vld [vmem:[%s180 + $0x30] sm:$0xff]
        %v195 = vld [vmem:[%s180 + $0x38] sm:$0xff]
        %v196 = vld [vmem:[%s180 + $0x40] sm:$0xff]
        %v197 = vld [vmem:[%s180 + $0x48] sm:$0xff]
        %v198 = vld [vmem:[%s180 + $0x50] sm:$0xff]
        %v199 = vld [vmem:[%s180 + $0x58] sm:$0xff]
        %v200 = vld [vmem:[%s180 + $0x60] sm:$0xff]
        %v201 = vld [vmem:[%s180 + $0x68] sm:$0xff]
        %v202 = vld [vmem:[%s180 + $0x70] sm:$0xff]
        %v203 = vld [vmem:[%s180 + $0x78] sm:$0xff]
        %v204 = vld [vmem:[%s180 + $0x80] sm:$0xff]
        %v205 = vld [vmem:[%s180 + $0x88] sm:$0xff]
        %v206 = vld [vmem:[%s180 + $0x90] sm:$0xff]
        %v207 = vld [vmem:[%s180 + $0x98] sm:$0xff]
        %v208 = vld [vmem:[%s180 + $0xa0] sm:$0xff]
        %v209 = vld [vmem:[%s180 + $0xa8] sm:$0xff]
        %v210 = vld [vmem:[%s180 + $0xb0] sm:$0xff]
        %v211 = vld [vmem:[%s180 + $0xb8] sm:$0xff]
        %v212 = vld [vmem:[%s180 + $0xc0] sm:$0xff]
        %v213 = vld [vmem:[%s180 + $0xc8] sm:$0xff]
        %v214 = vld [vmem:[%s180 + $0xd0] sm:$0xff]
        %v215 = vld [vmem:[%s180 + $0xd8] sm:$0xff]
        %v216 = vld [vmem:[%s180 + $0xe0] sm:$0xff]
        %v217 = vld [vmem:[%s180 + $0xe8] sm:$0xff]
        %v218 = vld [vmem:[%s180 + $0xf0] sm:$0xff]
        %v219 = vld [vmem:[%s180 + $0xf8] sm:$0xff]
        %v220 = vld [vmem:[%s180 + $0x100] sm:$0xff]
        %v221 = vld [vmem:[%s180 + $0x108] sm:$0xff]
        %v222 = vld [vmem:[%s180 + $0x110] sm:$0xff]
        %v223 = vld [vmem:[%s180 + $0x118] sm:$0xff]
        %v224 = vld [vmem:[%s180 + $0x120] sm:$0xff]
        %v225 = vld [vmem:[%s180 + $0x128] sm:$0xff]
        %v226 = vld [vmem:[%s180 + $0x130] sm:$0xff]
        %v227 = vld [vmem:[%s180 + $0x138] sm:$0xff]
        %v228 = vld [vmem:[%s180 + $0x140] sm:$0xff]
        %v229 = vld [vmem:[%s180 + $0x148] sm:$0xff]
        %v230 = vld [vmem:[%s180 + $0x150] sm:$0xff]
        %v231 = vld [vmem:[%s180 + $0x158] sm:$0xff]
        %v232 = vld [vmem:[%s180 + $0x160] sm:$0xff]
        %v233 = vld [vmem:[%s180 + $0x168] sm:$0xff]
        %v234 = vld [vmem:[%s180 + $0x170] sm:$0xff]
        %v235 = vld [vmem:[%s180 + $0x178] sm:$0xff]
        %v236 = vld [vmem:[%s180 + $0x180] sm:$0xff]
        %v237 = vld [vmem:[%s180 + $0x188] sm:$0xff]
        %v238 = vld [vmem:[%s180 + $0x190] sm:$0xff]
        %v239 = vld [vmem:[%s180 + $0x198] sm:$0xff]
        %v240 = vld [vmem:[%s180 + $0x1a0] sm:$0xff]
        %v241 = vld [vmem:[%s180 + $0x1a8] sm:$0xff]
        %v242 = vld [vmem:[%s180 + $0x1b0] sm:$0xff]
        %v243 = vld [vmem:[%s180 + $0x1b8] sm:$0xff]
        %v244 = vld [vmem:[%s180 + $0x1c0] sm:$0xff]
        %v245 = vld [vmem:[%s180 + $0x1c8] sm:$0xff]
        %v246 = vld [vmem:[%s180 + $0x1d0] sm:$0xff]
        %v247 = vld [vmem:[%s180 + $0x1d8] sm:$0xff]
        %v248 = vld [vmem:[%s180 + $0x1e0] sm:$0xff]
        %v249 = vld [vmem:[%s180 + $0x1e8] sm:$0xff]
        %v250 = vld [vmem:[%s180 + $0x1f0] sm:$0xff]
        %v251 = vld [vmem:[%s180 + $0x1f8] sm:$0xff]
        %v252 = vld [vmem:[#allocation3] sm:$0x1]
        %v254 = vlaneseq
        %v255 = vshrl.u32 %v254, 7
        %v256 = vsub.s32 0, %v255
        %v257 = vrot.slane %v252, %v256
        %v259 = vmul.f32 %v188, %v257
        %v260 = vmul.f32 %v189, %v257
        %v261 = vmul.f32 %v190, %v257
        %v262 = vmul.f32 %v191, %v257
        %v263 = vmul.f32 %v192, %v257
        %v264 = vmul.f32 %v193, %v257
        %v265 = vmul.f32 %v194, %v257
        %v266 = vmul.f32 %v195, %v257
        %v267 = vmul.f32 %v196, %v257
        %v268 = vmul.f32 %v197, %v257
        %v269 = vmul.f32 %v198, %v257
        %v270 = vmul.f32 %v199, %v257
        %v271 = vmul.f32 %v200, %v257
        %v272 = vmul.f32 %v201, %v257
        %v273 = vmul.f32 %v202, %v257
        %v274 = vmul.f32 %v203, %v257
        %v275 = vmul.f32 %v204, %v257
        %v276 = vmul.f32 %v205, %v257
        %v277 = vmul.f32 %v206, %v257
        %v278 = vmul.f32 %v207, %v257
        %v279 = vmul.f32 %v208, %v257
        %v280 = vmul.f32 %v209, %v257
        %v281 = vmul.f32 %v210, %v257
        %v282 = vmul.f32 %v211, %v257
        %v283 = vmul.f32 %v212, %v257
        %v284 = vmul.f32 %v213, %v257
        %v285 = vmul.f32 %v214, %v257
        %v286 = vmul.f32 %v215, %v257
        %v287 = vmul.f32 %v216, %v257
        %v288 = vmul.f32 %v217, %v257
        %v289 = vmul.f32 %v218, %v257
        %v290 = vmul.f32 %v219, %v257
        %v291 = vmul.f32 %v220, %v257
        %v292 = vmul.f32 %v221, %v257
        %v293 = vmul.f32 %v222, %v257
        %v294 = vmul.f32 %v223, %v257
        %v295 = vmul.f32 %v224, %v257
        %v296 = vmul.f32 %v225, %v257
        %v297 = vmul.f32 %v226, %v257
        %v298 = vmul.f32 %v227, %v257
        %v299 = vmul.f32 %v228, %v257
        %v300 = vmul.f32 %v229, %v257
        %v301 = vmul.f32 %v230, %v257
        %v302 = vmul.f32 %v231, %v257
        %v303 = vmul.f32 %v232, %v257
        %v304 = vmul.f32 %v233, %v257
        %v305 = vmul.f32 %v234, %v257
        %v306 = vmul.f32 %v235, %v257
        %v307 = vmul.f32 %v236, %v257
        %v308 = vmul.f32 %v237, %v257
        %v309 = vmul.f32 %v238, %v257
        %v310 = vmul.f32 %v239, %v257
        %v311 = vmul.f32 %v240, %v257
        %v312 = vmul.f32 %v241, %v257
        %v313 = vmul.f32 %v242, %v257
        %v314 = vmul.f32 %v243, %v257
        %v315 = vmul.f32 %v244, %v257
        %v316 = vmul.f32 %v245, %v257
        %v317 = vmul.f32 %v246, %v257
        %v318 = vmul.f32 %v247, %v257
        %v319 = vmul.f32 %v248, %v257
        %v320 = vmul.f32 %v249, %v257
        %v321 = vmul.f32 %v250, %v257
        %v322 = vmul.f32 %v251, %v257
        %vm323 = vcmask 523264
        %v324 = vsel %vm323, %v259, 0.0
        %325 = vadd.xlane.f32.xlu0 %v324
        %v326 = vpop.xlane.xlu0 %325
        %v327 = vsel %vm323, %v260, 0.0
        %328 = vadd.xlane.f32.xlu0 %v327
        %v329 = vpop.xlane.xlu0 %328
        %v330 = vsel %vm323, %v261, 0.0
        %331 = vadd.xlane.f32.xlu0 %v330
        %v332 = vpop.xlane.xlu0 %331
        %v333 = vsel %vm323, %v262, 0.0
        %334 = vadd.xlane.f32.xlu0 %v333
        %v335 = vpop.xlane.xlu0 %334
        %v336 = vsel %vm323, %v263, 0.0
        %337 = vadd.xlane.f32.xlu0 %v336
        %v338 = vpop.xlane.xlu0 %337
        %v339 = vsel %vm323, %v264, 0.0
        %340 = vadd.xlane.f32.xlu0 %v339
        %v341 = vpop.xlane.xlu0 %340
        %v342 = vsel %vm323, %v265, 0.0
        %343 = vadd.xlane.f32.xlu0 %v342
        %v344 = vpop.xlane.xlu0 %343
        %v345 = vsel %vm323, %v266, 0.0
        %346 = vadd.xlane.f32.xlu0 %v345
        %v347 = vpop.xlane.xlu0 %346
        %v348 = vsel %vm323, %v267, 0.0
        %349 = vadd.xlane.f32.xlu0 %v348
        %v350 = vpop.xlane.xlu0 %349
        %v351 = vsel %vm323, %v268, 0.0
        %352 = vadd.xlane.f32.xlu0 %v351
        %v353 = vpop.xlane.xlu0 %352
        %v354 = vsel %vm323, %v269, 0.0
        %355 = vadd.xlane.f32.xlu0 %v354
        %v356 = vpop.xlane.xlu0 %355
        %v357 = vsel %vm323, %v270, 0.0
        %358 = vadd.xlane.f32.xlu0 %v357
        %v359 = vpop.xlane.xlu0 %358
        %v360 = vsel %vm323, %v271, 0.0
        %361 = vadd.xlane.f32.xlu0 %v360
        %v362 = vpop.xlane.xlu0 %361
        %v363 = vsel %vm323, %v272, 0.0
        %364 = vadd.xlane.f32.xlu0 %v363
        %v365 = vpop.xlane.xlu0 %364
        %v366 = vsel %vm323, %v273, 0.0
        %367 = vadd.xlane.f32.xlu0 %v366
        %v368 = vpop.xlane.xlu0 %367
        %v369 = vsel %vm323, %v274, 0.0
        %370 = vadd.xlane.f32.xlu0 %v369
        %v371 = vpop.xlane.xlu0 %370
        %v372 = vsel %vm323, %v275, 0.0
        %373 = vadd.xlane.f32.xlu0 %v372
        %v374 = vpop.xlane.xlu0 %373
        %v375 = vsel %vm323, %v276, 0.0
        %376 = vadd.xlane.f32.xlu0 %v375
        %v377 = vpop.xlane.xlu0 %376
        %v378 = vsel %vm323, %v277, 0.0
        %379 = vadd.xlane.f32.xlu0 %v378
        %v380 = vpop.xlane.xlu0 %379
        %v381 = vsel %vm323, %v278, 0.0
        %382 = vadd.xlane.f32.xlu0 %v381
        %v383 = vpop.xlane.xlu0 %382
        %v384 = vsel %vm323, %v279, 0.0
        %385 = vadd.xlane.f32.xlu0 %v384
        %v386 = vpop.xlane.xlu0 %385
        %v387 = vsel %vm323, %v280, 0.0
        %388 = vadd.xlane.f32.xlu0 %v387
        %v389 = vpop.xlane.xlu0 %388
        %v390 = vsel %vm323, %v281, 0.0
        %391 = vadd.xlane.f32.xlu0 %v390
        %v392 = vpop.xlane.xlu0 %391
        %v393 = vsel %vm323, %v282, 0.0
        %394 = vadd.xlane.f32.xlu0 %v393
        %v395 = vpop.xlane.xlu0 %394
        %v396 = vsel %vm323, %v283, 0.0
        %397 = vadd.xlane.f32.xlu0 %v396
        %v398 = vpop.xlane.xlu0 %397
        %v399 = vsel %vm323, %v284, 0.0
        %400 = vadd.xlane.f32.xlu0 %v399
        %v401 = vpop.xlane.xlu0 %400
        %v402 = vsel %vm323, %v285, 0.0
        %403 = vadd.xlane.f32.xlu0 %v402
        %v404 = vpop.xlane.xlu0 %403
        %v405 = vsel %vm323, %v286, 0.0
        %406 = vadd.xlane.f32.xlu0 %v405
        %v407 = vpop.xlane.xlu0 %406
        %v408 = vsel %vm323, %v287, 0.0
        %409 = vadd.xlane.f32.xlu0 %v408
        %v410 = vpop.xlane.xlu0 %409
        %v411 = vsel %vm323, %v288, 0.0
        %412 = vadd.xlane.f32.xlu0 %v411
        %v413 = vpop.xlane.xlu0 %412
        %v414 = vsel %vm323, %v289, 0.0
        %415 = vadd.xlane.f32.xlu0 %v414
        %v416 = vpop.xlane.xlu0 %415
        %v417 = vsel %vm323, %v290, 0.0
        %418 = vadd.xlane.f32.xlu0 %v417
        %v419 = vpop.xlane.xlu0 %418
        %v420 = vsel %vm323, %v291, 0.0
        %421 = vadd.xlane.f32.xlu0 %v420
        %v422 = vpop.xlane.xlu0 %421
        %v423 = vsel %vm323, %v292, 0.0
        %424 = vadd.xlane.f32.xlu0 %v423
        %v425 = vpop.xlane.xlu0 %424
        %v426 = vsel %vm323, %v293, 0.0
        %427 = vadd.xlane.f32.xlu0 %v426
        %v428 = vpop.xlane.xlu0 %427
        %v429 = vsel %vm323, %v294, 0.0
        %430 = vadd.xlane.f32.xlu0 %v429
        %v431 = vpop.xlane.xlu0 %430
        %v432 = vsel %vm323, %v295, 0.0
        %433 = vadd.xlane.f32.xlu0 %v432
        %v434 = vpop.xlane.xlu0 %433
        %v435 = vsel %vm323, %v296, 0.0
        %436 = vadd.xlane.f32.xlu0 %v435
        %v437 = vpop.xlane.xlu0 %436
        %v438 = vsel %vm323, %v297, 0.0
        %439 = vadd.xlane.f32.xlu0 %v438
        %v440 = vpop.xlane.xlu0 %439
        %v441 = vsel %vm323, %v298, 0.0
        %442 = vadd.xlane.f32.xlu0 %v441
        %v443 = vpop.xlane.xlu0 %442
        %v444 = vsel %vm323, %v299, 0.0
        %445 = vadd.xlane.f32.xlu0 %v444
        %v446 = vpop.xlane.xlu0 %445
        %v447 = vsel %vm323, %v300, 0.0
        %448 = vadd.xlane.f32.xlu0 %v447
        %v449 = vpop.xlane.xlu0 %448
        %v450 = vsel %vm323, %v301, 0.0
        %451 = vadd.xlane.f32.xlu0 %v450
        %v452 = vpop.xlane.xlu0 %451
        %v453 = vsel %vm323, %v302, 0.0
        %454 = vadd.xlane.f32.xlu0 %v453
        %v455 = vpop.xlane.xlu0 %454
        %v456 = vsel %vm323, %v303, 0.0
        %457 = vadd.xlane.f32.xlu0 %v456
        %v458 = vpop.xlane.xlu0 %457
        %v459 = vsel %vm323, %v304, 0.0
        %460 = vadd.xlane.f32.xlu0 %v459
        %v461 = vpop.xlane.xlu0 %460
        %v462 = vsel %vm323, %v305, 0.0
        %463 = vadd.xlane.f32.xlu0 %v462
        %v464 = vpop.xlane.xlu0 %463
        %v465 = vsel %vm323, %v306, 0.0
        %466 = vadd.xlane.f32.xlu0 %v465
        %v467 = vpop.xlane.xlu0 %466
        %v468 = vsel %vm323, %v307, 0.0
        %469 = vadd.xlane.f32.xlu0 %v468
        %v470 = vpop.xlane.xlu0 %469
        %v471 = vsel %vm323, %v308, 0.0
        %472 = vadd.xlane.f32.xlu0 %v471
        %v473 = vpop.xlane.xlu0 %472
        %v474 = vsel %vm323, %v309, 0.0
        %475 = vadd.xlane.f32.xlu0 %v474
        %v476 = vpop.xlane.xlu0 %475
        %v477 = vsel %vm323, %v310, 0.0
        %478 = vadd.xlane.f32.xlu0 %v477
        %v479 = vpop.xlane.xlu0 %478
        %v480 = vsel %vm323, %v311, 0.0
        %481 = vadd.xlane.f32.xlu0 %v480
        %v482 = vpop.xlane.xlu0 %481
        %v483 = vsel %vm323, %v312, 0.0
        %484 = vadd.xlane.f32.xlu0 %v483
        %v485 = vpop.xlane.xlu0 %484
        %v486 = vsel %vm323, %v313, 0.0
        %487 = vadd.xlane.f32.xlu0 %v486
        %v488 = vpop.xlane.xlu0 %487
        %v489 = vsel %vm323, %v314, 0.0
        %490 = vadd.xlane.f32.xlu0 %v489
        %v491 = vpop.xlane.xlu0 %490
        %v492 = vsel %vm323, %v315, 0.0
        %493 = vadd.xlane.f32.xlu0 %v492
        %v494 = vpop.xlane.xlu0 %493
        %v495 = vsel %vm323, %v316, 0.0
        %496 = vadd.xlane.f32.xlu0 %v495
        %v497 = vpop.xlane.xlu0 %496
        %v498 = vsel %vm323, %v317, 0.0
        %499 = vadd.xlane.f32.xlu0 %v498
        %v500 = vpop.xlane.xlu0 %499
        %v501 = vsel %vm323, %v318, 0.0
        %502 = vadd.xlane.f32.xlu0 %v501
        %v503 = vpop.xlane.xlu0 %502
        %v504 = vsel %vm323, %v319, 0.0
        %505 = vadd.xlane.f32.xlu0 %v504
        %v506 = vpop.xlane.xlu0 %505
        %v507 = vsel %vm323, %v320, 0.0
        %508 = vadd.xlane.f32.xlu0 %v507
        %v509 = vpop.xlane.xlu0 %508
        %v510 = vsel %vm323, %v321, 0.0
        %511 = vadd.xlane.f32.xlu0 %v510
        %v512 = vpop.xlane.xlu0 %511
        %v513 = vsel %vm323, %v322, 0.0
        %514 = vadd.xlane.f32.xlu0 %v513
        %v515 = vpop.xlane.xlu0 %514
        %s516 = sld [smem:[#allocation2]]
        %v517 = vstv %s516
        %v518 = vadd.f32 %v326, %v517
        %v519 = vadd.f32 %v329, %v517
        %v520 = vadd.f32 %v332, %v517
        %v521 = vadd.f32 %v335, %v517
        %v522 = vadd.f32 %v338, %v517
        %v523 = vadd.f32 %v341, %v517
        %v524 = vadd.f32 %v344, %v517
        %v525 = vadd.f32 %v347, %v517
        %v526 = vadd.f32 %v350, %v517
        %v527 = vadd.f32 %v353, %v517
        %v528 = vadd.f32 %v356, %v517
        %v529 = vadd.f32 %v359, %v517
        %v530 = vadd.f32 %v362, %v517
        %v531 = vadd.f32 %v365, %v517
        %v532 = vadd.f32 %v368, %v517
        %v533 = vadd.f32 %v371, %v517
        %v534 = vadd.f32 %v374, %v517
        %v535 = vadd.f32 %v377, %v517
        %v536 = vadd.f32 %v380, %v517
        %v537 = vadd.f32 %v383, %v517
        %v538 = vadd.f32 %v386, %v517
        %v539 = vadd.f32 %v389, %v517
        %v540 = vadd.f32 %v392, %v517
        %v541 = vadd.f32 %v395, %v517
        %v542 = vadd.f32 %v398, %v517
        %v543 = vadd.f32 %v401, %v517
        %v544 = vadd.f32 %v404, %v517
        %v545 = vadd.f32 %v407, %v517
        %v546 = vadd.f32 %v410, %v517
        %v547 = vadd.f32 %v413, %v517
        %v548 = vadd.f32 %v416, %v517
        %v549 = vadd.f32 %v419, %v517
        %v550 = vadd.f32 %v422, %v517
        %v551 = vadd.f32 %v425, %v517
        %v552 = vadd.f32 %v428, %v517
        %v553 = vadd.f32 %v431, %v517
        %v554 = vadd.f32 %v434, %v517
        %v555 = vadd.f32 %v437, %v517
        %v556 = vadd.f32 %v440, %v517
        %v557 = vadd.f32 %v443, %v517
        %v558 = vadd.f32 %v446, %v517
        %v559 = vadd.f32 %v449, %v517
        %v560 = vadd.f32 %v452, %v517
        %v561 = vadd.f32 %v455, %v517
        %v562 = vadd.f32 %v458, %v517
        %v563 = vadd.f32 %v461, %v517
        %v564 = vadd.f32 %v464, %v517
        %v565 = vadd.f32 %v467, %v517
        %v566 = vadd.f32 %v470, %v517
        %v567 = vadd.f32 %v473, %v517
        %v568 = vadd.f32 %v476, %v517
        %v569 = vadd.f32 %v479, %v517
        %v570 = vadd.f32 %v482, %v517
        %v571 = vadd.f32 %v485, %v517
        %v572 = vadd.f32 %v488, %v517
        %v573 = vadd.f32 %v491, %v517
        %v574 = vadd.f32 %v494, %v517
        %v575 = vadd.f32 %v497, %v517
        %v576 = vadd.f32 %v500, %v517
        %v577 = vadd.f32 %v503, %v517
        %v578 = vadd.f32 %v506, %v517
        %v579 = vadd.f32 %v509, %v517
        %v580 = vadd.f32 %v512, %v517
        %v581 = vadd.f32 %v515, %v517
        %v582 = vxor.u32 %v518, 2147483648
        %v583 = vxor.u32 %v519, 2147483648
        %v584 = vxor.u32 %v520, 2147483648
        %v585 = vxor.u32 %v521, 2147483648
        %v586 = vxor.u32 %v522, 2147483648
        %v587 = vxor.u32 %v523, 2147483648
        %v588 = vxor.u32 %v524, 2147483648
        %v589 = vxor.u32 %v525, 2147483648
        %v590 = vxor.u32 %v526, 2147483648
        %v591 = vxor.u32 %v527, 2147483648
        %v592 = vxor.u32 %v528, 2147483648
        %v593 = vxor.u32 %v529, 2147483648
        %v594 = vxor.u32 %v530, 2147483648
        %v595 = vxor.u32 %v531, 2147483648
        %v596 = vxor.u32 %v532, 2147483648
        %v597 = vxor.u32 %v533, 2147483648
        %v598 = vxor.u32 %v534, 2147483648
        %v599 = vxor.u32 %v535, 2147483648
        %v600 = vxor.u32 %v536, 2147483648
        %v601 = vxor.u32 %v537, 2147483648
        %v602 = vxor.u32 %v538, 2147483648
        %v603 = vxor.u32 %v539, 2147483648
        %v604 = vxor.u32 %v540, 2147483648
        %v605 = vxor.u32 %v541, 2147483648
        %v606 = vxor.u32 %v542, 2147483648
        %v607 = vxor.u32 %v543, 2147483648
        %v608 = vxor.u32 %v544, 2147483648
        %v609 = vxor.u32 %v545, 2147483648
        %v610 = vxor.u32 %v546, 2147483648
        %v611 = vxor.u32 %v547, 2147483648
        %v612 = vxor.u32 %v548, 2147483648
        %v613 = vxor.u32 %v549, 2147483648
        %v614 = vxor.u32 %v550, 2147483648
        %v615 = vxor.u32 %v551, 2147483648
        %v616 = vxor.u32 %v552, 2147483648
        %v617 = vxor.u32 %v553, 2147483648
        %v618 = vxor.u32 %v554, 2147483648
        %v619 = vxor.u32 %v555, 2147483648
        %v620 = vxor.u32 %v556, 2147483648
        %v621 = vxor.u32 %v557, 2147483648
        %v622 = vxor.u32 %v558, 2147483648
        %v623 = vxor.u32 %v559, 2147483648
        %v624 = vxor.u32 %v560, 2147483648
        %v625 = vxor.u32 %v561, 2147483648
        %v626 = vxor.u32 %v562, 2147483648
        %v627 = vxor.u32 %v563, 2147483648
        %v628 = vxor.u32 %v564, 2147483648
        %v629 = vxor.u32 %v565, 2147483648
        %v630 = vxor.u32 %v566, 2147483648
        %v631 = vxor.u32 %v567, 2147483648
        %v632 = vxor.u32 %v568, 2147483648
        %v633 = vxor.u32 %v569, 2147483648
        %v634 = vxor.u32 %v570, 2147483648
        %v635 = vxor.u32 %v571, 2147483648
        %v636 = vxor.u32 %v572, 2147483648
        %v637 = vxor.u32 %v573, 2147483648
        %v638 = vxor.u32 %v574, 2147483648
        %v639 = vxor.u32 %v575, 2147483648
        %v640 = vxor.u32 %v576, 2147483648
        %v641 = vxor.u32 %v577, 2147483648
        %v642 = vxor.u32 %v578, 2147483648
        %v643 = vxor.u32 %v579, 2147483648
        %v644 = vxor.u32 %v580, 2147483648
        %v645 = vxor.u32 %v581, 2147483648
        %v646 = vmul.f32 %v582, 1.442695
        %v647 = vpow.pop %v646
        %v648 = vmul.f32 %v583, 1.442695
        %v649 = vpow.pop %v648
        %v650 = vmul.f32 %v584, 1.442695
        %v651 = vpow.pop %v650
        %v652 = vmul.f32 %v585, 1.442695
        %v653 = vpow.pop %v652
        %v654 = vmul.f32 %v586, 1.442695
        %v655 = vpow.pop %v654
        %v656 = vmul.f32 %v587, 1.442695
        %v657 = vpow.pop %v656
        %v658 = vmul.f32 %v588, 1.442695
        %v659 = vpow.pop %v658
        %v660 = vmul.f32 %v589, 1.442695
        %v661 = vpow.pop %v660
        %v662 = vmul.f32 %v590, 1.442695
        %v663 = vpow.pop %v662
        %v664 = vmul.f32 %v591, 1.442695
        %v665 = vpow.pop %v664
        %v666 = vmul.f32 %v592, 1.442695
        %v667 = vpow.pop %v666
        %v668 = vmul.f32 %v593, 1.442695
        %v669 = vpow.pop %v668
        %v670 = vmul.f32 %v594, 1.442695
        %v671 = vpow.pop %v670
        %v672 = vmul.f32 %v595, 1.442695
        %v673 = vpow.pop %v672
        %v674 = vmul.f32 %v596, 1.442695
        %v675 = vpow.pop %v674
        %v676 = vmul.f32 %v597, 1.442695
        %v677 = vpow.pop %v676
        %v678 = vmul.f32 %v598, 1.442695
        %v679 = vpow.pop %v678
        %v680 = vmul.f32 %v599, 1.442695
        %v681 = vpow.pop %v680
        %v682 = vmul.f32 %v600, 1.442695
        %v683 = vpow.pop %v682
        %v684 = vmul.f32 %v601, 1.442695
        %v685 = vpow.pop %v684
        %v686 = vmul.f32 %v602, 1.442695
        %v687 = vpow.pop %v686
        %v688 = vmul.f32 %v603, 1.442695
        %v689 = vpow.pop %v688
        %v690 = vmul.f32 %v604, 1.442695
        %v691 = vpow.pop %v690
        %v692 = vmul.f32 %v605, 1.442695
        %v693 = vpow.pop %v692
        %v694 = vmul.f32 %v606, 1.442695
        %v695 = vpow.pop %v694
        %v696 = vmul.f32 %v607, 1.442695
        %v697 = vpow.pop %v696
        %v698 = vmul.f32 %v608, 1.442695
        %v699 = vpow.pop %v698
        %v700 = vmul.f32 %v609, 1.442695
        %v701 = vpow.pop %v700
        %v702 = vmul.f32 %v610, 1.442695
        %v703 = vpow.pop %v702
        %v704 = vmul.f32 %v611, 1.442695
        %v705 = vpow.pop %v704
        %v706 = vmul.f32 %v612, 1.442695
        %v707 = vpow.pop %v706
        %v708 = vmul.f32 %v613, 1.442695
        %v709 = vpow.pop %v708
        %v710 = vmul.f32 %v614, 1.442695
        %v711 = vpow.pop %v710
        %v712 = vmul.f32 %v615, 1.442695
        %v713 = vpow.pop %v712
        %v714 = vmul.f32 %v616, 1.442695
        %v715 = vpow.pop %v714
        %v716 = vmul.f32 %v617, 1.442695
        %v717 = vpow.pop %v716
        %v718 = vmul.f32 %v618, 1.442695
        %v719 = vpow.pop %v718
        %v720 = vmul.f32 %v619, 1.442695
        %v721 = vpow.pop %v720
        %v722 = vmul.f32 %v620, 1.442695
        %v723 = vpow.pop %v722
        %v724 = vmul.f32 %v621, 1.442695
        %v725 = vpow.pop %v724
        %v726 = vmul.f32 %v622, 1.442695
        %v727 = vpow.pop %v726
        %v728 = vmul.f32 %v623, 1.442695
        %v729 = vpow.pop %v728
        %v730 = vmul.f32 %v624, 1.442695
        %v731 = vpow.pop %v730
        %v732 = vmul.f32 %v625, 1.442695
        %v733 = vpow.pop %v732
        %v734 = vmul.f32 %v626, 1.442695
        %v735 = vpow.pop %v734
        %v736 = vmul.f32 %v627, 1.442695
        %v737 = vpow.pop %v736
        %v738 = vmul.f32 %v628, 1.442695
        %v739 = vpow.pop %v738
        %v740 = vmul.f32 %v629, 1.442695
        %v741 = vpow.pop %v740
        %v742 = vmul.f32 %v630, 1.442695
        %v743 = vpow.pop %v742
        %v744 = vmul.f32 %v631, 1.442695
        %v745 = vpow.pop %v744
        %v746 = vmul.f32 %v632, 1.442695
        %v747 = vpow.pop %v746
        %v748 = vmul.f32 %v633, 1.442695
        %v749 = vpow.pop %v748
        %v750 = vmul.f32 %v634, 1.442695
        %v751 = vpow.pop %v750
        %v752 = vmul.f32 %v635, 1.442695
        %v753 = vpow.pop %v752
        %v754 = vmul.f32 %v636, 1.442695
        %v755 = vpow.pop %v754
        %v756 = vmul.f32 %v637, 1.442695
        %v757 = vpow.pop %v756
        %v758 = vmul.f32 %v638, 1.442695
        %v759 = vpow.pop %v758
        %v760 = vmul.f32 %v639, 1.442695
        %v761 = vpow.pop %v760
        %v762 = vmul.f32 %v640, 1.442695
        %v763 = vpow.pop %v762
        %v764 = vmul.f32 %v641, 1.442695
        %v765 = vpow.pop %v764
        %v766 = vmul.f32 %v642, 1.442695
        %v767 = vpow.pop %v766
        %v768 = vmul.f32 %v643, 1.442695
        %v769 = vpow.pop %v768
        %v770 = vmul.f32 %v644, 1.442695
        %v771 = vpow.pop %v770
        %v772 = vmul.f32 %v645, 1.442695
        %v773 = vpow.pop %v772
        %v774 = vadd.f32 %v647, 1.0
        %v775 = vadd.f32 %v649, 1.0
        %v776 = vadd.f32 %v651, 1.0
        %v777 = vadd.f32 %v653, 1.0
        %v778 = vadd.f32 %v655, 1.0
        %v779 = vadd.f32 %v657, 1.0
        %v780 = vadd.f32 %v659, 1.0
        %v781 = vadd.f32 %v661, 1.0
        %v782 = vadd.f32 %v663, 1.0
        %v783 = vadd.f32 %v665, 1.0
        %v784 = vadd.f32 %v667, 1.0
        %v785 = vadd.f32 %v669, 1.0
        %v786 = vadd.f32 %v671, 1.0
        %v787 = vadd.f32 %v673, 1.0
        %v788 = vadd.f32 %v675, 1.0
        %v789 = vadd.f32 %v677, 1.0
        %v790 = vadd.f32 %v679, 1.0
        %v791 = vadd.f32 %v681, 1.0
        %v792 = vadd.f32 %v683, 1.0
        %v793 = vadd.f32 %v685, 1.0
        %v794 = vadd.f32 %v687, 1.0
        %v795 = vadd.f32 %v689, 1.0
        %v796 = vadd.f32 %v691, 1.0
        %v797 = vadd.f32 %v693, 1.0
        %v798 = vadd.f32 %v695, 1.0
        %v799 = vadd.f32 %v697, 1.0
        %v800 = vadd.f32 %v699, 1.0
        %v801 = vadd.f32 %v701, 1.0
        %v802 = vadd.f32 %v703, 1.0
        %v803 = vadd.f32 %v705, 1.0
        %v804 = vadd.f32 %v707, 1.0
        %v805 = vadd.f32 %v709, 1.0
        %v806 = vadd.f32 %v711, 1.0
        %v807 = vadd.f32 %v713, 1.0
        %v808 = vadd.f32 %v715, 1.0
        %v809 = vadd.f32 %v717, 1.0
        %v810 = vadd.f32 %v719, 1.0
        %v811 = vadd.f32 %v721, 1.0
        %v812 = vadd.f32 %v723, 1.0
        %v813 = vadd.f32 %v725, 1.0
        %v814 = vadd.f32 %v727, 1.0
        %v815 = vadd.f32 %v729, 1.0
        %v816 = vadd.f32 %v731, 1.0
        %v817 = vadd.f32 %v733, 1.0
        %v818 = vadd.f32 %v735, 1.0
        %v819 = vadd.f32 %v737, 1.0
        %v820 = vadd.f32 %v739, 1.0
        %v821 = vadd.f32 %v741, 1.0
        %v822 = vadd.f32 %v743, 1.0
        %v823 = vadd.f32 %v745, 1.0
        %v824 = vadd.f32 %v747, 1.0
        %v825 = vadd.f32 %v749, 1.0
        %v826 = vadd.f32 %v751, 1.0
        %v827 = vadd.f32 %v753, 1.0
        %v828 = vadd.f32 %v755, 1.0
        %v829 = vadd.f32 %v757, 1.0
        %v830 = vadd.f32 %v759, 1.0
        %v831 = vadd.f32 %v761, 1.0
        %v832 = vadd.f32 %v763, 1.0
        %v833 = vadd.f32 %v765, 1.0
        %v834 = vadd.f32 %v767, 1.0
        %v835 = vadd.f32 %v769, 1.0
        %v836 = vadd.f32 %v771, 1.0
        %v837 = vadd.f32 %v773, 1.0
        %v838 = vrcp.pop %v774
        %v839 = vmul.f32 1.0, %v838
        %v840 = vrcp.pop %v775
        %v841 = vmul.f32 1.0, %v840
        %v842 = vrcp.pop %v776
        %v843 = vmul.f32 1.0, %v842
        %v844 = vrcp.pop %v777
        %v845 = vmul.f32 1.0, %v844
        %v846 = vrcp.pop %v778
        %v847 = vmul.f32 1.0, %v846
        %v848 = vrcp.pop %v779
        %v849 = vmul.f32 1.0, %v848
        %v850 = vrcp.pop %v780
        %v851 = vmul.f32 1.0, %v850
        %v852 = vrcp.pop %v781
        %v853 = vmul.f32 1.0, %v852
        %v854 = vrcp.pop %v782
        %v855 = vmul.f32 1.0, %v854
        %v856 = vrcp.pop %v783
        %v857 = vmul.f32 1.0, %v856
        %v858 = vrcp.pop %v784
        %v859 = vmul.f32 1.0, %v858
        %v860 = vrcp.pop %v785
        %v861 = vmul.f32 1.0, %v860
        %v862 = vrcp.pop %v786
        %v863 = vmul.f32 1.0, %v862
        %v864 = vrcp.pop %v787
        %v865 = vmul.f32 1.0, %v864
        %v866 = vrcp.pop %v788
        %v867 = vmul.f32 1.0, %v866
        %v868 = vrcp.pop %v789
        %v869 = vmul.f32 1.0, %v868
        %v870 = vrcp.pop %v790
        %v871 = vmul.f32 1.0, %v870
        %v872 = vrcp.pop %v791
        %v873 = vmul.f32 1.0, %v872
        %v874 = vrcp.pop %v792
        %v875 = vmul.f32 1.0, %v874
        %v876 = vrcp.pop %v793
        %v877 = vmul.f32 1.0, %v876
        %v878 = vrcp.pop %v794
        %v879 = vmul.f32 1.0, %v878
        %v880 = vrcp.pop %v795
        %v881 = vmul.f32 1.0, %v880
        %v882 = vrcp.pop %v796
        %v883 = vmul.f32 1.0, %v882
        %v884 = vrcp.pop %v797
        %v885 = vmul.f32 1.0, %v884
        %v886 = vrcp.pop %v798
        %v887 = vmul.f32 1.0, %v886
        %v888 = vrcp.pop %v799
        %v889 = vmul.f32 1.0, %v888
        %v890 = vrcp.pop %v800
        %v891 = vmul.f32 1.0, %v890
        %v892 = vrcp.pop %v801
        %v893 = vmul.f32 1.0, %v892
        %v894 = vrcp.pop %v802
        %v895 = vmul.f32 1.0, %v894
        %v896 = vrcp.pop %v803
        %v897 = vmul.f32 1.0, %v896
        %v898 = vrcp.pop %v804
        %v899 = vmul.f32 1.0, %v898
        %v900 = vrcp.pop %v805
        %v901 = vmul.f32 1.0, %v900
        %v902 = vrcp.pop %v806
        %v903 = vmul.f32 1.0, %v902
        %v904 = vrcp.pop %v807
        %v905 = vmul.f32 1.0, %v904
        %v906 = vrcp.pop %v808
        %v907 = vmul.f32 1.0, %v906
        %v908 = vrcp.pop %v809
        %v909 = vmul.f32 1.0, %v908
        %v910 = vrcp.pop %v810
        %v911 = vmul.f32 1.0, %v910
        %v912 = vrcp.pop %v811
        %v913 = vmul.f32 1.0, %v912
        %v914 = vrcp.pop %v812
        %v915 = vmul.f32 1.0, %v914
        %v916 = vrcp.pop %v813
        %v917 = vmul.f32 1.0, %v916
        %v918 = vrcp.pop %v814
        %v919 = vmul.f32 1.0, %v918
        %v920 = vrcp.pop %v815
        %v921 = vmul.f32 1.0, %v920
        %v922 = vrcp.pop %v816
        %v923 = vmul.f32 1.0, %v922
        %v924 = vrcp.pop %v817
        %v925 = vmul.f32 1.0, %v924
        %v926 = vrcp.pop %v818
        %v927 = vmul.f32 1.0, %v926
        %v928 = vrcp.pop %v819
        %v929 = vmul.f32 1.0, %v928
        %v930 = vrcp.pop %v820
        %v931 = vmul.f32 1.0, %v930
        %v932 = vrcp.pop %v821
        %v933 = vmul.f32 1.0, %v932
        %v934 = vrcp.pop %v822
        %v935 = vmul.f32 1.0, %v934
        %v936 = vrcp.pop %v823
        %v937 = vmul.f32 1.0, %v936
        %v938 = vrcp.pop %v824
        %v939 = vmul.f32 1.0, %v938
        %v940 = vrcp.pop %v825
        %v941 = vmul.f32 1.0, %v940
        %v942 = vrcp.pop %v826
        %v943 = vmul.f32 1.0, %v942
        %v944 = vrcp.pop %v827
        %v945 = vmul.f32 1.0, %v944
        %v946 = vrcp.pop %v828
        %v947 = vmul.f32 1.0, %v946
        %v948 = vrcp.pop %v829
        %v949 = vmul.f32 1.0, %v948
        %v950 = vrcp.pop %v830
        %v951 = vmul.f32 1.0, %v950
        %v952 = vrcp.pop %v831
        %v953 = vmul.f32 1.0, %v952
        %v954 = vrcp.pop %v832
        %v955 = vmul.f32 1.0, %v954
        %v956 = vrcp.pop %v833
        %v957 = vmul.f32 1.0, %v956
        %v958 = vrcp.pop %v834
        %v959 = vmul.f32 1.0, %v958
        %v960 = vrcp.pop %v835
        %v961 = vmul.f32 1.0, %v960
        %v962 = vrcp.pop %v836
        %v963 = vmul.f32 1.0, %v962
        %v964 = vrcp.pop %v837
        %v965 = vmul.f32 1.0, %v964
        %vm966 = vcmask 7168
        %967 = vst.msk [vmem:[%s186] sm:$0xff] %vm966, %v839
        %968 = vst.msk [vmem:[%s186 + $0x8] sm:$0xff] %vm966, %v841
        %969 = vst.msk [vmem:[%s186 + $0x10] sm:$0xff] %vm966, %v843
        %970 = vst.msk [vmem:[%s186 + $0x18] sm:$0xff] %vm966, %v845
        %971 = vst.msk [vmem:[%s186 + $0x20] sm:$0xff] %vm966, %v847
        %972 = vst.msk [vmem:[%s186 + $0x28] sm:$0xff] %vm966, %v849
        %973 = vst.msk [vmem:[%s186 + $0x30] sm:$0xff] %vm966, %v851
        %974 = vst.msk [vmem:[%s186 + $0x38] sm:$0xff] %vm966, %v853
        %975 = vst.msk [vmem:[%s186 + $0x40] sm:$0xff] %vm966, %v855
        %976 = vst.msk [vmem:[%s186 + $0x48] sm:$0xff] %vm966, %v857
        %977 = vst.msk [vmem:[%s186 + $0x50] sm:$0xff] %vm966, %v859
        %978 = vst.msk [vmem:[%s186 + $0x58] sm:$0xff] %vm966, %v861
        %979 = vst.msk [vmem:[%s186 + $0x60] sm:$0xff] %vm966, %v863
        %980 = vst.msk [vmem:[%s186 + $0x68] sm:$0xff] %vm966, %v865
        %981 = vst.msk [vmem:[%s186 + $0x70] sm:$0xff] %vm966, %v867
        %982 = vst.msk [vmem:[%s186 + $0x78] sm:$0xff] %vm966, %v869
        %983 = vst.msk [vmem:[%s186 + $0x80] sm:$0xff] %vm966, %v871
        %984 = vst.msk [vmem:[%s186 + $0x88] sm:$0xff] %vm966, %v873
        %985 = vst.msk [vmem:[%s186 + $0x90] sm:$0xff] %vm966, %v875
        %986 = vst.msk [vmem:[%s186 + $0x98] sm:$0xff] %vm966, %v877
        %987 = vst.msk [vmem:[%s186 + $0xa0] sm:$0xff] %vm966, %v879
        %988 = vst.msk [vmem:[%s186 + $0xa8] sm:$0xff] %vm966, %v881
        %989 = vst.msk [vmem:[%s186 + $0xb0] sm:$0xff] %vm966, %v883
        %990 = vst.msk [vmem:[%s186 + $0xb8] sm:$0xff] %vm966, %v885
        %991 = vst.msk [vmem:[%s186 + $0xc0] sm:$0xff] %vm966, %v887
        %992 = vst.msk [vmem:[%s186 + $0xc8] sm:$0xff] %vm966, %v889
        %993 = vst.msk [vmem:[%s186 + $0xd0] sm:$0xff] %vm966, %v891
        %994 = vst.msk [vmem:[%s186 + $0xd8] sm:$0xff] %vm966, %v893
        %995 = vst.msk [vmem:[%s186 + $0xe0] sm:$0xff] %vm966, %v895
        %996 = vst.msk [vmem:[%s186 + $0xe8] sm:$0xff] %vm966, %v897
        %997 = vst.msk [vmem:[%s186 + $0xf0] sm:$0xff] %vm966, %v899
        %998 = vst.msk [vmem:[%s186 + $0xf8] sm:$0xff] %vm966, %v901
        %999 = vst.msk [vmem:[%s186 + $0x100] sm:$0xff] %vm966, %v903
        %1000 = vst.msk [vmem:[%s186 + $0x108] sm:$0xff] %vm966, %v905
        %1001 = vst.msk [vmem:[%s186 + $0x110] sm:$0xff] %vm966, %v907
        %1002 = vst.msk [vmem:[%s186 + $0x118] sm:$0xff] %vm966, %v909
        %1003 = vst.msk [vmem:[%s186 + $0x120] sm:$0xff] %vm966, %v911
        %1004 = vst.msk [vmem:[%s186 + $0x128] sm:$0xff] %vm966, %v913
        %1005 = vst.msk [vmem:[%s186 + $0x130] sm:$0xff] %vm966, %v915
        %1006 = vst.msk [vmem:[%s186 + $0x138] sm:$0xff] %vm966, %v917
        %1007 = vst.msk [vmem:[%s186 + $0x140] sm:$0xff] %vm966, %v919
        %1008 = vst.msk [vmem:[%s186 + $0x148] sm:$0xff] %vm966, %v921
        %1009 = vst.msk [vmem:[%s186 + $0x150] sm:$0xff] %vm966, %v923
        %1010 = vst.msk [vmem:[%s186 + $0x158] sm:$0xff] %vm966, %v925
        %1011 = vst.msk [vmem:[%s186 + $0x160] sm:$0xff] %vm966, %v927
        %1012 = vst.msk [vmem:[%s186 + $0x168] sm:$0xff] %vm966, %v929
        %1013 = vst.msk [vmem:[%s186 + $0x170] sm:$0xff] %vm966, %v931
        %1014 = vst.msk [vmem:[%s186 + $0x178] sm:$0xff] %vm966, %v933
        %1015 = vst.msk [vmem:[%s186 + $0x180] sm:$0xff] %vm966, %v935
        %1016 = vst.msk [vmem:[%s186 + $0x188] sm:$0xff] %vm966, %v937
        %1017 = vst.msk [vmem:[%s186 + $0x190] sm:$0xff] %vm966, %v939
        %1018 = vst.msk [vmem:[%s186 + $0x198] sm:$0xff] %vm966, %v941
        %1019 = vst.msk [vmem:[%s186 + $0x1a0] sm:$0xff] %vm966, %v943
        %1020 = vst.msk [vmem:[%s186 + $0x1a8] sm:$0xff] %vm966, %v945
        %1021 = vst.msk [vmem:[%s186 + $0x1b0] sm:$0xff] %vm966, %v947
        %1022 = vst.msk [vmem:[%s186 + $0x1b8] sm:$0xff] %vm966, %v949
        %1023 = vst.msk [vmem:[%s186 + $0x1c0] sm:$0xff] %vm966, %v951
        %1024 = vst.msk [vmem:[%s186 + $0x1c8] sm:$0xff] %vm966, %v953
        %1025 = vst.msk [vmem:[%s186 + $0x1d0] sm:$0xff] %vm966, %v955
        %1026 = vst.msk [vmem:[%s186 + $0x1d8] sm:$0xff] %vm966, %v957
        %1027 = vst.msk [vmem:[%s186 + $0x1e0] sm:$0xff] %vm966, %v959
        %1028 = vst.msk [vmem:[%s186 + $0x1e8] sm:$0xff] %vm966, %v961
        %1029 = vst.msk [vmem:[%s186 + $0x1f0] sm:$0xff] %vm966, %v963
        %1030 = vst.msk [vmem:[%s186 + $0x1f8] sm:$0xff] %vm966, %v965
        %s1031 = smul.u32 64, %s16
        %p1032 = scmp.lt.s32.totalorder %s1031, 127
        %s1033 = scalar_select %p1032, %s1031, 127
        %s1034 = smul.addr %s1033, 8
        %s1035 = scalar_lea.vmem %s3, %s1034
        // Predicated region
        $region37: #{pool_forward.2} parent=31 // pred_check
          %p1036 = pneg %p102
        $region38: #{pool_forward.2} parent=31 // pred_check_branch
          %1038 = sbr.rel (%p1036) target = $region40
        $region39: #{pool_forward.2} parent=31 // pred_region
          %s1039 = smul.u32 64, %s16
        $region40: #{pool_forward.2} parent=31 // pred_fallthru
          _
      $region32: #{pool_forward.2} parent=5 // pred_fallthru
        _
      %p1040 = scmp.le.s32.totalorder 2, %s11
      // Predicated region
      $region41: #{pool_forward.2} parent=5 // pred_check
        %p1041 = pneg %p1040
      $region42: #{pool_forward.2} parent=5 // pred_check_branch
        %1043 = sbr.rel (%p1041) target = $region44
      $region43: #{pool_forward.2} parent=5 // pred_region
        %s1044 = ssub.s32 %s11, 2
        // Predicated region
        $region45: #{pool_forward.2} parent=43 // pred_check
          %p1045 = pneg %p108
        $region46: #{pool_forward.2} parent=43 // pred_check_branch
          %1047 = sbr.rel (%p1045) target = $region48
        $region47: #{pool_forward.2} parent=43 // pred_region
          %s1048 = smul.u32 64, %s17
          %p1049 = scmp.lt.s32.totalorder %s1048, 127
          %s1050 = scalar_select %p1049, %s1048, 127
          %s1051 = smul.addr %s1050, 8
          %s1052 = scalar_lea.vmem %s3, %s1051
        $region48: #{pool_forward.2} parent=43 // pred_fallthru
          _
      $region44: #{pool_forward.2} parent=5 // pred_fallthru
        _
    $region6: #{pool_forward.2} parent=1 // loop_footer
      %s15 = sadd.s32 1, %s11
    $region7: #{pool_forward.2} parent=1 // loop_footer_branch
      %10 = sbr.rel target = $region3
    $region8: #{pool_forward.2} parent=1 // loop_exit
      _
    %1053 = vsyncpa [#allocation4], 1
    %s1054 = scalar_lea.sflag [#allocation4], 1
    %1055 = vsyncpa %s1054, 1

// kernel: pool_forward.3
$region0: #{pool_forward.3}
  #allocation0 [shape = 'u32[]', space=smem, size = 0x4, offset = 0x4, fixed_abs, tag = 'smem constant byte address 0x4 - core index']
  #allocation1 [shape = 'u32[144,128]{1,0:T(1,128)}', space=vmem, size = 0x12000, scoped, tag = 'internal scratch']
  #allocation2 [shape = 'f32[256,256]{1,0:T(8,128)}', space=vmem, size = 0x40000, scoped, tag = 'scratch operand']
  %s0 = inlined_call_operand.vmem [shape: bf16[256,1024], index: 0, kind: input, shape index: {}]
  %s1 = inlined_call_operand.vmem [shape: bf16[1024,256], index: 1, kind: input, shape index: {}]
  %s2 = inlined_call_operand.vmem [shape: f32[256,64], index: 2, kind: input, shape index: {}]
  %s3 = inlined_call_operand.vmem [shape: f32[256,1], index: 3, kind: input, shape index: {}]
  %s4 = inlined_call_operand.hbm [shape: f32[256,256], index: 4, kind: output, shape index: {0}]
  %s5 = inlined_call_operand.vmem [shape: f32[256,64], index: 5, kind: output, shape index: {1}]
  %6 = xla_tuple %s4, %s5
  %s7 = sld [smem:[#allocation0]]
  $region88: #{pool_forward.3} parent=0
    _
  %s9 = ssub.s32 1, %s7
  %s10 = scalar_select 0, %s9, %s7
  $region1: #{pool_forward.3} parent=0
    #allocation3 [shape = 'u8[524288]{0}', space=vmem, size = 0x80000, scoped, tag = 'input window, operand 0']
    #allocation4 [shape = 'u8[262144]{0}', space=vmem, size = 0x40000, scoped, tag = 'output window, operand 0, single buffered']
    #allocation5 [shape = 's32[2]{0}', space=sflag, size = 0x8, scoped, tag = 'scoped memory for pool_forward.3']
    %11 = vsyncpa [#allocation5], 0
    loop: start=0, step=1, limit=4
    $region2: #{pool_forward.3} parent=1 // loop_pre_header
      _
    $region3: #{pool_forward.3} parent=1 // loop_header
      %s13 = sphi 0, %s17
      %p14 = scmp.ge.s32.totalorder %s13, 4
      %s23 = sphi 0, %s25
      %s26 = sphi 0, %s23
      %s27 = sphi 0, %s26
      %s43 = sphi 0, %s27
      %s49 = sphi 0, %s51
      %s52 = sphi 0, %s49
      %s53 = sphi 0, %s52
      %s69 = sphi 0, %s53
      %s73 = sphi 0, %s73
      %s75 = sphi 0, %s73
      %s76 = sphi 0, %s75
      %s90 = sphi 0, %s76
      %s94 = sphi 0, %s94
      %s96 = sphi 0, %s94
      %s97 = sphi 0, %s96
      %s111 = sphi 0, %s97
      %s115 = sphi 0, %s115
      %s117 = sphi 0, %s115
      %s118 = sphi 0, %s117
      %s132 = sphi 0, %s118
      %s136 = sphi 0, %s136
      %s138 = sphi 0, %s136
      %s139 = sphi 0, %s138
      %s153 = sphi 0, %s139
    $region4: #{pool_forward.3} parent=1 // loop_header_branch
      %16 = sbr.rel (%p14) target = $region8
    $region5: #{pool_forward.3} parent=1 // loop_body
      %s18 = ssub.s32 %s13, 1
      %s19 = ssub.s32 %s13, 2
      %s20 = sadd.s32 %s13, 1
      %s21 = ssub.s32 %s13, %s20
      %p22 = scmp.eq.s32.totalorder %s21, 0
      %s24 = sadd.s32 %s23, 1
      %s25 = scalar_select %p22, %s23, %s24
      %p28 = pneg %p22
      %p29 = scmp.eq.s32.totalorder %s13, 1
      %p30 = por %p28, %p29
      %p31 = scmp.ne.s32.totalorder %s23, %s26
      %p32 = scmp.eq.s32.totalorder %s13, 0
      %p33 = por %p31, %p32
      %p34 = scmp.ne.s32.totalorder %s23, %s26
      %p35 = scmp.eq.s32.totalorder %s18, 1
      %p36 = por %p34, %p35
      %p37 = scmp.ne.s32.totalorder %s26, %s27
      %p38 = scmp.eq.s32.totalorder %s18, 0
      %p39 = por %p37, %p38
      %p40 = scmp.ne.s32.totalorder %s26, %s27
      %p41 = scmp.eq.s32.totalorder %s19, 1
      %p42 = por %p40, %p41
      %p44 = scmp.ne.s32.totalorder %s27, %s43
      %p45 = scmp.eq.s32.totalorder %s19, 0
      %p46 = por %p44, %p45
      %s47 = ssub.s32 %s13, %s20
      %p48 = scmp.eq.s32.totalorder %s47, 0
      %s50 = sadd.s32 %s49, 1
      %s51 = scalar_select %p48, %s49, %s50
      %p54 = pneg %p48
      %p55 = scmp.eq.s32.totalorder %s13, 1
      %p56 = por %p54, %p55
      %p57 = scmp.ne.s32.totalorder %s49, %s52
      %p58 = scmp.eq.s32.totalorder %s13, 0
      %p59 = por %p57, %p58
      %p60 = scmp.ne.s32.totalorder %s49, %s52
      %p61 = scmp.eq.s32.totalorder %s18, 1
      %p62 = por %p60, %p61
      %p63 = scmp.ne.s32.totalorder %s52, %s53
      %p64 = scmp.eq.s32.totalorder %s18, 0
      %p65 = por %p63, %p64
      %p66 = scmp.ne.s32.totalorder %s52, %s53
      %p67 = scmp.eq.s32.totalorder %s19, 1
      %p68 = por %p66, %p67
      %p70 = scmp.ne.s32.totalorder %s53, %s69
      %p71 = scmp.eq.s32.totalorder %s19, 0
      %p72 = por %p70, %p71
      %s74 = sadd.s32 %s73, 1
      %p77 = scmp.eq.s32.totalorder %s13, 1
      %p78 = scmp.ne.s32.totalorder %s73, %s75
      %p79 = scmp.eq.s32.totalorder %s13, 0
      %p80 = por %p78, %p79
      %p81 = scmp.ne.s32.totalorder %s73, %s75
      %p82 = scmp.eq.s32.totalorder %s18, 1
      %p83 = por %p81, %p82
      %p84 = scmp.ne.s32.totalorder %s75, %s76
      %p85 = scmp.eq.s32.totalorder %s18, 0
      %p86 = por %p84, %p85
      %p87 = scmp.ne.s32.totalorder %s75, %s76
      %p88 = scmp.eq.s32.totalorder %s19, 1
      %p89 = por %p87, %p88
      %p91 = scmp.ne.s32.totalorder %s76, %s90
      %p92 = scmp.eq.s32.totalorder %s19, 0
      %p93 = por %p91, %p92
      %s95 = sadd.s32 %s94, 1
      %p98 = scmp.eq.s32.totalorder %s13, 1
      %p99 = scmp.ne.s32.totalorder %s94, %s96
      %p100 = scmp.eq.s32.totalorder %s13, 0
      %p101 = por %p99, %p100
      %p102 = scmp.ne.s32.totalorder %s94, %s96
      %p103 = scmp.eq.s32.totalorder %s18, 1
      %p104 = por %p102, %p103
      %p105 = scmp.ne.s32.totalorder %s96, %s97
      %p106 = scmp.eq.s32.totalorder %s18, 0
      %p107 = por %p105, %p106
      %p108 = scmp.ne.s32.totalorder %s96, %s97
      %p109 = scmp.eq.s32.totalorder %s19, 1
      %p110 = por %p108, %p109
      %p112 = scmp.ne.s32.totalorder %s97, %s111
      %p113 = scmp.eq.s32.totalorder %s19, 0
      %p114 = por %p112, %p113
      %s116 = sadd.s32 %s115, 1
      %p119 = scmp.eq.s32.totalorder %s13, 1
      %p120 = scmp.ne.s32.totalorder %s115, %s117
      %p121 = scmp.eq.s32.totalorder %s13, 0
      %p122 = por %p120, %p121
      %p123 = scmp.ne.s32.totalorder %s115, %s117
      %p124 = scmp.eq.s32.totalorder %s18, 1
      %p125 = por %p123, %p124
      %p126 = scmp.ne.s32.totalorder %s117, %s118
      %p127 = scmp.eq.s32.totalorder %s18, 0
      %p128 = por %p126, %p127
      %p129 = scmp.ne.s32.totalorder %s117, %s118
      %p130 = scmp.eq.s32.totalorder %s19, 1
      %p131 = por %p129, %p130
      %p133 = scmp.ne.s32.totalorder %s118, %s132
      %p134 = scmp.eq.s32.totalorder %s19, 0
      %p135 = por %p133, %p134
      %s137 = sadd.s32 %s136, 1
      %p140 = scmp.eq.s32.totalorder %s13, 1
      %p141 = scmp.ne.s32.totalorder %s136, %s138
      %p142 = scmp.eq.s32.totalorder %s13, 0
      %p143 = por %p141, %p142
      %p144 = scmp.ne.s32.totalorder %s136, %s138
      %p145 = scmp.eq.s32.totalorder %s18, 1
      %p146 = por %p144, %p145
      %p147 = scmp.ne.s32.totalorder %s138, %s139
      %p148 = scmp.eq.s32.totalorder %s18, 0
      %p149 = por %p147, %p148
      %p150 = scmp.ne.s32.totalorder %s138, %s139
      %p151 = scmp.eq.s32.totalorder %s19, 1
      %p152 = por %p150, %p151
      %p154 = scmp.ne.s32.totalorder %s139, %s153
      %p155 = scmp.eq.s32.totalorder %s19, 0
      %p156 = por %p154, %p155
      %p157 = scmp.le.s32.totalorder 1, %s13
      %p158 = scmp.lt.s32.totalorder %s13, 3
      %p159 = pnand %p157, %p158
      %p160 = pneg %p159
      // Predicated region
      $region9: #{pool_forward.3} parent=5 // pred_check
        _
      $region10: #{pool_forward.3} parent=5 // pred_check_branch
        %162 = sbr.rel (%p159) target = $region12
      $region11: #{pool_forward.3} parent=5 // pred_region
        %s163 = ssub.s32 %s13, 1
        // Predicated region
        $region13: #{pool_forward.3} parent=11 // pred_check
          %p164 = pneg %p86
        $region14: #{pool_forward.3} parent=11 // pred_check_branch
          %166 = sbr.rel (%p164) target = $region16
        $region15: #{pool_forward.3} parent=11 // pred_region
          _
        $region16: #{pool_forward.3} parent=11 // pred_fallthru
          _
        // Predicated region
        $region17: #{pool_forward.3} parent=11 // pred_check
          %p167 = pneg %p107
        $region18: #{pool_forward.3} parent=11 // pred_check_branch
          %169 = sbr.rel (%p167) target = $region20
        $region19: #{pool_forward.3} parent=11 // pred_region
          _
        $region20: #{pool_forward.3} parent=11 // pred_fallthru
          _
      $region12: #{pool_forward.3} parent=5 // pred_fallthru
        _
      %p170 = scmp.lt.s32.totalorder %s13, 2
      // Predicated region
      $region21: #{pool_forward.3} parent=5 // pred_check
        %p171 = pneg %p170
      $region22: #{pool_forward.3} parent=5 // pred_check_branch
        %173 = sbr.rel (%p171) target = $region24
      $region23: #{pool_forward.3} parent=5 // pred_region
        // Predicated region
        $region25: #{pool_forward.3} parent=23 // pred_check
          %p174 = pneg %p33
        $region26: #{pool_forward.3} parent=23 // pred_check_branch
          %176 = sbr.rel (%p174) target = $region28
        $region27: #{pool_forward.3} parent=23 // pred_region
          %s177 = sand.u32 %s23, 1
          %s178 = sand.u32 %s23, 1
          %s179 = smul.addr %s178, 512
          %s180 = scalar_lea.vmem [#allocation3], %s179
          %s181 = smul.u32 4, %s13
          %s182 = smul.addr %s181, 4
          %s183 = scalar_lea.vmem %s0, %s182
          // Predicated region
          $region29: #{pool_forward.3} parent=27 // pred_check
            _
          $region30: #{pool_forward.3} parent=27 // pred_check_branch
            %185 = sbr.rel (0) target = $region32
          $region31: #{pool_forward.3} parent=27 // pred_region
            // Predicated region
            $region33: #{pool_forward.3} parent=31 // pred_check
              _
            $region34: #{pool_forward.3} parent=31 // pred_check_branch
              %187 = sbr.rel (0) target = $region36
            $region35: #{pool_forward.3} parent=31 // pred_region
              loop: start=0, step=1, limit=1
              $region37: #{pool_forward.3} parent=35 // loop_pre_header
                _
              $region38: #{pool_forward.3} parent=35 // loop_header
                %s189 = sphi 0, %s193
                %p190 = scmp.ge.s32.totalorder %s189, 1
                %s194 = sphi %s183, %s183
                %s195 = sphi %s180, %s180
              $region39: #{pool_forward.3} parent=35 // loop_header_branch
                %192 = sbr.rel (%p190) target = $region43
              $region40: #{pool_forward.3} parent=35 // loop_body
                %v196 = vld [vmem:[%s194] sm:$0xff]
                %197 = vst [vmem:[%s195] sm:$0xff] %v196
                %v198 = vld [vmem:[%s194 + $0x8] sm:$0xff]
                %199 = vst [vmem:[%s195 + $0x8] sm:$0xff] %v198
                %v200 = vld [vmem:[%s194 + $0x20] sm:$0xff]
                %201 = vst [vmem:[%s195 + $0x10] sm:$0xff] %v200
                %v202 = vld [vmem:[%s194 + $0x28] sm:$0xff]
                %203 = vst [vmem:[%s195 + $0x18] sm:$0xff] %v202
                %v204 = vld [vmem:[%s194 + $0x40] sm:$0xff]
                %205 = vst [vmem:[%s195 + $0x20] sm:$0xff] %v204
                %v206 = vld [vmem:[%s194 + $0x48] sm:$0xff]
                %207 = vst [vmem:[%s195 + $0x28] sm:$0xff] %v206
                %v208 = vld [vmem:[%s194 + $0x60] sm:$0xff]
                %209 = vst [vmem:[%s195 + $0x30] sm:$0xff] %v208
                %v210 = vld [vmem:[%s194 + $0x68] sm:$0xff]
                %211 = vst [vmem:[%s195 + $0x38] sm:$0xff] %v210
                %v212 = vld [vmem:[%s194 + $0x80] sm:$0xff]
                %213 = vst [vmem:[%s195 + $0x40] sm:$0xff] %v212
                %v214 = vld [vmem:[%s194 + $0x88] sm:$0xff]
                %215 = vst [vmem:[%s195 + $0x48] sm:$0xff] %v214
                %v216 = vld [vmem:[%s194 + $0xa0] sm:$0xff]
                %217 = vst [vmem:[%s195 + $0x50] sm:$0xff] %v216
                %v218 = vld [vmem:[%s194 + $0xa8] sm:$0xff]
                %219 = vst [vmem:[%s195 + $0x58] sm:$0xff] %v218
                %v220 = vld [vmem:[%s194 + $0xc0] sm:$0xff]
                %221 = vst [vmem:[%s195 + $0x60] sm:$0xff] %v220
                %v222 = vld [vmem:[%s194 + $0xc8] sm:$0xff]
                %223 = vst [vmem:[%s195 + $0x68] sm:$0xff] %v222
                %v224 = vld [vmem:[%s194 + $0xe0] sm:$0xff]
                %225 = vst [vmem:[%s195 + $0x70] sm:$0xff] %v224
                %v226 = vld [vmem:[%s194 + $0xe8] sm:$0xff]
                %227 = vst [vmem:[%s195 + $0x78] sm:$0xff] %v226
                %v228 = vld [vmem:[%s194 + $0x100] sm:$0xff]
                %229 = vst [vmem:[%s195 + $0x80] sm:$0xff] %v228
                %v230 = vld [vmem:[%s194 + $0x108] sm:$0xff]
                %231 = vst [vmem:[%s195 + $0x88] sm:$0xff] %v230
                %v232 = vld [vmem:[%s194 + $0x120] sm:$0xff]
                %233 = vst [vmem:[%s195 + $0x90] sm:$0xff] %v232
                %v234 = vld [vmem:[%s194 + $0x128] sm:$0xff]
                %235 = vst [vmem:[%s195 + $0x98] sm:$0xff] %v234
                %v236 = vld [vmem:[%s194 + $0x140] sm:$0xff]
                %237 = vst [vmem:[%s195 + $0xa0] sm:$0xff] %v236
                %v238 = vld [vmem:[%s194 + $0x148] sm:$0xff]
                %239 = vst [vmem:[%s195 + $0xa8] sm:$0xff] %v238
                %v240 = vld [vmem:[%s194 + $0x160] sm:$0xff]
                %241 = vst [vmem:[%s195 + $0xb0] sm:$0xff] %v240
                %v242 = vld [vmem:[%s194 + $0x168] sm:$0xff]
                %243 = vst [vmem:[%s195 + $0xb8] sm:$0xff] %v242
                %v244 = vld [vmem:[%s194 + $0x180] sm:$0xff]
                %245 = vst [vmem:[%s195 + $0xc0] sm:$0xff] %v244
                %v246 = vld [vmem:[%s194 + $0x188] sm:$0xff]
                %247 = vst [vmem:[%s195 + $0xc8] sm:$0xff] %v246
                %v248 = vld [vmem:[%s194 + $0x1a0] sm:$0xff]
                %249 = vst [vmem:[%s195 + $0xd0] sm:$0xff] %v248
                %v250 = vld [vmem:[%s194 + $0x1a8] sm:$0xff]
                %251 = vst [vmem:[%s195 + $0xd8] sm:$0xff] %v250
                %v252 = vld [vmem:[%s194 + $0x1c0] sm:$0xff]
                %253 = vst [vmem:[%s195 + $0xe0] sm:$0xff] %v252
                %v254 = vld [vmem:[%s194 + $0x1c8] sm:$0xff]
                %255 = vst [vmem:[%s195 + $0xe8] sm:$0xff] %v254
                %v256 = vld [vmem:[%s194 + $0x1e0] sm:$0xff]
                %257 = vst [vmem:[%s195 + $0xf0] sm:$0xff] %v256
                %v258 = vld [vmem:[%s194 + $0x1e8] sm:$0xff]
                %259 = vst [vmem:[%s195 + $0xf8] sm:$0xff] %v258
                %v260 = vld [vmem:[%s194 + $0x200] sm:$0xff]
                %261 = vst [vmem:[%s195 + $0x100] sm:$0xff] %v260
                %v262 = vld [vmem:[%s194 + $0x208] sm:$0xff]
                %263 = vst [vmem:[%s195 + $0x108] sm:$0xff] %v262
                %v264 = vld [vmem:[%s194 + $0x220] sm:$0xff]
                %265 = vst [vmem:[%s195 + $0x110] sm:$0xff] %v264
                %v266 = vld [vmem:[%s194 + $0x228] sm:$0xff]
                %267 = vst [vmem:[%s195 + $0x118] sm:$0xff] %v266
                %v268 = vld [vmem:[%s194 + $0x240] sm:$0xff]
                %269 = vst [vmem:[%s195 + $0x120] sm:$0xff] %v268
                %v270 = vld [vmem:[%s194 + $0x248] sm:$0xff]
                %271 = vst [vmem:[%s195 + $0x128] sm:$0xff] %v270
                %v272 = vld [vmem:[%s194 + $0x260] sm:$0xff]
                %273 = vst [vmem:[%s195 + $0x130] sm:$0xff] %v272
                %v274 = vld [vmem:[%s194 + $0x268] sm:$0xff]
                %275 = vst [vmem:[%s195 + $0x138] sm:$0xff] %v274
                %v276 = vld [vmem:[%s194 + $0x280] sm:$0xff]
                %277 = vst [vmem:[%s195 + $0x140] sm:$0xff] %v276
                %v278 = vld [vmem:[%s194 + $0x288] sm:$0xff]
                %279 = vst [vmem:[%s195 + $0x148] sm:$0xff] %v278
                %v280 = vld [vmem:[%s194 + $0x2a0] sm:$0xff]
                %281 = vst [vmem:[%s195 + $0x150] sm:$0xff] %v280
                %v282 = vld [vmem:[%s194 + $0x2a8] sm:$0xff]
                %283 = vst [vmem:[%s195 + $0x158] sm:$0xff] %v282
                %v284 = vld [vmem:[%s194 + $0x2c0] sm:$0xff]
                %285 = vst [vmem:[%s195 + $0x160] sm:$0xff] %v284
                %v286 = vld [vmem:[%s194 + $0x2c8] sm:$0xff]
                %287 = vst [vmem:[%s195 + $0x168] sm:$0xff] %v286
                %v288 = vld [vmem:[%s194 + $0x2e0] sm:$0xff]
                %289 = vst [vmem:[%s195 + $0x170] sm:$0xff] %v288
                %v290 = vld [vmem:[%s194 + $0x2e8] sm:$0xff]
                %291 = vst [vmem:[%s195 + $0x178] sm:$0xff] %v290
                %v292 = vld [vmem:[%s194 + $0x300] sm:$0xff]
                %293 = vst [vmem:[%s195 + $0x180] sm:$0xff] %v292
                %v294 = vld [vmem:[%s194 + $0x308] sm:$0xff]
                %295 = vst [vmem:[%s195 + $0x188] sm:$0xff] %v294
                %v296 = vld [vmem:[%s194 + $0x320] sm:$0xff]
                %297 = vst [vmem:[%s195 + $0x190] sm:$0xff] %v296
                %v298 = vld [vmem:[%s194 + $0x328] sm:$0xff]
                %299 = vst [vmem:[%s195 + $0x198] sm:$0xff] %v298
                %v300 = vld [vmem:[%s194 + $0x340] sm:$0xff]
                %301 = vst [vmem:[%s195 + $0x1a0] sm:$0xff] %v300
                %v302 = vld [vmem:[%s194 + $0x348] sm:$0xff]
                %303 = vst [vmem:[%s195 + $0x1a8] sm:$0xff] %v302
                %v304 = vld [vmem:[%s194 + $0x360] sm:$0xff]
                %305 = vst [vmem:[%s195 + $0x1b0] sm:$0xff] %v304
                %v306 = vld [vmem:[%s194 + $0x368] sm:$0xff]
                %307 = vst [vmem:[%s195 + $0x1b8] sm:$0xff] %v306
                %v308 = vld [vmem:[%s194 + $0x380] sm:$0xff]
                %309 = vst [vmem:[%s195 + $0x1c0] sm:$0xff] %v308
                %v310 = vld [vmem:[%s194 + $0x388] sm:$0xff]
                %311 = vst [vmem:[%s195 + $0x1c8] sm:$0xff] %v310
                %v312 = vld [vmem:[%s194 + $0x3a0] sm:$0xff]
                %313 = vst [vmem:[%s195 + $0x1d0] sm:$0xff] %v312
                %v314 = vld [vmem:[%s194 + $0x3a8] sm:$0xff]
                %315 = vst [vmem:[%s195 + $0x1d8] sm:$0xff] %v314
                %v316 = vld [vmem:[%s194 + $0x3c0] sm:$0xff]
                %317 = vst [vmem:[%s195 + $0x1e0] sm:$0xff] %v316
                %v318 = vld [vmem:[%s194 + $0x3c8] sm:$0xff]
                %319 = vst [vmem:[%s195 + $0x1e8] sm:$0xff] %v318
                %v320 = vld [vmem:[%s194 + $0x3e0] sm:$0xff]
                %321 = vst [vmem:[%s195 + $0x1f0] sm:$0xff] %v320
                %v322 = vld [vmem:[%s194 + $0x3e8] sm:$0xff]
                %323 = vst [vmem:[%s195 + $0x1f8] sm:$0xff] %v322
              $region41: #{pool_forward.3} parent=35 // loop_footer
                %s193 = sadd.s32 1, %s189
              $region42: #{pool_forward.3} parent=35 // loop_footer_branch
                %188 = sbr.rel target = $region38
              $region43: #{pool_forward.3} parent=35 // loop_exit
                _
            $region36: #{pool_forward.3} parent=31 // pred_fallthru
              _
            // Predicated region
            $region44: #{pool_forward.3} parent=31 // pred_check
              _
            $region45: #{pool_forward.3} parent=31 // pred_check_branch
              %325 = sbr.rel target = $region47
            $region46: #{pool_forward.3} parent=31 // pred_region
              _
            $region47: #{pool_forward.3} parent=31 // pred_fallthru
              _
          $region32: #{pool_forward.3} parent=27 // pred_fallthru
            _
          %326 = vnop
        $region28: #{pool_forward.3} parent=23 // pred_fallthru
          _
        // Predicated region
        $region48: #{pool_forward.3} parent=23 // pred_check
          %p327 = pneg %p59
        $region49: #{pool_forward.3} parent=23 // pred_check_branch
          %329 = sbr.rel (%p327) target = $region51
        $region50: #{pool_forward.3} parent=23 // pred_region
          %s330 = smul.u32 64, %s13
          %p331 = scmp.lt.s32.totalorder %s330, 127
          %s332 = scalar_select %p331, %s330, 127
          %s333 = smul.addr %s332, 2
          %s334 = smul.addr %s333, 4
          %s335 = scalar_lea.vmem %s1, %s334
          %s336 = smul.u32 64, %s13
        $region51: #{pool_forward.3} parent=23 // pred_fallthru
          _
      $region24: #{pool_forward.3} parent=5 // pred_fallthru
        _
      %p337 = scmp.le.s32.totalorder 1, %s13
      %p338 = scmp.lt.s32.totalorder %s13, 3
      %p339 = pnand %p337, %p338
      %p340 = pneg %p339
      // Predicated region
      $region52: #{pool_forward.3} parent=5 // pred_check
        _
      $region53: #{pool_forward.3} parent=5 // pred_check_branch
        %342 = sbr.rel (%p339) target = $region55
      $region54: #{pool_forward.3} parent=5 // pred_region
        %s343 = ssub.s32 %s13, 1
        %s344 = sand.u32 %s26, 1
        %s345 = sand.u32 %s26, 1
        %s346 = smul.addr %s345, 512
        %s347 = scalar_lea.vmem [#allocation3], %s346
        // Predicated region
        $region56: #{pool_forward.3} parent=54 // pred_check
          %p348 = pneg %p39
        $region57: #{pool_forward.3} parent=54 // pred_check_branch
          %350 = sbr.rel (%p348) target = $region59
        $region58: #{pool_forward.3} parent=54 // pred_region
          _
        $region59: #{pool_forward.3} parent=54 // pred_fallthru
          _
        %s351 = sand.u32 %s26, 1
        %s352 = sand.u32 %s26, 1
        %s353 = smul.addr %s352, 512
        %s354 = scalar_lea.vmem [#allocation3], %s353
        %p355 = pneg %p39
        %p356 = pneg %p36
        %s357 = smul.u32 64, %s18
        %p358 = scmp.lt.s32.totalorder %s357, 127
        %s359 = scalar_select %p358, %s357, 127
        %s360 = smul.addr %s359, 2
        %s361 = smul.addr %s360, 4
        %s362 = scalar_lea.vmem %s1, %s361
        %p363 = pneg %p65
        %p364 = pneg %p62
        %p365 = pneg %p86
        %p366 = pneg %p83
        %p367 = pneg %p107
        %p368 = pneg %p104
        %p369 = pneg %p128
        %p370 = pneg %p125
        %p371 = pneg %p149
        %p372 = pneg %p146
        %s373 = smul.u32 4, %s18
        %s374 = smul.u32 64, %s18
        %p375 = scmp.lt.s32.totalorder %s374, 127
        %s376 = scalar_select %p375, %s374, 127
        %s377 = smul.addr %s376, 2
        %s378 = smul.addr %s377, 4
        %s379 = scalar_lea.vmem %s1, %s378
        %s380 = smul.u32 64, %s18
        %p381 = scmp.eq.s32.totalorder %s18, 0
        // Predicated region
        $region60: #{pool_forward.3} parent=54 // pred_check
          %p382 = pneg %p381
        $region61: #{pool_forward.3} parent=54 // pred_check_branch
          %384 = sbr.rel (%p382) target = $region63
        $region62: #{pool_forward.3} parent=54 // pred_region
          %385 = vst [vmem:[#allocation2] sm:$0xff] 0.0
          %386 = vst [vmem:[#allocation2 + $0x8] sm:$0xff] 0.0
          %387 = vst [vmem:[#allocation2 + $0x10] sm:$0xff] 0.0
          %388 = vst [vmem:[#allocation2 + $0x18] sm:$0xff] 0.0
          %389 = vst [vmem:[#allocation2 + $0x20] sm:$0xff] 0.0
          %390 = vst [vmem:[#allocation2 + $0x28] sm:$0xff] 0.0
          %391 = vst [vmem:[#allocation2 + $0x30] sm:$0xff] 0.0
          %392 = vst [vmem:[#allocation2 + $0x38] sm:$0xff] 0.0
          %393 = vst [vmem:[#allocation2 + $0x40] sm:$0xff] 0.0
          %394 = vst [vmem:[#allocation2 + $0x48] sm:$0xff] 0.0
          %395 = vst [vmem:[#allocation2 + $0x50] sm:$0xff] 0.0
          %396 = vst [vmem:[#allocation2 + $0x58] sm:$0xff] 0.0
          %397 = vst [vmem:[#allocation2 + $0x60] sm:$0xff] 0.0
          %398 = vst [vmem:[#allocation2 + $0x68] sm:$0xff] 0.0
          %399 = vst [vmem:[#allocation2 + $0x70] sm:$0xff] 0.0
          %400 = vst [vmem:[#allocation2 + $0x78] sm:$0xff] 0.0
          %401 = vst [vmem:[#allocation2 + $0x80] sm:$0xff] 0.0
          %402 = vst [vmem:[#allocation2 + $0x88] sm:$0xff] 0.0
          %403 = vst [vmem:[#allocation2 + $0x90] sm:$0xff] 0.0
          %404 = vst [vmem:[#allocation2 + $0x98] sm:$0xff] 0.0
          %405 = vst [vmem:[#allocation2 + $0xa0] sm:$0xff] 0.0
          %406 = vst [vmem:[#allocation2 + $0xa8] sm:$0xff] 0.0
          %407 = vst [vmem:[#allocation2 + $0xb0] sm:$0xff] 0.0
          %408 = vst [vmem:[#allocation2 + $0xb8] sm:$0xff] 0.0
          %409 = vst [vmem:[#allocation2 + $0xc0] sm:$0xff] 0.0
          %410 = vst [vmem:[#allocation2 + $0xc8] sm:$0xff] 0.0
          %411 = vst [vmem:[#allocation2 + $0xd0] sm:$0xff] 0.0
          %412 = vst [vmem:[#allocation2 + $0xd8] sm:$0xff] 0.0
          %413 = vst [vmem:[#allocation2 + $0xe0] sm:$0xff] 0.0
          %414 = vst [vmem:[#allocation2 + $0xe8] sm:$0xff] 0.0
          %415 = vst [vmem:[#allocation2 + $0xf0] sm:$0xff] 0.0
          %416 = vst [vmem:[#allocation2 + $0xf8] sm:$0xff] 0.0
          %417 = vst [vmem:[#allocation2 + $0x100] sm:$0xff] 0.0
          %418 = vst [vmem:[#allocation2 + $0x108] sm:$0xff] 0.0
          %419 = vst [vmem:[#allocation2 + $0x110] sm:$0xff] 0.0
          %420 = vst [vmem:[#allocation2 + $0x118] sm:$0xff] 0.0
          %421 = vst [vmem:[#allocation2 + $0x120] sm:$0xff] 0.0
          %422 = vst [vmem:[#allocation2 + $0x128] sm:$0xff] 0.0
          %423 = vst [vmem:[#allocation2 + $0x130] sm:$0xff] 0.0
          %424 = vst [vmem:[#allocation2 + $0x138] sm:$0xff] 0.0
          %425 = vst [vmem:[#allocation2 + $0x140] sm:$0xff] 0.0
          %426 = vst [vmem:[#allocation2 + $0x148] sm:$0xff] 0.0
          %427 = vst [vmem:[#allocation2 + $0x150] sm:$0xff] 0.0
          %428 = vst [vmem:[#allocation2 + $0x158] sm:$0xff] 0.0
          %429 = vst [vmem:[#allocation2 + $0x160] sm:$0xff] 0.0
          %430 = vst [vmem:[#allocation2 + $0x168] sm:$0xff] 0.0
          %431 = vst [vmem:[#allocation2 + $0x170] sm:$0xff] 0.0
          %432 = vst [vmem:[#allocation2 + $0x178] sm:$0xff] 0.0
          %433 = vst [vmem:[#allocation2 + $0x180] sm:$0xff] 0.0
          %434 = vst [vmem:[#allocation2 + $0x188] sm:$0xff] 0.0
          %435 = vst [vmem:[#allocation2 + $0x190] sm:$0xff] 0.0
          %436 = vst [vmem:[#allocation2 + $0x198] sm:$0xff] 0.0
          %437 = vst [vmem:[#allocation2 + $0x1a0] sm:$0xff] 0.0
          %438 = vst [vmem:[#allocation2 + $0x1a8] sm:$0xff] 0.0
          %439 = vst [vmem:[#allocation2 + $0x1b0] sm:$0xff] 0.0
          %440 = vst [vmem:[#allocation2 + $0x1b8] sm:$0xff] 0.0
          %441 = vst [vmem:[#allocation2 + $0x1c0] sm:$0xff] 0.0
          %442 = vst [vmem:[#allocation2 + $0x1c8] sm:$0xff] 0.0
          %443 = vst [vmem:[#allocation2 + $0x1d0] sm:$0xff] 0.0
          %444 = vst [vmem:[#allocation2 + $0x1d8] sm:$0xff] 0.0
          %445 = vst [vmem:[#allocation2 + $0x1e0] sm:$0xff] 0.0
          %446 = vst [vmem:[#allocation2 + $0x1e8] sm:$0xff] 0.0
          %447 = vst [vmem:[#allocation2 + $0x1f0] sm:$0xff] 0.0
          %448 = vst [vmem:[#allocation2 + $0x1f8] sm:$0xff] 0.0
        $region63: #{pool_forward.3} parent=54 // pred_fallthru
          _
        %v449 = vld [vmem:[#allocation2] sm:$0xff]
        %v450 = vld [vmem:[#allocation2 + $0x8] sm:$0xff]
        %v451 = vld [vmem:[#allocation2 + $0x10] sm:$0xff]
        %v452 = vld [vmem:[#allocation2 + $0x18] sm:$0xff]
        %v453 = vld [vmem:[#allocation2 + $0x20] sm:$0xff]
        %v454 = vld [vmem:[#allocation2 + $0x28] sm:$0xff]
        %v455 = vld [vmem:[#allocation2 + $0x30] sm:$0xff]
        %v456 = vld [vmem:[#allocation2 + $0x38] sm:$0xff]
        %v457 = vld [vmem:[#allocation2 + $0x40] sm:$0xff]
        %v458 = vld [vmem:[#allocation2 + $0x48] sm:$0xff]
        %v459 = vld [vmem:[#allocation2 + $0x50] sm:$0xff]
        %v460 = vld [vmem:[#allocation2 + $0x58] sm:$0xff]
        %v461 = vld [vmem:[#allocation2 + $0x60] sm:$0xff]
        %v462 = vld [vmem:[#allocation2 + $0x68] sm:$0xff]
        %v463 = vld [vmem:[#allocation2 + $0x70] sm:$0xff]
        %v464 = vld [vmem:[#allocation2 + $0x78] sm:$0xff]
        %v465 = vld [vmem:[#allocation2 + $0x80] sm:$0xff]
        %v466 = vld [vmem:[#allocation2 + $0x88] sm:$0xff]
        %v467 = vld [vmem:[#allocation2 + $0x90] sm:$0xff]
        %v468 = vld [vmem:[#allocation2 + $0x98] sm:$0xff]
        %v469 = vld [vmem:[#allocation2 + $0xa0] sm:$0xff]
        %v470 = vld [vmem:[#allocation2 + $0xa8] sm:$0xff]
        %v471 = vld [vmem:[#allocation2 + $0xb0] sm:$0xff]
        %v472 = vld [vmem:[#allocation2 + $0xb8] sm:$0xff]
        %v473 = vld [vmem:[#allocation2 + $0xc0] sm:$0xff]
        %v474 = vld [vmem:[#allocation2 + $0xc8] sm:$0xff]
        %v475 = vld [vmem:[#allocation2 + $0xd0] sm:$0xff]
        %v476 = vld [vmem:[#allocation2 + $0xd8] sm:$0xff]
        %v477 = vld [vmem:[#allocation2 + $0xe0] sm:$0xff]
        %v478 = vld [vmem:[#allocation2 + $0xe8] sm:$0xff]
        %v479 = vld [vmem:[#allocation2 + $0xf0] sm:$0xff]
        %v480 = vld [vmem:[#allocation2 + $0xf8] sm:$0xff]
        %v481 = vld [vmem:[#allocation2 + $0x100] sm:$0xff]
        %v482 = vld [vmem:[#allocation2 + $0x108] sm:$0xff]
        %v483 = vld [vmem:[#allocation2 + $0x110] sm:$0xff]
        %v484 = vld [vmem:[#allocation2 + $0x118] sm:$0xff]
        %v485 = vld [vmem:[#allocation2 + $0x120] sm:$0xff]
        %v486 = vld [vmem:[#allocation2 + $0x128] sm:$0xff]
        %v487 = vld [vmem:[#allocation2 + $0x130] sm:$0xff]
        %v488 = vld [vmem:[#allocation2 + $0x138] sm:$0xff]
        %v489 = vld [vmem:[#allocation2 + $0x140] sm:$0xff]
        %v490 = vld [vmem:[#allocation2 + $0x148] sm:$0xff]
        %v491 = vld [vmem:[#allocation2 + $0x150] sm:$0xff]
        %v492 = vld [vmem:[#allocation2 + $0x158] sm:$0xff]
        %v493 = vld [vmem:[#allocation2 + $0x160] sm:$0xff]
        %v494 = vld [vmem:[#allocation2 + $0x168] sm:$0xff]
        %v495 = vld [vmem:[#allocation2 + $0x170] sm:$0xff]
        %v496 = vld [vmem:[#allocation2 + $0x178] sm:$0xff]
        %v497 = vld [vmem:[#allocation2 + $0x180] sm:$0xff]
        %v498 = vld [vmem:[#allocation2 + $0x188] sm:$0xff]
        %v499 = vld [vmem:[#allocation2 + $0x190] sm:$0xff]
        %v500 = vld [vmem:[#allocation2 + $0x198] sm:$0xff]
        %v501 = vld [vmem:[#allocation2 + $0x1a0] sm:$0xff]
        %v502 = vld [vmem:[#allocation2 + $0x1a8] sm:$0xff]
        %v503 = vld [vmem:[#allocation2 + $0x1b0] sm:$0xff]
        %v504 = vld [vmem:[#allocation2 + $0x1b8] sm:$0xff]
        %v505 = vld [vmem:[#allocation2 + $0x1c0] sm:$0xff]
        %v506 = vld [vmem:[#allocation2 + $0x1c8] sm:$0xff]
        %v507 = vld [vmem:[#allocation2 + $0x1d0] sm:$0xff]
        %v508 = vld [vmem:[#allocation2 + $0x1d8] sm:$0xff]
        %v509 = vld [vmem:[#allocation2 + $0x1e0] sm:$0xff]
        %v510 = vld [vmem:[#allocation2 + $0x1e8] sm:$0xff]
        %v511 = vld [vmem:[#allocation2 + $0x1f0] sm:$0xff]
        %v512 = vld [vmem:[#allocation2 + $0x1f8] sm:$0xff]
        %v513 = vld [vmem:[%s347] sm:$0xff]
        %v514 = vld [vmem:[%s347 + $0x8] sm:$0xff]
        %v515 = vld [vmem:[%s347 + $0x10] sm:$0xff]
        %v516 = vld [vmem:[%s347 + $0x18] sm:$0xff]
        %v517 = vld [vmem:[%s347 + $0x20] sm:$0xff]
        %v518 = vld [vmem:[%s347 + $0x28] sm:$0xff]
        %v519 = vld [vmem:[%s347 + $0x30] sm:$0xff]
        %v520 = vld [vmem:[%s347 + $0x38] sm:$0xff]
        %v521 = vld [vmem:[%s347 + $0x40] sm:$0xff]
        %v522 = vld [vmem:[%s347 + $0x48] sm:$0xff]
        %v523 = vld [vmem:[%s347 + $0x50] sm:$0xff]
        %v524 = vld [vmem:[%s347 + $0x58] sm:$0xff]
        %v525 = vld [vmem:[%s347 + $0x60] sm:$0xff]
        %v526 = vld [vmem:[%s347 + $0x68] sm:$0xff]
        %v527 = vld [vmem:[%s347 + $0x70] sm:$0xff]
        %v528 = vld [vmem:[%s347 + $0x78] sm:$0xff]
        %v529 = vld [vmem:[%s347 + $0x80] sm:$0xff]
        %v530 = vld [vmem:[%s347 + $0x88] sm:$0xff]
        %v531 = vld [vmem:[%s347 + $0x90] sm:$0xff]
        %v532 = vld [vmem:[%s347 + $0x98] sm:$0xff]
        %v533 = vld [vmem:[%s347 + $0xa0] sm:$0xff]
        %v534 = vld [vmem:[%s347 + $0xa8] sm:$0xff]
        %v535 = vld [vmem:[%s347 + $0xb0] sm:$0xff]
        %v536 = vld [vmem:[%s347 + $0xb8] sm:$0xff]
        %v537 = vld [vmem:[%s347 + $0xc0] sm:$0xff]
        %v538 = vld [vmem:[%s347 + $0xc8] sm:$0xff]
        %v539 = vld [vmem:[%s347 + $0xd0] sm:$0xff]
        %v540 = vld [vmem:[%s347 + $0xd8] sm:$0xff]
        %v541 = vld [vmem:[%s347 + $0xe0] sm:$0xff]
        %v542 = vld [vmem:[%s347 + $0xe8] sm:$0xff]
        %v543 = vld [vmem:[%s347 + $0xf0] sm:$0xff]
        %v544 = vld [vmem:[%s347 + $0xf8] sm:$0xff]
        %v545 = vld [vmem:[%s347 + $0x100] sm:$0xff]
        %v546 = vld [vmem:[%s347 + $0x108] sm:$0xff]
        %v547 = vld [vmem:[%s347 + $0x110] sm:$0xff]
        %v548 = vld [vmem:[%s347 + $0x118] sm:$0xff]
        %v549 = vld [vmem:[%s347 + $0x120] sm:$0xff]
        %v550 = vld [vmem:[%s347 + $0x128] sm:$0xff]
        %v551 = vld [vmem:[%s347 + $0x130] sm:$0xff]
        %v552 = vld [vmem:[%s347 + $0x138] sm:$0xff]
        %v553 = vld [vmem:[%s347 + $0x140] sm:$0xff]
        %v554 = vld [vmem:[%s347 + $0x148] sm:$0xff]
        %v555 = vld [vmem:[%s347 + $0x150] sm:$0xff]
        %v556 = vld [vmem:[%s347 + $0x158] sm:$0xff]
        %v557 = vld [vmem:[%s347 + $0x160] sm:$0xff]
        %v558 = vld [vmem:[%s347 + $0x168] sm:$0xff]
        %v559 = vld [vmem:[%s347 + $0x170] sm:$0xff]
        %v560 = vld [vmem:[%s347 + $0x178] sm:$0xff]
        %v561 = vld [vmem:[%s347 + $0x180] sm:$0xff]
        %v562 = vld [vmem:[%s347 + $0x188] sm:$0xff]
        %v563 = vld [vmem:[%s347 + $0x190] sm:$0xff]
        %v564 = vld [vmem:[%s347 + $0x198] sm:$0xff]
        %v565 = vld [vmem:[%s347 + $0x1a0] sm:$0xff]
        %v566 = vld [vmem:[%s347 + $0x1a8] sm:$0xff]
        %v567 = vld [vmem:[%s347 + $0x1b0] sm:$0xff]
        %v568 = vld [vmem:[%s347 + $0x1b8] sm:$0xff]
        %v569 = vld [vmem:[%s347 + $0x1c0] sm:$0xff]
        %v570 = vld [vmem:[%s347 + $0x1c8] sm:$0xff]
        %v571 = vld [vmem:[%s347 + $0x1d0] sm:$0xff]
        %v572 = vld [vmem:[%s347 + $0x1d8] sm:$0xff]
        %v573 = vld [vmem:[%s347 + $0x1e0] sm:$0xff]
        %v574 = vld [vmem:[%s347 + $0x1e8] sm:$0xff]
        %v575 = vld [vmem:[%s347 + $0x1f0] sm:$0xff]
        %v576 = vld [vmem:[%s347 + $0x1f8] sm:$0xff]
        %v577 = vld [vmem:[%s379] sm:$0xff]
        %v578 = vld [vmem:[%s379 + $0x8] sm:$0xff]
        %v579 = vld [vmem:[%s379 + $0x10] sm:$0xff]
        %v580 = vld [vmem:[%s379 + $0x18] sm:$0xff]
        %v581 = vld [vmem:[%s379 + $0x20] sm:$0xff]
        %v582 = vld [vmem:[%s379 + $0x28] sm:$0xff]
        %v583 = vld [vmem:[%s379 + $0x30] sm:$0xff]
        %v584 = vld [vmem:[%s379 + $0x38] sm:$0xff]
        %v585 = vld [vmem:[%s379 + $0x40] sm:$0xff]
        %v586 = vld [vmem:[%s379 + $0x48] sm:$0xff]
        %v587 = vld [vmem:[%s379 + $0x50] sm:$0xff]
        %v588 = vld [vmem:[%s379 + $0x58] sm:$0xff]
        %v589 = vld [vmem:[%s379 + $0x60] sm:$0xff]
        %v590 = vld [vmem:[%s379 + $0x68] sm:$0xff]
        %v591 = vld [vmem:[%s379 + $0x70] sm:$0xff]
        %v592 = vld [vmem:[%s379 + $0x78] sm:$0xff]
        %v593 = vld [vmem:[%s379 + $0x80] sm:$0xff]
        %v594 = vld [vmem:[%s379 + $0x88] sm:$0xff]
        %v595 = vld [vmem:[%s379 + $0x90] sm:$0xff]
        %v596 = vld [vmem:[%s379 + $0x98] sm:$0xff]
        %v597 = vld [vmem:[%s379 + $0xa0] sm:$0xff]
        %v598 = vld [vmem:[%s379 + $0xa8] sm:$0xff]
        %v599 = vld [vmem:[%s379 + $0xb0] sm:$0xff]
        %v600 = vld [vmem:[%s379 + $0xb8] sm:$0xff]
        %v601 = vld [vmem:[%s379 + $0xc0] sm:$0xff]
        %v602 = vld [vmem:[%s379 + $0xc8] sm:$0xff]
        %v603 = vld [vmem:[%s379 + $0xd0] sm:$0xff]
        %v604 = vld [vmem:[%s379 + $0xd8] sm:$0xff]
        %v605 = vld [vmem:[%s379 + $0xe0] sm:$0xff]
        %v606 = vld [vmem:[%s379 + $0xe8] sm:$0xff]
        %v607 = vld [vmem:[%s379 + $0xf0] sm:$0xff]
        %v608 = vld [vmem:[%s379 + $0xf8] sm:$0xff]
        %v609 = vld [vmem:[%s379 + $0x100] sm:$0xff]
        %v610 = vld [vmem:[%s379 + $0x108] sm:$0xff]
        %v611 = vld [vmem:[%s379 + $0x110] sm:$0xff]
        %v612 = vld [vmem:[%s379 + $0x118] sm:$0xff]
        %v613 = vld [vmem:[%s379 + $0x120] sm:$0xff]
        %v614 = vld [vmem:[%s379 + $0x128] sm:$0xff]
        %v615 = vld [vmem:[%s379 + $0x130] sm:$0xff]
        %v616 = vld [vmem:[%s379 + $0x138] sm:$0xff]
        %v617 = vld [vmem:[%s379 + $0x140] sm:$0xff]
        %v618 = vld [vmem:[%s379 + $0x148] sm:$0xff]
        %v619 = vld [vmem:[%s379 + $0x150] sm:$0xff]
        %v620 = vld [vmem:[%s379 + $0x158] sm:$0xff]
        %v621 = vld [vmem:[%s379 + $0x160] sm:$0xff]
        %v622 = vld [vmem:[%s379 + $0x168] sm:$0xff]
        %v623 = vld [vmem:[%s379 + $0x170] sm:$0xff]
        %v624 = vld [vmem:[%s379 + $0x178] sm:$0xff]
        %v625 = vld [vmem:[%s379 + $0x180] sm:$0xff]
        %v626 = vld [vmem:[%s379 + $0x188] sm:$0xff]
        %v627 = vld [vmem:[%s379 + $0x190] sm:$0xff]
        %v628 = vld [vmem:[%s379 + $0x198] sm:$0xff]
        %v629 = vld [vmem:[%s379 + $0x1a0] sm:$0xff]
        %v630 = vld [vmem:[%s379 + $0x1a8] sm:$0xff]
        %v631 = vld [vmem:[%s379 + $0x1b0] sm:$0xff]
        %v632 = vld [vmem:[%s379 + $0x1b8] sm:$0xff]
        %v633 = vld [vmem:[%s379 + $0x1c0] sm:$0xff]
        %v634 = vld [vmem:[%s379 + $0x1c8] sm:$0xff]
        %v635 = vld [vmem:[%s379 + $0x1d0] sm:$0xff]
        %v636 = vld [vmem:[%s379 + $0x1d8] sm:$0xff]
        %v637 = vld [vmem:[%s379 + $0x1e0] sm:$0xff]
        %v638 = vld [vmem:[%s379 + $0x1e8] sm:$0xff]
        %v639 = vld [vmem:[%s379 + $0x1f0] sm:$0xff]
        %v640 = vld [vmem:[%s379 + $0x1f8] sm:$0xff]
        %v705 = vunpack.c.l.b16 %v513
        %v706 = vunpack.c.h.b16 %v513
        %v707 = vunpack.c.l.b16 %v514
        %v708 = vunpack.c.h.b16 %v514
        %v709 = vunpack.c.l.b16 %v515
        %v710 = vunpack.c.h.b16 %v515
        %v711 = vunpack.c.l.b16 %v516
        %v712 = vunpack.c.h.b16 %v516
        %v713 = vunpack.c.l.b16 %v517
        %v714 = vunpack.c.h.b16 %v517
        %v715 = vunpack.c.l.b16 %v518
        %v716 = vunpack.c.h.b16 %v518
        %v717 = vunpack.c.l.b16 %v519
        %v718 = vunpack.c.h.b16 %v519
        %v719 = vunpack.c.l.b16 %v520
        %v720 = vunpack.c.h.b16 %v520
        %v721 = vunpack.c.l.b16 %v521
        %v722 = vunpack.c.h.b16 %v521
        %v723 = vunpack.c.l.b16 %v522
        %v724 = vunpack.c.h.b16 %v522
        %v725 = vunpack.c.l.b16 %v523
        %v726 = vunpack.c.h.b16 %v523
        %v727 = vunpack.c.l.b16 %v524
        %v728 = vunpack.c.h.b16 %v524
        %v729 = vunpack.c.l.b16 %v525
        %v730 = vunpack.c.h.b16 %v525
        %v731 = vunpack.c.l.b16 %v526
        %v732 = vunpack.c.h.b16 %v526
        %v733 = vunpack.c.l.b16 %v527
        %v734 = vunpack.c.h.b16 %v527
        %v735 = vunpack.c.l.b16 %v528
        %v736 = vunpack.c.h.b16 %v528
        %v737 = vunpack.c.l.b16 %v529
        %v738 = vunpack.c.h.b16 %v529
        %v739 = vunpack.c.l.b16 %v530
        %v740 = vunpack.c.h.b16 %v530
        %v741 = vunpack.c.l.b16 %v531
        %v742 = vunpack.c.h.b16 %v531
        %v743 = vunpack.c.l.b16 %v532
        %v744 = vunpack.c.h.b16 %v532
        %v745 = vunpack.c.l.b16 %v533
        %v746 = vunpack.c.h.b16 %v533
        %v747 = vunpack.c.l.b16 %v534
        %v748 = vunpack.c.h.b16 %v534
        %v749 = vunpack.c.l.b16 %v535
        %v750 = vunpack.c.h.b16 %v535
        %v751 = vunpack.c.l.b16 %v536
        %v752 = vunpack.c.h.b16 %v536
        %v753 = vunpack.c.l.b16 %v537
        %v754 = vunpack.c.h.b16 %v537
        %v755 = vunpack.c.l.b16 %v538
        %v756 = vunpack.c.h.b16 %v538
        %v757 = vunpack.c.l.b16 %v539
        %v758 = vunpack.c.h.b16 %v539
        %v759 = vunpack.c.l.b16 %v540
        %v760 = vunpack.c.h.b16 %v540
        %v761 = vunpack.c.l.b16 %v541
        %v762 = vunpack.c.h.b16 %v541
        %v763 = vunpack.c.l.b16 %v542
        %v764 = vunpack.c.h.b16 %v542
        %v765 = vunpack.c.l.b16 %v543
        %v766 = vunpack.c.h.b16 %v543
        %v767 = vunpack.c.l.b16 %v544
        %v768 = vunpack.c.h.b16 %v544
        %v769 = vunpack.c.l.b16 %v545
        %v770 = vunpack.c.h.b16 %v545
        %v771 = vunpack.c.l.b16 %v546
        %v772 = vunpack.c.h.b16 %v546
        %v773 = vunpack.c.l.b16 %v547
        %v774 = vunpack.c.h.b16 %v547
        %v775 = vunpack.c.l.b16 %v548
        %v776 = vunpack.c.h.b16 %v548
        %v777 = vunpack.c.l.b16 %v549
        %v778 = vunpack.c.h.b16 %v549
        %v779 = vunpack.c.l.b16 %v550
        %v780 = vunpack.c.h.b16 %v550
        %v781 = vunpack.c.l.b16 %v551
        %v782 = vunpack.c.h.b16 %v551
        %v783 = vunpack.c.l.b16 %v552
        %v784 = vunpack.c.h.b16 %v552
        %v785 = vunpack.c.l.b16 %v553
        %v786 = vunpack.c.h.b16 %v553
        %v787 = vunpack.c.l.b16 %v554
        %v788 = vunpack.c.h.b16 %v554
        %v789 = vunpack.c.l.b16 %v555
        %v790 = vunpack.c.h.b16 %v555
        %v791 = vunpack.c.l.b16 %v556
        %v792 = vunpack.c.h.b16 %v556
        %v793 = vunpack.c.l.b16 %v557
        %v794 = vunpack.c.h.b16 %v557
        %v795 = vunpack.c.l.b16 %v558
        %v796 = vunpack.c.h.b16 %v558
        %v797 = vunpack.c.l.b16 %v559
        %v798 = vunpack.c.h.b16 %v559
        %v799 = vunpack.c.l.b16 %v560
        %v800 = vunpack.c.h.b16 %v560
        %v801 = vunpack.c.l.b16 %v561
        %v802 = vunpack.c.h.b16 %v561
        %v803 = vunpack.c.l.b16 %v562
        %v804 = vunpack.c.h.b16 %v562
        %v805 = vunpack.c.l.b16 %v563
        %v806 = vunpack.c.h.b16 %v563
        %v807 = vunpack.c.l.b16 %v564
        %v808 = vunpack.c.h.b16 %v564
        %v809 = vunpack.c.l.b16 %v565
        %v810 = vunpack.c.h.b16 %v565
        %v811 = vunpack.c.l.b16 %v566
        %v812 = vunpack.c.h.b16 %v566
        %v813 = vunpack.c.l.b16 %v567
        %v814 = vunpack.c.h.b16 %v567
        %v815 = vunpack.c.l.b16 %v568
        %v816 = vunpack.c.h.b16 %v568
        %v817 = vunpack.c.l.b16 %v569
        %v818 = vunpack.c.h.b16 %v569
        %v819 = vunpack.c.l.b16 %v570
        %v820 = vunpack.c.h.b16 %v570
        %v821 = vunpack.c.l.b16 %v571
        %v822 = vunpack.c.h.b16 %v571
        %v823 = vunpack.c.l.b16 %v572
        %v824 = vunpack.c.h.b16 %v572
        %v825 = vunpack.c.l.b16 %v573
        %v826 = vunpack.c.h.b16 %v573
        %v827 = vunpack.c.l.b16 %v574
        %v828 = vunpack.c.h.b16 %v574
        %v829 = vunpack.c.l.b16 %v575
        %v830 = vunpack.c.h.b16 %v575
        %v831 = vunpack.c.l.b16 %v576
        %v832 = vunpack.c.h.b16 %v576
        %v833 = vpack.c.b16 %v709, %v705
        %v834 = vpack.c.b16 %v710, %v706
        %v835 = vpack.c.b16 %v711, %v707
        %v836 = vpack.c.b16 %v712, %v708
        %v837 = vpack.c.b16 %v717, %v713
        %v838 = vpack.c.b16 %v718, %v714
        %v839 = vpack.c.b16 %v719, %v715
        %v840 = vpack.c.b16 %v720, %v716
        %v841 = vpack.c.b16 %v725, %v721
        %v842 = vpack.c.b16 %v726, %v722
        %v843 = vpack.c.b16 %v727, %v723
        %v844 = vpack.c.b16 %v728, %v724
        %v845 = vpack.c.b16 %v733, %v729
        %v846 = vpack.c.b16 %v734, %v730
        %v847 = vpack.c.b16 %v735, %v731
        %v848 = vpack.c.b16 %v736, %v732
        %v849 = vpack.c.b16 %v741, %v737
        %v850 = vpack.c.b16 %v742, %v738
        %v851 = vpack.c.b16 %v743, %v739
        %v852 = vpack.c.b16 %v744, %v740
        %v853 = vpack.c.b16 %v749, %v745
        %v854 = vpack.c.b16 %v750, %v746
        %v855 = vpack.c.b16 %v751, %v747
        %v856 = vpack.c.b16 %v752, %v748
        %v857 = vpack.c.b16 %v757, %v753
        %v858 = vpack.c.b16 %v758, %v754
        %v859 = vpack.c.b16 %v759, %v755
        %v860 = vpack.c.b16 %v760, %v756
        %v861 = vpack.c.b16 %v765, %v761
        %v862 = vpack.c.b16 %v766, %v762
        %v863 = vpack.c.b16 %v767, %v763
        %v864 = vpack.c.b16 %v768, %v764
        %v865 = vpack.c.b16 %v773, %v769
        %v866 = vpack.c.b16 %v774, %v770
        %v867 = vpack.c.b16 %v775, %v771
        %v868 = vpack.c.b16 %v776, %v772
        %v869 = vpack.c.b16 %v781, %v777
        %v870 = vpack.c.b16 %v782, %v778
        %v871 = vpack.c.b16 %v783, %v779
        %v872 = vpack.c.b16 %v784, %v780
        %v873 = vpack.c.b16 %v789, %v785
        %v874 = vpack.c.b16 %v790, %v786
        %v875 = vpack.c.b16 %v791, %v787
        %v876 = vpack.c.b16 %v792, %v788
        %v877 = vpack.c.b16 %v797, %v793
        %v878 = vpack.c.b16 %v798, %v794
        %v879 = vpack.c.b16 %v799, %v795
        %v880 = vpack.c.b16 %v800, %v796
        %v881 = vpack.c.b16 %v805, %v801
        %v882 = vpack.c.b16 %v806, %v802
        %v883 = vpack.c.b16 %v807, %v803
        %v884 = vpack.c.b16 %v808, %v804
        %v885 = vpack.c.b16 %v813, %v809
        %v886 = vpack.c.b16 %v814, %v810
        %v887 = vpack.c.b16 %v815, %v811
        %v888 = vpack.c.b16 %v816, %v812
        %v889 = vpack.c.b16 %v821, %v817
        %v890 = vpack.c.b16 %v822, %v818
        %v891 = vpack.c.b16 %v823, %v819
        %v892 = vpack.c.b16 %v824, %v820
        %v893 = vpack.c.b16 %v829, %v825
        %v894 = vpack.c.b16 %v830, %v826
        %v895 = vpack.c.b16 %v831, %v827
        %v896 = vpack.c.b16 %v832, %v828
        %v1025 = vunpack.c.l.b16 %v577
        %v1026 = vunpack.c.h.b16 %v577
        %v1027 = vunpack.c.l.b16 %v578
        %v1028 = vunpack.c.h.b16 %v578
        %v1029 = vunpack.c.l.b16 %v579
        %v1030 = vunpack.c.h.b16 %v579
        %v1031 = vunpack.c.l.b16 %v580
        %v1032 = vunpack.c.h.b16 %v580
        %v1033 = vunpack.c.l.b16 %v581
        %v1034 = vunpack.c.h.b16 %v581
        %v1035 = vunpack.c.l.b16 %v582
        %v1036 = vunpack.c.h.b16 %v582
        %v1037 = vunpack.c.l.b16 %v583
        %v1038 = vunpack.c.h.b16 %v583
        %v1039 = vunpack.c.l.b16 %v584
        %v1040 = vunpack.c.h.b16 %v584
        %v1041 = vunpack.c.l.b16 %v585
        %v1042 = vunpack.c.h.b16 %v585
        %v1043 = vunpack.c.l.b16 %v586
        %v1044 = vunpack.c.h.b16 %v586
        %v1045 = vunpack.c.l.b16 %v587
        %v1046 = vunpack.c.h.b16 %v587
        %v1047 = vunpack.c.l.b16 %v588
        %v1048 = vunpack.c.h.b16 %v588
        %v1049 = vunpack.c.l.b16 %v589
        %v1050 = vunpack.c.h.b16 %v589
        %v1051 = vunpack.c.l.b16 %v590
        %v1052 = vunpack.c.h.b16 %v590
        %v1053 = vunpack.c.l.b16 %v591
        %v1054 = vunpack.c.h.b16 %v591
        %v1055 = vunpack.c.l.b16 %v592
        %v1056 = vunpack.c.h.b16 %v592
        %v1057 = vunpack.c.l.b16 %v593
        %v1058 = vunpack.c.h.b16 %v593
        %v1059 = vunpack.c.l.b16 %v594
        %v1060 = vunpack.c.h.b16 %v594
        %v1061 = vunpack.c.l.b16 %v595
        %v1062 = vunpack.c.h.b16 %v595
        %v1063 = vunpack.c.l.b16 %v596
        %v1064 = vunpack.c.h.b16 %v596
        %v1065 = vunpack.c.l.b16 %v597
        %v1066 = vunpack.c.h.b16 %v597
        %v1067 = vunpack.c.l.b16 %v598
        %v1068 = vunpack.c.h.b16 %v598
        %v1069 = vunpack.c.l.b16 %v599
        %v1070 = vunpack.c.h.b16 %v599
        %v1071 = vunpack.c.l.b16 %v600
        %v1072 = vunpack.c.h.b16 %v600
        %v1073 = vunpack.c.l.b16 %v601
        %v1074 = vunpack.c.h.b16 %v601
        %v1075 = vunpack.c.l.b16 %v602
        %v1076 = vunpack.c.h.b16 %v602
        %v1077 = vunpack.c.l.b16 %v603
        %v1078 = vunpack.c.h.b16 %v603
        %v1079 = vunpack.c.l.b16 %v604
        %v1080 = vunpack.c.h.b16 %v604
        %v1081 = vunpack.c.l.b16 %v605
        %v1082 = vunpack.c.h.b16 %v605
        %v1083 = vunpack.c.l.b16 %v606
        %v1084 = vunpack.c.h.b16 %v606
        %v1085 = vunpack.c.l.b16 %v607
        %v1086 = vunpack.c.h.b16 %v607
        %v1087 = vunpack.c.l.b16 %v608
        %v1088 = vunpack.c.h.b16 %v608
        %v1089 = vunpack.c.l.b16 %v609
        %v1090 = vunpack.c.h.b16 %v609
        %v1091 = vunpack.c.l.b16 %v610
        %v1092 = vunpack.c.h.b16 %v610
        %v1093 = vunpack.c.l.b16 %v611
        %v1094 = vunpack.c.h.b16 %v611
        %v1095 = vunpack.c.l.b16 %v612
        %v1096 = vunpack.c.h.b16 %v612
        %v1097 = vunpack.c.l.b16 %v613
        %v1098 = vunpack.c.h.b16 %v613
        %v1099 = vunpack.c.l.b16 %v614
        %v1100 = vunpack.c.h.b16 %v614
        %v1101 = vunpack.c.l.b16 %v615
        %v1102 = vunpack.c.h.b16 %v615
        %v1103 = vunpack.c.l.b16 %v616
        %v1104 = vunpack.c.h.b16 %v616
        %v1105 = vunpack.c.l.b16 %v617
        %v1106 = vunpack.c.h.b16 %v617
        %v1107 = vunpack.c.l.b16 %v618
        %v1108 = vunpack.c.h.b16 %v618
        %v1109 = vunpack.c.l.b16 %v619
        %v1110 = vunpack.c.h.b16 %v619
        %v1111 = vunpack.c.l.b16 %v620
        %v1112 = vunpack.c.h.b16 %v620
        %v1113 = vunpack.c.l.b16 %v621
        %v1114 = vunpack.c.h.b16 %v621
        %v1115 = vunpack.c.l.b16 %v622
        %v1116 = vunpack.c.h.b16 %v622
        %v1117 = vunpack.c.l.b16 %v623
        %v1118 = vunpack.c.h.b16 %v623
        %v1119 = vunpack.c.l.b16 %v624
        %v1120 = vunpack.c.h.b16 %v624
        %v1121 = vunpack.c.l.b16 %v625
        %v1122 = vunpack.c.h.b16 %v625
        %v1123 = vunpack.c.l.b16 %v626
        %v1124 = vunpack.c.h.b16 %v626
        %v1125 = vunpack.c.l.b16 %v627
        %v1126 = vunpack.c.h.b16 %v627
        %v1127 = vunpack.c.l.b16 %v628
        %v1128 = vunpack.c.h.b16 %v628
        %v1129 = vunpack.c.l.b16 %v629
        %v1130 = vunpack.c.h.b16 %v629
        %v1131 = vunpack.c.l.b16 %v630
        %v1132 = vunpack.c.h.b16 %v630
        %v1133 = vunpack.c.l.b16 %v631
        %v1134 = vunpack.c.h.b16 %v631
        %v1135 = vunpack.c.l.b16 %v632
        %v1136 = vunpack.c.h.b16 %v632
        %v1137 = vunpack.c.l.b16 %v633
        %v1138 = vunpack.c.h.b16 %v633
        %v1139 = vunpack.c.l.b16 %v634
        %v1140 = vunpack.c.h.b16 %v634
        %v1141 = vunpack.c.l.b16 %v635
        %v1142 = vunpack.c.h.b16 %v635
        %v1143 = vunpack.c.l.b16 %v636
        %v1144 = vunpack.c.h.b16 %v636
        %v1145 = vunpack.c.l.b16 %v637
        %v1146 = vunpack.c.h.b16 %v637
        %v1147 = vunpack.c.l.b16 %v638
        %v1148 = vunpack.c.h.b16 %v638
        %v1149 = vunpack.c.l.b16 %v639
        %v1150 = vunpack.c.h.b16 %v639
        %v1151 = vunpack.c.l.b16 %v640
        %v1152 = vunpack.c.h.b16 %v640
        %v1153 = vpack.c.b16 %v1027, %v1025
        %v1154 = vpack.c.b16 %v1028, %v1026
        %v1155 = vpack.c.b16 %v1031, %v1029
        %v1156 = vpack.c.b16 %v1032, %v1030
        %v1157 = vpack.c.b16 %v1035, %v1033
        %v1158 = vpack.c.b16 %v1036, %v1034
        %v1159 = vpack.c.b16 %v1039, %v1037
        %v1160 = vpack.c.b16 %v1040, %v1038
        %v1161 = vpack.c.b16 %v1043, %v1041
        %v1162 = vpack.c.b16 %v1044, %v1042
        %v1163 = vpack.c.b16 %v1047, %v1045
        %v1164 = vpack.c.b16 %v1048, %v1046
        %v1165 = vpack.c.b16 %v1051, %v1049
        %v1166 = vpack.c.b16 %v1052, %v1050
        %v1167 = vpack.c.b16 %v1055, %v1053
        %v1168 = vpack.c.b16 %v1056, %v1054
        %v1169 = vpack.c.b16 %v1059, %v1057
        %v1170 = vpack.c.b16 %v1060, %v1058
        %v1171 = vpack.c.b16 %v1063, %v1061
        %v1172 = vpack.c.b16 %v1064, %v1062
        %v1173 = vpack.c.b16 %v1067, %v1065
        %v1174 = vpack.c.b16 %v1068, %v1066
        %v1175 = vpack.c.b16 %v1071, %v1069
        %v1176 = vpack.c.b16 %v1072, %v1070
        %v1177 = vpack.c.b16 %v1075, %v1073
        %v1178 = vpack.c.b16 %v1076, %v1074
        %v1179 = vpack.c.b16 %v1079, %v1077
        %v1180 = vpack.c.b16 %v1080, %v1078
        %v1181 = vpack.c.b16 %v1083, %v1081
        %v1182 = vpack.c.b16 %v1084, %v1082
        %v1183 = vpack.c.b16 %v1087, %v1085
        %v1184 = vpack.c.b16 %v1088, %v1086
        %v1185 = vpack.c.b16 %v1091, %v1089
        %v1186 = vpack.c.b16 %v1092, %v1090
        %v1187 = vpack.c.b16 %v1095, %v1093
        %v1188 = vpack.c.b16 %v1096, %v1094
        %v1189 = vpack.c.b16 %v1099, %v1097
        %v1190 = vpack.c.b16 %v1100, %v1098
        %v1191 = vpack.c.b16 %v1103, %v1101
        %v1192 = vpack.c.b16 %v1104, %v1102
        %v1193 = vpack.c.b16 %v1107, %v1105
        %v1194 = vpack.c.b16 %v1108, %v1106
        %v1195 = vpack.c.b16 %v1111, %v1109
        %v1196 = vpack.c.b16 %v1112, %v1110
        %v1197 = vpack.c.b16 %v1115, %v1113
        %v1198 = vpack.c.b16 %v1116, %v1114
        %v1199 = vpack.c.b16 %v1119, %v1117
        %v1200 = vpack.c.b16 %v1120, %v1118
        %v1201 = vpack.c.b16 %v1123, %v1121
        %v1202 = vpack.c.b16 %v1124, %v1122
        %v1203 = vpack.c.b16 %v1127, %v1125
        %v1204 = vpack.c.b16 %v1128, %v1126
        %v1205 = vpack.c.b16 %v1131, %v1129
        %v1206 = vpack.c.b16 %v1132, %v1130
        %v1207 = vpack.c.b16 %v1135, %v1133
        %v1208 = vpack.c.b16 %v1136, %v1134
        %v1209 = vpack.c.b16 %v1139, %v1137
        %v1210 = vpack.c.b16 %v1140, %v1138
        %v1211 = vpack.c.b16 %v1143, %v1141
        %v1212 = vpack.c.b16 %v1144, %v1142
        %v1213 = vpack.c.b16 %v1147, %v1145
        %v1214 = vpack.c.b16 %v1148, %v1146
        %v1215 = vpack.c.b16 %v1151, %v1149
        %v1216 = vpack.c.b16 %v1152, %v1150
        %1281 = vmatprep.subr.bf16.mxu0 %v1154
        %1282 = vmatpush1.bf16.msra.mxu0 %v1153
        %1283 = vmatprep.subr.bf16.mxu0 %v1156
        %1284 = vmatpush1.bf16.msra.mxu0 %v1155
        %1285 = vmatprep.subr.bf16.mxu0 %v1158
        %1286 = vmatpush1.bf16.msra.mxu0 %v1157
        %1287 = vmatprep.subr.bf16.mxu0 %v1160
        %1288 = vmatpush1.bf16.msra.mxu0 %v1159
        %1289 = vmatprep.subr.bf16.mxu0 %v1162
        %1290 = vmatpush1.bf16.msra.mxu0 %v1161
        %1291 = vmatprep.subr.bf16.mxu0 %v1164
        %1292 = vmatpush1.bf16.msra.mxu0 %v1163
        %1293 = vmatprep.subr.bf16.mxu0 %v1166
        %1294 = vmatpush1.bf16.msra.mxu0 %v1165
        %1295 = vmatprep.subr.bf16.mxu0 %v1168
        %1296 = vmatpush1.bf16.msra.mxu0 %v1167
        %1297 = vmatprep.subr.bf16.mxu0 %v1170
        %1298 = vmatpush1.bf16.msra.mxu0 %v1169
        %1299 = vmatprep.subr.bf16.mxu0 %v1172
        %1300 = vmatpush1.bf16.msra.mxu0 %v1171
        %1301 = vmatprep.subr.bf16.mxu0 %v1174
        %1302 = vmatpush1.bf16.msra.mxu0 %v1173
        %1303 = vmatprep.subr.bf16.mxu0 %v1176
        %1304 = vmatpush1.bf16.msra.mxu0 %v1175
        %1305 = vmatprep.subr.bf16.mxu0 %v1178
        %1306 = vmatpush1.bf16.msra.mxu0 %v1177
        %1307 = vmatprep.subr.bf16.mxu0 %v1180
        %1308 = vmatpush1.bf16.msra.mxu0 %v1179
        %1309 = vmatprep.subr.bf16.mxu0 %v1182
        %1310 = vmatpush1.bf16.msra.mxu0 %v1181
        %1311 = vmatprep.subr.bf16.mxu0 %v1184
        %1312 = vmatpush1.bf16.msra.mxu0 %v1183
        %1313 = vmatprep.mubr.bf16.mxu0 %v834
        %1314 = vmatmul.mubr.bf16.gmra.mrb[0].mxu0 %v833
        %v1315 = vpop.f32.mrb[0].mxu0
        %v1316 = vadd.f32 0.0, %v1315
        %v1317 = vpop.f32.mrb[0].mxu0
        %v1318 = vadd.f32 0.0, %v1317
        %v1319 = vpop.f32.mrb[0].mxu0
        %v1320 = vadd.f32 0.0, %v1319
        %v1321 = vpop.f32.mrb[0].mxu0
        %v1322 = vadd.f32 0.0, %v1321
        %1323 = vmatprep.mubr.bf16.mxu0 %v838
        %1324 = vmatmul.mubr.bf16.gmra.mrb[0].mxu0 %v837
        %v1325 = vpop.f32.mrb[0].mxu0
        %v1326 = vadd.f32 0.0, %v1325
        %v1327 = vpop.f32.mrb[0].mxu0
        %v1328 = vadd.f32 0.0, %v1327
        %v1329 = vpop.f32.mrb[0].mxu0
        %v1330 = vadd.f32 0.0, %v1329
        %v1331 = vpop.f32.mrb[0].mxu0
        %v1332 = vadd.f32 0.0, %v1331
        %1333 = vmatprep.mubr.bf16.mxu0 %v842
        %1334 = vmatmul.mubr.bf16.gmra.mrb[0].mxu0 %v841
        %v1335 = vpop.f32.mrb[0].mxu0
        %v1336 = vadd.f32 0.0, %v1335
        %v1337 = vpop.f32.mrb[0].mxu0
        %v1338 = vadd.f32 0.0, %v1337
        %v1339 = vpop.f32.mrb[0].mxu0
        %v1340 = vadd.f32 0.0, %v1339
        %v1341 = vpop.f32.mrb[0].mxu0
        %v1342 = vadd.f32 0.0, %v1341
        %1343 = vmatprep.mubr.bf16.mxu0 %v846
        %1344 = vmatmul.mubr.bf16.gmra.mrb[0].mxu0 %v845
        %v1345 = vpop.f32.mrb[0].mxu0
        %v1346 = vadd.f32 0.0, %v1345
        %v1347 = vpop.f32.mrb[0].mxu0
        %v1348 = vadd.f32 0.0, %v1347
        %v1349 = vpop.f32.mrb[0].mxu0
        %v1350 = vadd.f32 0.0, %v1349
        %v1351 = vpop.f32.mrb[0].mxu0
        %v1352 = vadd.f32 0.0, %v1351
        %1353 = vmatprep.mubr.bf16.mxu0 %v850
        %1354 = vmatmul.mubr.bf16.gmra.mrb[0].mxu0 %v849
        %v1355 = vpop.f32.mrb[0].mxu0
        %v1356 = vadd.f32 0.0, %v1355
        %v1357 = vpop.f32.mrb[0].mxu0
        %v1358 = vadd.f32 0.0, %v1357
        %v1359 = vpop.f32.mrb[0].mxu0
        %v1360 = vadd.f32 0.0, %v1359
        %v1361 = vpop.f32.mrb[0].mxu0
        %v1362 = vadd.f32 0.0, %v1361
        %1363 = vmatprep.mubr.bf16.mxu0 %v854
        %1364 = vmatmul.mubr.bf16.gmra.mrb[0].mxu0 %v853
        %v1365 = vpop.f32.mrb[0].mxu0
        %v1366 = vadd.f32 0.0, %v1365
        %v1367 = vpop.f32.mrb[0].mxu0
        %v1368 = vadd.f32 0.0, %v1367
        %v1369 = vpop.f32.mrb[0].mxu0
        %v1370 = vadd.f32 0.0, %v1369
        %v1371 = vpop.f32.mrb[0].mxu0
        %v1372 = vadd.f32 0.0, %v1371
        %1373 = vmatprep.mubr.bf16.mxu0 %v858
        %1374 = vmatmul.mubr.bf16.gmra.mrb[0].mxu0 %v857
        %v1375 = vpop.f32.mrb[0].mxu0
        %v1376 = vadd.f32 0.0, %v1375
        %v1377 = vpop.f32.mrb[0].mxu0
        %v1378 = vadd.f32 0.0, %v1377
        %v1379 = vpop.f32.mrb[0].mxu0
        %v1380 = vadd.f32 0.0, %v1379
        %v1381 = vpop.f32.mrb[0].mxu0
        %v1382 = vadd.f32 0.0, %v1381
        %1383 = vmatprep.mubr.bf16.mxu0 %v862
        %1384 = vmatmul.mubr.bf16.gmra.mrb[0].mxu0 %v861
        %v1385 = vpop.f32.mrb[0].mxu0
        %v1386 = vadd.f32 0.0, %v1385
        %v1387 = vpop.f32.mrb[0].mxu0
        %v1388 = vadd.f32 0.0, %v1387
        %v1389 = vpop.f32.mrb[0].mxu0
        %v1390 = vadd.f32 0.0, %v1389
        %v1391 = vpop.f32.mrb[0].mxu0
        %v1392 = vadd.f32 0.0, %v1391
        %1393 = vmatprep.mubr.bf16.mxu0 %v866
        %1394 = vmatmul.mubr.bf16.gmra.mrb[0].mxu0 %v865
        %v1395 = vpop.f32.mrb[0].mxu0
        %v1396 = vadd.f32 0.0, %v1395
        %v1397 = vpop.f32.mrb[0].mxu0
        %v1398 = vadd.f32 0.0, %v1397
        %v1399 = vpop.f32.mrb[0].mxu0
        %v1400 = vadd.f32 0.0, %v1399
        %v1401 = vpop.f32.mrb[0].mxu0
        %v1402 = vadd.f32 0.0, %v1401
        %1403 = vmatprep.mubr.bf16.mxu0 %v870
        %1404 = vmatmul.mubr.bf16.gmra.mrb[0].mxu0 %v869
        %v1405 = vpop.f32.mrb[0].mxu0
        %v1406 = vadd.f32 0.0, %v1405
        %v1407 = vpop.f32.mrb[0].mxu0
        %v1408 = vadd.f32 0.0, %v1407
        %v1409 = vpop.f32.mrb[0].mxu0
        %v1410 = vadd.f32 0.0, %v1409
        %v1411 = vpop.f32.mrb[0].mxu0
        %v1412 = vadd.f32 0.0, %v1411
        %1413 = vmatprep.mubr.bf16.mxu0 %v874
        %1414 = vmatmul.mubr.bf16.gmra.mrb[0].mxu0 %v873
        %v1415 = vpop.f32.mrb[0].mxu0
        %v1416 = vadd.f32 0.0, %v1415
        %v1417 = vpop.f32.mrb[0].mxu0
        %v1418 = vadd.f32 0.0, %v1417
        %v1419 = vpop.f32.mrb[0].mxu0
        %v1420 = vadd.f32 0.0, %v1419
        %v1421 = vpop.f32.mrb[0].mxu0
        %v1422 = vadd.f32 0.0, %v1421
        %1423 = vmatprep.mubr.bf16.mxu0 %v878
        %1424 = vmatmul.mubr.bf16.gmra.mrb[0].mxu0 %v877
        %v1425 = vpop.f32.mrb[0].mxu0
        %v1426 = vadd.f32 0.0, %v1425
        %v1427 = vpop.f32.mrb[0].mxu0
        %v1428 = vadd.f32 0.0, %v1427
        %v1429 = vpop.f32.mrb[0].mxu0
        %v1430 = vadd.f32 0.0, %v1429
        %v1431 = vpop.f32.mrb[0].mxu0
        %v1432 = vadd.f32 0.0, %v1431
        %1433 = vmatprep.mubr.bf16.mxu0 %v882
        %1434 = vmatmul.mubr.bf16.gmra.mrb[0].mxu0 %v881
        %v1435 = vpop.f32.mrb[0].mxu0
        %v1436 = vadd.f32 0.0, %v1435
        %v1437 = vpop.f32.mrb[0].mxu0
        %v1438 = vadd.f32 0.0, %v1437
        %v1439 = vpop.f32.mrb[0].mxu0
        %v1440 = vadd.f32 0.0, %v1439
        %v1441 = vpop.f32.mrb[0].mxu0
        %v1442 = vadd.f32 0.0, %v1441
        %1443 = vmatprep.mubr.bf16.mxu0 %v886
        %1444 = vmatmul.mubr.bf16.gmra.mrb[0].mxu0 %v885
        %v1445 = vpop.f32.mrb[0].mxu0
        %v1446 = vadd.f32 0.0, %v1445
        %v1447 = vpop.f32.mrb[0].mxu0
        %v1448 = vadd.f32 0.0, %v1447
        %v1449 = vpop.f32.mrb[0].mxu0
        %v1450 = vadd.f32 0.0, %v1449
        %v1451 = vpop.f32.mrb[0].mxu0
        %v1452 = vadd.f32 0.0, %v1451
        %1453 = vmatprep.mubr.bf16.mxu0 %v890
        %1454 = vmatmul.mubr.bf16.gmra.mrb[0].mxu0 %v889
        %v1455 = vpop.f32.mrb[0].mxu0
        %v1456 = vadd.f32 0.0, %v1455
        %v1457 = vpop.f32.mrb[0].mxu0
        %v1458 = vadd.f32 0.0, %v1457
        %v1459 = vpop.f32.mrb[0].mxu0
        %v1460 = vadd.f32 0.0, %v1459
        %v1461 = vpop.f32.mrb[0].mxu0
        %v1462 = vadd.f32 0.0, %v1461
        %1463 = vmatprep.mubr.bf16.mxu0 %v894
        %1464 = vmatmul.mubr.bf16.gmra.mrb[0].mxu0 %v893
        %v1465 = vpop.f32.mrb[0].mxu0
        %v1466 = vadd.f32 0.0, %v1465
        %v1467 = vpop.f32.mrb[0].mxu0
        %v1468 = vadd.f32 0.0, %v1467
        %v1469 = vpop.f32.mrb[0].mxu0
        %v1470 = vadd.f32 0.0, %v1469
        %v1471 = vpop.f32.mrb[0].mxu0
        %v1472 = vadd.f32 0.0, %v1471
        %1473 = vdwg.mxu0
        %1474 = vmatprep.subr.bf16.mxu0 %v1186
        %1475 = vmatpush1.bf16.msra.mxu0 %v1185
        %1476 = vmatprep.subr.bf16.mxu0 %v1188
        %1477 = vmatpush1.bf16.msra.mxu0 %v1187
        %1478 = vmatprep.subr.bf16.mxu0 %v1190
        %1479 = vmatpush1.bf16.msra.mxu0 %v1189
        %1480 = vmatprep.subr.bf16.mxu0 %v1192
        %1481 = vmatpush1.bf16.msra.mxu0 %v1191
        %1482 = vmatprep.subr.bf16.mxu0 %v1194
        %1483 = vmatpush1.bf16.msra.mxu0 %v1193
        %1484 = vmatprep.subr.bf16.mxu0 %v1196
        %1485 = vmatpush1.bf16.msra.mxu0 %v1195
        %1486 = vmatprep.subr.bf16.mxu0 %v1198
        %1487 = vmatpush1.bf16.msra.mxu0 %v1197
        %1488 = vmatprep.subr.bf16.mxu0 %v1200
        %1489 = vmatpush1.bf16.msra.mxu0 %v1199
        %1490 = vmatprep.subr.bf16.mxu0 %v1202
        %1491 = vmatpush1.bf16.msra.mxu0 %v1201
        %1492 = vmatprep.subr.bf16.mxu0 %v1204
        %1493 = vmatpush1.bf16.msra.mxu0 %v1203
        %1494 = vmatprep.subr.bf16.mxu0 %v1206
        %1495 = vmatpush1.bf16.msra.mxu0 %v1205
        %1496 = vmatprep.subr.bf16.mxu0 %v1208
        %1497 = vmatpush1.bf16.msra.mxu0 %v1207
        %1498 = vmatprep.subr.bf16.mxu0 %v1210
        %1499 = vmatpush1.bf16.msra.mxu0 %v1209
        %1500 = vmatprep.subr.bf16.mxu0 %v1212
        %1501 = vmatpush1.bf16.msra.mxu0 %v1211
        %1502 = vmatprep.subr.bf16.mxu0 %v1214
        %1503 = vmatpush1.bf16.msra.mxu0 %v1213
        %1504 = vmatprep.subr.bf16.mxu0 %v1216
        %1505 = vmatpush1.bf16.msra.mxu0 %v1215
        %1506 = vmatprep.mubr.bf16.mxu0 %v836
        %1507 = vmatmul.mubr.bf16.gmra.mrb[0].mxu0 %v835
        %v1508 = vpop.f32.mrb[0].mxu0
        %v1509 = vadd.f32 %v1316, %v1508
        %v1510 = vpop.f32.mrb[0].mxu0
        %v1511 = vadd.f32 %v1318, %v1510
        %v1512 = vpop.f32.mrb[0].mxu0
        %v1513 = vadd.f32 %v1320, %v1512
        %v1514 = vpop.f32.mrb[0].mxu0
        %v1515 = vadd.f32 %v1322, %v1514
        %1516 = vmatprep.mubr.bf16.mxu0 %v840
        %1517 = vmatmul.mubr.bf16.gmra.mrb[0].mxu0 %v839
        %v1518 = vpop.f32.mrb[0].mxu0
        %v1519 = vadd.f32 %v1326, %v1518
        %v1520 = vpop.f32.mrb[0].mxu0
        %v1521 = vadd.f32 %v1328, %v1520
        %v1522 = vpop.f32.mrb[0].mxu0
        %v1523 = vadd.f32 %v1330, %v1522
        %v1524 = vpop.f32.mrb[0].mxu0
        %v1525 = vadd.f32 %v1332, %v1524
        %1526 = vmatprep.mubr.bf16.mxu0 %v844
        %1527 = vmatmul.mubr.bf16.gmra.mrb[0].mxu0 %v843
        %v1528 = vpop.f32.mrb[0].mxu0
        %v1529 = vadd.f32 %v1336, %v1528
        %v1530 = vpop.f32.mrb[0].mxu0
        %v1531 = vadd.f32 %v1338, %v1530
        %v1532 = vpop.f32.mrb[0].mxu0
        %v1533 = vadd.f32 %v1340, %v1532
        %v1534 = vpop.f32.mrb[0].mxu0
        %v1535 = vadd.f32 %v1342, %v1534
        %1536 = vmatprep.mubr.bf16.mxu0 %v848
        %1537 = vmatmul.mubr.bf16.gmra.mrb[0].mxu0 %v847
        %v1538 = vpop.f32.mrb[0].mxu0
        %v1539 = vadd.f32 %v1346, %v1538
        %v1540 = vpop.f32.mrb[0].mxu0
        %v1541 = vadd.f32 %v1348, %v1540
        %v1542 = vpop.f32.mrb[0].mxu0
        %v1543 = vadd.f32 %v1350, %v1542
        %v1544 = vpop.f32.mrb[0].mxu0
        %v1545 = vadd.f32 %v1352, %v1544
        %1546 = vmatprep.mubr.bf16.mxu0 %v852
        %1547 = vmatmul.mubr.bf16.gmra.mrb[0].mxu0 %v851
        %v1548 = vpop.f32.mrb[0].mxu0
        %v1549 = vadd.f32 %v1356, %v1548
        %v1550 = vpop.f32.mrb[0].mxu0
        %v1551 = vadd.f32 %v1358, %v1550
        %v1552 = vpop.f32.mrb[0].mxu0
        %v1553 = vadd.f32 %v1360, %v1552
        %v1554 = vpop.f32.mrb[0].mxu0
        %v1555 = vadd.f32 %v1362, %v1554
        %1556 = vmatprep.mubr.bf16.mxu0 %v856
        %1557 = vmatmul.mubr.bf16.gmra.mrb[0].mxu0 %v855
        %v1558 = vpop.f32.mrb[0].mxu0
        %v1559 = vadd.f32 %v1366, %v1558
        %v1560 = vpop.f32.mrb[0].mxu0
        %v1561 = vadd.f32 %v1368, %v1560
        %v1562 = vpop.f32.mrb[0].mxu0
        %v1563 = vadd.f32 %v1370, %v1562
        %v1564 = vpop.f32.mrb[0].mxu0
        %v1565 = vadd.f32 %v1372, %v1564
        %1566 = vmatprep.mubr.bf16.mxu0 %v860
        %1567 = vmatmul.mubr.bf16.gmra.mrb[0].mxu0 %v859
        %v1568 = vpop.f32.mrb[0].mxu0
        %v1569 = vadd.f32 %v1376, %v1568
        %v1570 = vpop.f32.mrb[0].mxu0
        %v1571 = vadd.f32 %v1378, %v1570
        %v1572 = vpop.f32.mrb[0].mxu0
        %v1573 = vadd.f32 %v1380, %v1572
        %v1574 = vpop.f32.mrb[0].mxu0
        %v1575 = vadd.f32 %v1382, %v1574
        %1576 = vmatprep.mubr.bf16.mxu0 %v864
        %1577 = vmatmul.mubr.bf16.gmra.mrb[0].mxu0 %v863
        %v1578 = vpop.f32.mrb[0].mxu0
        %v1579 = vadd.f32 %v1386, %v1578
        %v1580 = vpop.f32.mrb[0].mxu0
        %v1581 = vadd.f32 %v1388, %v1580
        %v1582 = vpop.f32.mrb[0].mxu0
        %v1583 = vadd.f32 %v1390, %v1582
        %v1584 = vpop.f32.mrb[0].mxu0
        %v1585 = vadd.f32 %v1392, %v1584
        %1586 = vmatprep.mubr.bf16.mxu0 %v868
        %1587 = vmatmul.mubr.bf16.gmra.mrb[0].mxu0 %v867
        %v1588 = vpop.f32.mrb[0].mxu0
        %v1589 = vadd.f32 %v1396, %v1588
        %v1590 = vpop.f32.mrb[0].mxu0
        %v1591 = vadd.f32 %v1398, %v1590
        %v1592 = vpop.f32.mrb[0].mxu0
        %v1593 = vadd.f32 %v1400, %v1592
        %v1594 = vpop.f32.mrb[0].mxu0
        %v1595 = vadd.f32 %v1402, %v1594
        %1596 = vmatprep.mubr.bf16.mxu0 %v872
        %1597 = vmatmul.mubr.bf16.gmra.mrb[0].mxu0 %v871
        %v1598 = vpop.f32.mrb[0].mxu0
        %v1599 = vadd.f32 %v1406, %v1598
        %v1600 = vpop.f32.mrb[0].mxu0
        %v1601 = vadd.f32 %v1408, %v1600
        %v1602 = vpop.f32.mrb[0].mxu0
        %v1603 = vadd.f32 %v1410, %v1602
        %v1604 = vpop.f32.mrb[0].mxu0
        %v1605 = vadd.f32 %v1412, %v1604
        %1606 = vmatprep.mubr.bf16.mxu0 %v876
        %1607 = vmatmul.mubr.bf16.gmra.mrb[0].mxu0 %v875
        %v1608 = vpop.f32.mrb[0].mxu0
        %v1609 = vadd.f32 %v1416, %v1608
        %v1610 = vpop.f32.mrb[0].mxu0
        %v1611 = vadd.f32 %v1418, %v1610
        %v1612 = vpop.f32.mrb[0].mxu0
        %v1613 = vadd.f32 %v1420, %v1612
        %v1614 = vpop.f32.mrb[0].mxu0
        %v1615 = vadd.f32 %v1422, %v1614
        %1616 = vmatprep.mubr.bf16.mxu0 %v880
        %1617 = vmatmul.mubr.bf16.gmra.mrb[0].mxu0 %v879
        %v1618 = vpop.f32.mrb[0].mxu0
        %v1619 = vadd.f32 %v1426, %v1618
        %v1620 = vpop.f32.mrb[0].mxu0
        %v1621 = vadd.f32 %v1428, %v1620
        %v1622 = vpop.f32.mrb[0].mxu0
        %v1623 = vadd.f32 %v1430, %v1622
        %v1624 = vpop.f32.mrb[0].mxu0
        %v1625 = vadd.f32 %v1432, %v1624
        %1626 = vmatprep.mubr.bf16.mxu0 %v884
        %1627 = vmatmul.mubr.bf16.gmra.mrb[0].mxu0 %v883
        %v1628 = vpop.f32.mrb[0].mxu0
        %v1629 = vadd.f32 %v1436, %v1628
        %v1630 = vpop.f32.mrb[0].mxu0
        %v1631 = vadd.f32 %v1438, %v1630
        %v1632 = vpop.f32.mrb[0].mxu0
        %v1633 = vadd.f32 %v1440, %v1632
        %v1634 = vpop.f32.mrb[0].mxu0
        %v1635 = vadd.f32 %v1442, %v1634
        %1636 = vmatprep.mubr.bf16.mxu0 %v888
        %1637 = vmatmul.mubr.bf16.gmra.mrb[0].mxu0 %v887
        %v1638 = vpop.f32.mrb[0].mxu0
        %v1639 = vadd.f32 %v1446, %v1638
        %v1640 = vpop.f32.mrb[0].mxu0
        %v1641 = vadd.f32 %v1448, %v1640
        %v1642 = vpop.f32.mrb[0].mxu0
        %v1643 = vadd.f32 %v1450, %v1642
        %v1644 = vpop.f32.mrb[0].mxu0
        %v1645 = vadd.f32 %v1452, %v1644
        %1646 = vmatprep.mubr.bf16.mxu0 %v892
        %1647 = vmatmul.mubr.bf16.gmra.mrb[0].mxu0 %v891
        %v1648 = vpop.f32.mrb[0].mxu0
        %v1649 = vadd.f32 %v1456, %v1648
        %v1650 = vpop.f32.mrb[0].mxu0
        %v1651 = vadd.f32 %v1458, %v1650
        %v1652 = vpop.f32.mrb[0].mxu0
        %v1653 = vadd.f32 %v1460, %v1652
        %v1654 = vpop.f32.mrb[0].mxu0
        %v1655 = vadd.f32 %v1462, %v1654
        %1656 = vmatprep.mubr.bf16.mxu0 %v896
        %1657 = vmatmul.mubr.bf16.gmra.mrb[0].mxu0 %v895
        %v1658 = vpop.f32.mrb[0].mxu0
        %v1659 = vadd.f32 %v1466, %v1658
        %v1660 = vpop.f32.mrb[0].mxu0
        %v1661 = vadd.f32 %v1468, %v1660
        %v1662 = vpop.f32.mrb[0].mxu0
        %v1663 = vadd.f32 %v1470, %v1662
        %v1664 = vpop.f32.mrb[0].mxu0
        %v1665 = vadd.f32 %v1472, %v1664
        %1666 = vdwg.mxu0
        %v1667 = vadd.f32 %v449, %v1509
        %v1668 = vadd.f32 %v450, %v1511
        %v1669 = vadd.f32 %v451, %v1513
        %v1670 = vadd.f32 %v452, %v1515
        %v1671 = vadd.f32 %v453, %v1519
        %v1672 = vadd.f32 %v454, %v1521
        %v1673 = vadd.f32 %v455, %v1523
        %v1674 = vadd.f32 %v456, %v1525
        %v1675 = vadd.f32 %v457, %v1529
        %v1676 = vadd.f32 %v458, %v1531
        %v1677 = vadd.f32 %v459, %v1533
        %v1678 = vadd.f32 %v460, %v1535
        %v1679 = vadd.f32 %v461, %v1539
        %v1680 = vadd.f32 %v462, %v1541
        %v1681 = vadd.f32 %v463, %v1543
        %v1682 = vadd.f32 %v464, %v1545
        %v1683 = vadd.f32 %v465, %v1549
        %v1684 = vadd.f32 %v466, %v1551
        %v1685 = vadd.f32 %v467, %v1553
        %v1686 = vadd.f32 %v468, %v1555
        %v1687 = vadd.f32 %v469, %v1559
        %v1688 = vadd.f32 %v470, %v1561
        %v1689 = vadd.f32 %v471, %v1563
        %v1690 = vadd.f32 %v472, %v1565
        %v1691 = vadd.f32 %v473, %v1569
        %v1692 = vadd.f32 %v474, %v1571
        %v1693 = vadd.f32 %v475, %v1573
        %v1694 = vadd.f32 %v476, %v1575
        %v1695 = vadd.f32 %v477, %v1579
        %v1696 = vadd.f32 %v478, %v1581
        %v1697 = vadd.f32 %v479, %v1583
        %v1698 = vadd.f32 %v480, %v1585
        %v1699 = vadd.f32 %v481, %v1589
        %v1700 = vadd.f32 %v482, %v1591
        %v1701 = vadd.f32 %v483, %v1593
        %v1702 = vadd.f32 %v484, %v1595
        %v1703 = vadd.f32 %v485, %v1599
        %v1704 = vadd.f32 %v486, %v1601
        %v1705 = vadd.f32 %v487, %v1603
        %v1706 = vadd.f32 %v488, %v1605
        %v1707 = vadd.f32 %v489, %v1609
        %v1708 = vadd.f32 %v490, %v1611
        %v1709 = vadd.f32 %v491, %v1613
        %v1710 = vadd.f32 %v492, %v1615
        %v1711 = vadd.f32 %v493, %v1619
        %v1712 = vadd.f32 %v494, %v1621
        %v1713 = vadd.f32 %v495, %v1623
        %v1714 = vadd.f32 %v496, %v1625
        %v1715 = vadd.f32 %v497, %v1629
        %v1716 = vadd.f32 %v498, %v1631
        %v1717 = vadd.f32 %v499, %v1633
        %v1718 = vadd.f32 %v500, %v1635
        %v1719 = vadd.f32 %v501, %v1639
        %v1720 = vadd.f32 %v502, %v1641
        %v1721 = vadd.f32 %v503, %v1643
        %v1722 = vadd.f32 %v504, %v1645
        %v1723 = vadd.f32 %v505, %v1649
        %v1724 = vadd.f32 %v506, %v1651
        %v1725 = vadd.f32 %v507, %v1653
        %v1726 = vadd.f32 %v508, %v1655
        %v1727 = vadd.f32 %v509, %v1659
        %v1728 = vadd.f32 %v510, %v1661
        %v1729 = vadd.f32 %v511, %v1663
        %v1730 = vadd.f32 %v512, %v1665
        %1731 = vst [vmem:[#allocation2] sm:$0xff] %v1667
        %1732 = vst [vmem:[#allocation2 + $0x8] sm:$0xff] %v1668
        %1733 = vst [vmem:[#allocation2 + $0x10] sm:$0xff] %v1669
        %1734 = vst [vmem:[#allocation2 + $0x18] sm:$0xff] %v1670
        %1735 = vst [vmem:[#allocation2 + $0x20] sm:$0xff] %v1671
        %1736 = vst [vmem:[#allocation2 + $0x28] sm:$0xff] %v1672
        %1737 = vst [vmem:[#allocation2 + $0x30] sm:$0xff] %v1673
        %1738 = vst [vmem:[#allocation2 + $0x38] sm:$0xff] %v1674
        %1739 = vst [vmem:[#allocation2 + $0x40] sm:$0xff] %v1675
        %1740 = vst [vmem:[#allocation2 + $0x48] sm:$0xff] %v1676
        %1741 = vst [vmem:[#allocation2 + $0x50] sm:$0xff] %v1677
        %1742 = vst [vmem:[#allocation2 + $0x58] sm:$0xff] %v1678
        %1743 = vst [vmem:[#allocation2 + $0x60] sm:$0xff] %v1679
        %1744 = vst [vmem:[#allocation2 + $0x68] sm:$0xff] %v1680
        %1745 = vst [vmem:[#allocation2 + $0x70] sm:$0xff] %v1681
        %1746 = vst [vmem:[#allocation2 + $0x78] sm:$0xff] %v1682
        %1747 = vst [vmem:[#allocation2 + $0x80] sm:$0xff] %v1683
        %1748 = vst [vmem:[#allocation2 + $0x88] sm:$0xff] %v1684
        %1749 = vst [vmem:[#allocation2 + $0x90] sm:$0xff] %v1685
        %1750 = vst [vmem:[#allocation2 + $0x98] sm:$0xff] %v1686
        %1751 = vst [vmem:[#allocation2 + $0xa0] sm:$0xff] %v1687
        %1752 = vst [vmem:[#allocation2 + $0xa8] sm:$0xff] %v1688
        %1753 = vst [vmem:[#allocation2 + $0xb0] sm:$0xff] %v1689
        %1754 = vst [vmem:[#allocation2 + $0xb8] sm:$0xff] %v1690
        %1755 = vst [vmem:[#allocation2 + $0xc0] sm:$0xff] %v1691
        %1756 = vst [vmem:[#allocation2 + $0xc8] sm:$0xff] %v1692
        %1757 = vst [vmem:[#allocation2 + $0xd0] sm:$0xff] %v1693
        %1758 = vst [vmem:[#allocation2 + $0xd8] sm:$0xff] %v1694
        %1759 = vst [vmem:[#allocation2 + $0xe0] sm:$0xff] %v1695
        %1760 = vst [vmem:[#allocation2 + $0xe8] sm:$0xff] %v1696
        %1761 = vst [vmem:[#allocation2 + $0xf0] sm:$0xff] %v1697
        %1762 = vst [vmem:[#allocation2 + $0xf8] sm:$0xff] %v1698
        %1763 = vst [vmem:[#allocation2 + $0x100] sm:$0xff] %v1699
        %1764 = vst [vmem:[#allocation2 + $0x108] sm:$0xff] %v1700
        %1765 = vst [vmem:[#allocation2 + $0x110] sm:$0xff] %v1701
        %1766 = vst [vmem:[#allocation2 + $0x118] sm:$0xff] %v1702
        %1767 = vst [vmem:[#allocation2 + $0x120] sm:$0xff] %v1703
        %1768 = vst [vmem:[#allocation2 + $0x128] sm:$0xff] %v1704
        %1769 = vst [vmem:[#allocation2 + $0x130] sm:$0xff] %v1705
        %1770 = vst [vmem:[#allocation2 + $0x138] sm:$0xff] %v1706
        %1771 = vst [vmem:[#allocation2 + $0x140] sm:$0xff] %v1707
        %1772 = vst [vmem:[#allocation2 + $0x148] sm:$0xff] %v1708
        %1773 = vst [vmem:[#allocation2 + $0x150] sm:$0xff] %v1709
        %1774 = vst [vmem:[#allocation2 + $0x158] sm:$0xff] %v1710
        %1775 = vst [vmem:[#allocation2 + $0x160] sm:$0xff] %v1711
        %1776 = vst [vmem:[#allocation2 + $0x168] sm:$0xff] %v1712
        %1777 = vst [vmem:[#allocation2 + $0x170] sm:$0xff] %v1713
        %1778 = vst [vmem:[#allocation2 + $0x178] sm:$0xff] %v1714
        %1779 = vst [vmem:[#allocation2 + $0x180] sm:$0xff] %v1715
        %1780 = vst [vmem:[#allocation2 + $0x188] sm:$0xff] %v1716
        %1781 = vst [vmem:[#allocation2 + $0x190] sm:$0xff] %v1717
        %1782 = vst [vmem:[#allocation2 + $0x198] sm:$0xff] %v1718
        %1783 = vst [vmem:[#allocation2 + $0x1a0] sm:$0xff] %v1719
        %1784 = vst [vmem:[#allocation2 + $0x1a8] sm:$0xff] %v1720
        %1785 = vst [vmem:[#allocation2 + $0x1b0] sm:$0xff] %v1721
        %1786 = vst [vmem:[#allocation2 + $0x1b8] sm:$0xff] %v1722
        %1787 = vst [vmem:[#allocation2 + $0x1c0] sm:$0xff] %v1723
        %1788 = vst [vmem:[#allocation2 + $0x1c8] sm:$0xff] %v1724
        %1789 = vst [vmem:[#allocation2 + $0x1d0] sm:$0xff] %v1725
        %1790 = vst [vmem:[#allocation2 + $0x1d8] sm:$0xff] %v1726
        %1791 = vst [vmem:[#allocation2 + $0x1e0] sm:$0xff] %v1727
        %1792 = vst [vmem:[#allocation2 + $0x1e8] sm:$0xff] %v1728
        %1793 = vst [vmem:[#allocation2 + $0x1f0] sm:$0xff] %v1729
        %1794 = vst [vmem:[#allocation2 + $0x1f8] sm:$0xff] %v1730
        %p1795 = scmp.eq.s32.totalorder %s18, 1
        // Predicated region
        $region64: #{pool_forward.3} parent=54 // pred_check
          %p1796 = pneg %p1795
        $region65: #{pool_forward.3} parent=54 // pred_check_branch
          %1798 = sbr.rel (%p1796) target = $region67
        $region66: #{pool_forward.3} parent=54 // pred_region
          %v1799 = vld [vmem:[#allocation2] sm:$0xff]
          %v1800 = vld [vmem:[#allocation2 + $0x8] sm:$0xff]
          %v1801 = vld [vmem:[#allocation2 + $0x10] sm:$0xff]
          %v1802 = vld [vmem:[#allocation2 + $0x18] sm:$0xff]
          %v1803 = vld [vmem:[#allocation2 + $0x20] sm:$0xff]
          %v1804 = vld [vmem:[#allocation2 + $0x28] sm:$0xff]
          %v1805 = vld [vmem:[#allocation2 + $0x30] sm:$0xff]
          %v1806 = vld [vmem:[#allocation2 + $0x38] sm:$0xff]
          %v1807 = vld [vmem:[#allocation2 + $0x40] sm:$0xff]
          %v1808 = vld [vmem:[#allocation2 + $0x48] sm:$0xff]
          %v1809 = vld [vmem:[#allocation2 + $0x50] sm:$0xff]
          %v1810 = vld [vmem:[#allocation2 + $0x58] sm:$0xff]
          %v1811 = vld [vmem:[#allocation2 + $0x60] sm:$0xff]
          %v1812 = vld [vmem:[#allocation2 + $0x68] sm:$0xff]
          %v1813 = vld [vmem:[#allocation2 + $0x70] sm:$0xff]
          %v1814 = vld [vmem:[#allocation2 + $0x78] sm:$0xff]
          %v1815 = vld [vmem:[#allocation2 + $0x80] sm:$0xff]
          %v1816 = vld [vmem:[#allocation2 + $0x88] sm:$0xff]
          %v1817 = vld [vmem:[#allocation2 + $0x90] sm:$0xff]
          %v1818 = vld [vmem:[#allocation2 + $0x98] sm:$0xff]
          %v1819 = vld [vmem:[#allocation2 + $0xa0] sm:$0xff]
          %v1820 = vld [vmem:[#allocation2 + $0xa8] sm:$0xff]
          %v1821 = vld [vmem:[#allocation2 + $0xb0] sm:$0xff]
          %v1822 = vld [vmem:[#allocation2 + $0xb8] sm:$0xff]
          %v1823 = vld [vmem:[#allocation2 + $0xc0] sm:$0xff]
          %v1824 = vld [vmem:[#allocation2 + $0xc8] sm:$0xff]
          %v1825 = vld [vmem:[#allocation2 + $0xd0] sm:$0xff]
          %v1826 = vld [vmem:[#allocation2 + $0xd8] sm:$0xff]
          %v1827 = vld [vmem:[#allocation2 + $0xe0] sm:$0xff]
          %v1828 = vld [vmem:[#allocation2 + $0xe8] sm:$0xff]
          %v1829 = vld [vmem:[#allocation2 + $0xf0] sm:$0xff]
          %v1830 = vld [vmem:[#allocation2 + $0xf8] sm:$0xff]
          %v1831 = vld [vmem:[#allocation2 + $0x100] sm:$0xff]
          %v1832 = vld [vmem:[#allocation2 + $0x108] sm:$0xff]
          %v1833 = vld [vmem:[#allocation2 + $0x110] sm:$0xff]
          %v1834 = vld [vmem:[#allocation2 + $0x118] sm:$0xff]
          %v1835 = vld [vmem:[#allocation2 + $0x120] sm:$0xff]
          %v1836 = vld [vmem:[#allocation2 + $0x128] sm:$0xff]
          %v1837 = vld [vmem:[#allocation2 + $0x130] sm:$0xff]
          %v1838 = vld [vmem:[#allocation2 + $0x138] sm:$0xff]
          %v1839 = vld [vmem:[#allocation2 + $0x140] sm:$0xff]
          %v1840 = vld [vmem:[#allocation2 + $0x148] sm:$0xff]
          %v1841 = vld [vmem:[#allocation2 + $0x150] sm:$0xff]
          %v1842 = vld [vmem:[#allocation2 + $0x158] sm:$0xff]
          %v1843 = vld [vmem:[#allocation2 + $0x160] sm:$0xff]
          %v1844 = vld [vmem:[#allocation2 + $0x168] sm:$0xff]
          %v1845 = vld [vmem:[#allocation2 + $0x170] sm:$0xff]
          %v1846 = vld [vmem:[#allocation2 + $0x178] sm:$0xff]
          %v1847 = vld [vmem:[#allocation2 + $0x180] sm:$0xff]
          %v1848 = vld [vmem:[#allocation2 + $0x188] sm:$0xff]
          %v1849 = vld [vmem:[#allocation2 + $0x190] sm:$0xff]
          %v1850 = vld [vmem:[#allocation2 + $0x198] sm:$0xff]
          %v1851 = vld [vmem:[#allocation2 + $0x1a0] sm:$0xff]
          %v1852 = vld [vmem:[#allocation2 + $0x1a8] sm:$0xff]
          %v1853 = vld [vmem:[#allocation2 + $0x1b0] sm:$0xff]
          %v1854 = vld [vmem:[#allocation2 + $0x1b8] sm:$0xff]
          %v1855 = vld [vmem:[#allocation2 + $0x1c0] sm:$0xff]
          %v1856 = vld [vmem:[#allocation2 + $0x1c8] sm:$0xff]
          %v1857 = vld [vmem:[#allocation2 + $0x1d0] sm:$0xff]
          %v1858 = vld [vmem:[#allocation2 + $0x1d8] sm:$0xff]
          %v1859 = vld [vmem:[#allocation2 + $0x1e0] sm:$0xff]
          %v1860 = vld [vmem:[#allocation2 + $0x1e8] sm:$0xff]
          %v1861 = vld [vmem:[#allocation2 + $0x1f0] sm:$0xff]
          %v1862 = vld [vmem:[#allocation2 + $0x1f8] sm:$0xff]
          %vm1863 = vcmp.ne.f32.partialorder %v1799, 0.0
          %vm1864 = vcmp.ne.f32.partialorder %v1800, 0.0
          %vm1865 = vcmp.ne.f32.partialorder %v1801, 0.0
          %vm1866 = vcmp.ne.f32.partialorder %v1802, 0.0
          %vm1867 = vcmp.ne.f32.partialorder %v1803, 0.0
          %vm1868 = vcmp.ne.f32.partialorder %v1804, 0.0
          %vm1869 = vcmp.ne.f32.partialorder %v1805, 0.0
          %vm1870 = vcmp.ne.f32.partialorder %v1806, 0.0
          %vm1871 = vcmp.ne.f32.partialorder %v1807, 0.0
          %vm1872 = vcmp.ne.f32.partialorder %v1808, 0.0
          %vm1873 = vcmp.ne.f32.partialorder %v1809, 0.0
          %vm1874 = vcmp.ne.f32.partialorder %v1810, 0.0
          %vm1875 = vcmp.ne.f32.partialorder %v1811, 0.0
          %vm1876 = vcmp.ne.f32.partialorder %v1812, 0.0
          %vm1877 = vcmp.ne.f32.partialorder %v1813, 0.0
          %vm1878 = vcmp.ne.f32.partialorder %v1814, 0.0
          %vm1879 = vcmp.ne.f32.partialorder %v1815, 0.0
          %vm1880 = vcmp.ne.f32.partialorder %v1816, 0.0
          %vm1881 = vcmp.ne.f32.partialorder %v1817, 0.0
          %vm1882 = vcmp.ne.f32.partialorder %v1818, 0.0
          %vm1883 = vcmp.ne.f32.partialorder %v1819, 0.0
          %vm1884 = vcmp.ne.f32.partialorder %v1820, 0.0
          %vm1885 = vcmp.ne.f32.partialorder %v1821, 0.0
          %vm1886 = vcmp.ne.f32.partialorder %v1822, 0.0
          %vm1887 = vcmp.ne.f32.partialorder %v1823, 0.0
          %vm1888 = vcmp.ne.f32.partialorder %v1824, 0.0
          %vm1889 = vcmp.ne.f32.partialorder %v1825, 0.0
          %vm1890 = vcmp.ne.f32.partialorder %v1826, 0.0
          %vm1891 = vcmp.ne.f32.partialorder %v1827, 0.0
          %vm1892 = vcmp.ne.f32.partialorder %v1828, 0.0
          %vm1893 = vcmp.ne.f32.partialorder %v1829, 0.0
          %vm1894 = vcmp.ne.f32.partialorder %v1830, 0.0
          %vm1895 = vcmp.ne.f32.partialorder %v1831, 0.0
          %vm1896 = vcmp.ne.f32.partialorder %v1832, 0.0
          %vm1897 = vcmp.ne.f32.partialorder %v1833, 0.0
          %vm1898 = vcmp.ne.f32.partialorder %v1834, 0.0
          %vm1899 = vcmp.ne.f32.partialorder %v1835, 0.0
          %vm1900 = vcmp.ne.f32.partialorder %v1836, 0.0
          %vm1901 = vcmp.ne.f32.partialorder %v1837, 0.0
          %vm1902 = vcmp.ne.f32.partialorder %v1838, 0.0
          %vm1903 = vcmp.ne.f32.partialorder %v1839, 0.0
          %vm1904 = vcmp.ne.f32.partialorder %v1840, 0.0
          %vm1905 = vcmp.ne.f32.partialorder %v1841, 0.0
          %vm1906 = vcmp.ne.f32.partialorder %v1842, 0.0
          %vm1907 = vcmp.ne.f32.partialorder %v1843, 0.0
          %vm1908 = vcmp.ne.f32.partialorder %v1844, 0.0
          %vm1909 = vcmp.ne.f32.partialorder %v1845, 0.0
          %vm1910 = vcmp.ne.f32.partialorder %v1846, 0.0
          %vm1911 = vcmp.ne.f32.partialorder %v1847, 0.0
          %vm1912 = vcmp.ne.f32.partialorder %v1848, 0.0
          %vm1913 = vcmp.ne.f32.partialorder %v1849, 0.0
          %vm1914 = vcmp.ne.f32.partialorder %v1850, 0.0
          %vm1915 = vcmp.ne.f32.partialorder %v1851, 0.0
          %vm1916 = vcmp.ne.f32.partialorder %v1852, 0.0
          %vm1917 = vcmp.ne.f32.partialorder %v1853, 0.0
          %vm1918 = vcmp.ne.f32.partialorder %v1854, 0.0
          %vm1919 = vcmp.ne.f32.partialorder %v1855, 0.0
          %vm1920 = vcmp.ne.f32.partialorder %v1856, 0.0
          %vm1921 = vcmp.ne.f32.partialorder %v1857, 0.0
          %vm1922 = vcmp.ne.f32.partialorder %v1858, 0.0
          %vm1923 = vcmp.ne.f32.partialorder %v1859, 0.0
          %vm1924 = vcmp.ne.f32.partialorder %v1860, 0.0
          %vm1925 = vcmp.ne.f32.partialorder %v1861, 0.0
          %vm1926 = vcmp.ne.f32.partialorder %v1862, 0.0
          %v1927 = vsel %vm1863, 1, 0
          %v1928 = vsel %vm1864, 1, 0
          %v1929 = vsel %vm1865, 1, 0
          %v1930 = vsel %vm1866, 1, 0
          %v1931 = vsel %vm1867, 1, 0
          %v1932 = vsel %vm1868, 1, 0
          %v1933 = vsel %vm1869, 1, 0
          %v1934 = vsel %vm1870, 1, 0
          %v1935 = vsel %vm1871, 1, 0
          %v1936 = vsel %vm1872, 1, 0
          %v1937 = vsel %vm1873, 1, 0
          %v1938 = vsel %vm1874, 1, 0
          %v1939 = vsel %vm1875, 1, 0
          %v1940 = vsel %vm1876, 1, 0
          %v1941 = vsel %vm1877, 1, 0
          %v1942 = vsel %vm1878, 1, 0
          %v1943 = vsel %vm1879, 1, 0
          %v1944 = vsel %vm1880, 1, 0
          %v1945 = vsel %vm1881, 1, 0
          %v1946 = vsel %vm1882, 1, 0
          %v1947 = vsel %vm1883, 1, 0
          %v1948 = vsel %vm1884, 1, 0
          %v1949 = vsel %vm1885, 1, 0
          %v1950 = vsel %vm1886, 1, 0
          %v1951 = vsel %vm1887, 1, 0
          %v1952 = vsel %vm1888, 1, 0
          %v1953 = vsel %vm1889, 1, 0
          %v1954 = vsel %vm1890, 1, 0
          %v1955 = vsel %vm1891, 1, 0
          %v1956 = vsel %vm1892, 1, 0
          %v1957 = vsel %vm1893, 1, 0
          %v1958 = vsel %vm1894, 1, 0
          %v1959 = vsel %vm1895, 1, 0
          %v1960 = vsel %vm1896, 1, 0
          %v1961 = vsel %vm1897, 1, 0
          %v1962 = vsel %vm1898, 1, 0
          %v1963 = vsel %vm1899, 1, 0
          %v1964 = vsel %vm1900, 1, 0
          %v1965 = vsel %vm1901, 1, 0
          %v1966 = vsel %vm1902, 1, 0
          %v1967 = vsel %vm1903, 1, 0
          %v1968 = vsel %vm1904, 1, 0
          %v1969 = vsel %vm1905, 1, 0
          %v1970 = vsel %vm1906, 1, 0
          %v1971 = vsel %vm1907, 1, 0
          %v1972 = vsel %vm1908, 1, 0
          %v1973 = vsel %vm1909, 1, 0
          %v1974 = vsel %vm1910, 1, 0
          %v1975 = vsel %vm1911, 1, 0
          %v1976 = vsel %vm1912, 1, 0
          %v1977 = vsel %vm1913, 1, 0
          %v1978 = vsel %vm1914, 1, 0
          %v1979 = vsel %vm1915, 1, 0
          %v1980 = vsel %vm1916, 1, 0
          %v1981 = vsel %vm1917, 1, 0
          %v1982 = vsel %vm1918, 1, 0
          %v1983 = vsel %vm1919, 1, 0
          %v1984 = vsel %vm1920, 1, 0
          %v1985 = vsel %vm1921, 1, 0
          %v1986 = vsel %vm1922, 1, 0
          %v1987 = vsel %vm1923, 1, 0
          %v1988 = vsel %vm1924, 1, 0
          %v1989 = vsel %vm1925, 1, 0
          %v1990 = vsel %vm1926, 1, 0
          %v1991 = vcvt.s32.f32 %v1927
          %v1992 = vcvt.s32.f32 %v1928
          %v1993 = vcvt.s32.f32 %v1929
          %v1994 = vcvt.s32.f32 %v1930
          %v1995 = vcvt.s32.f32 %v1931
          %v1996 = vcvt.s32.f32 %v1932
          %v1997 = vcvt.s32.f32 %v1933
          %v1998 = vcvt.s32.f32 %v1934
          %v1999 = vcvt.s32.f32 %v1935
          %v2000 = vcvt.s32.f32 %v1936
          %v2001 = vcvt.s32.f32 %v1937
          %v2002 = vcvt.s32.f32 %v1938
          %v2003 = vcvt.s32.f32 %v1939
          %v2004 = vcvt.s32.f32 %v1940
          %v2005 = vcvt.s32.f32 %v1941
          %v2006 = vcvt.s32.f32 %v1942
          %v2007 = vcvt.s32.f32 %v1943
          %v2008 = vcvt.s32.f32 %v1944
          %v2009 = vcvt.s32.f32 %v1945
          %v2010 = vcvt.s32.f32 %v1946
          %v2011 = vcvt.s32.f32 %v1947
          %v2012 = vcvt.s32.f32 %v1948
          %v2013 = vcvt.s32.f32 %v1949
          %v2014 = vcvt.s32.f32 %v1950
          %v2015 = vcvt.s32.f32 %v1951
          %v2016 = vcvt.s32.f32 %v1952
          %v2017 = vcvt.s32.f32 %v1953
          %v2018 = vcvt.s32.f32 %v1954
          %v2019 = vcvt.s32.f32 %v1955
          %v2020 = vcvt.s32.f32 %v1956
          %v2021 = vcvt.s32.f32 %v1957
          %v2022 = vcvt.s32.f32 %v1958
          %v2023 = vcvt.s32.f32 %v1959
          %v2024 = vcvt.s32.f32 %v1960
          %v2025 = vcvt.s32.f32 %v1961
          %v2026 = vcvt.s32.f32 %v1962
          %v2027 = vcvt.s32.f32 %v1963
          %v2028 = vcvt.s32.f32 %v1964
          %v2029 = vcvt.s32.f32 %v1965
          %v2030 = vcvt.s32.f32 %v1966
          %v2031 = vcvt.s32.f32 %v1967
          %v2032 = vcvt.s32.f32 %v1968
          %v2033 = vcvt.s32.f32 %v1969
          %v2034 = vcvt.s32.f32 %v1970
          %v2035 = vcvt.s32.f32 %v1971
          %v2036 = vcvt.s32.f32 %v1972
          %v2037 = vcvt.s32.f32 %v1973
          %v2038 = vcvt.s32.f32 %v1974
          %v2039 = vcvt.s32.f32 %v1975
          %v2040 = vcvt.s32.f32 %v1976
          %v2041 = vcvt.s32.f32 %v1977
          %v2042 = vcvt.s32.f32 %v1978
          %v2043 = vcvt.s32.f32 %v1979
          %v2044 = vcvt.s32.f32 %v1980
          %v2045 = vcvt.s32.f32 %v1981
          %v2046 = vcvt.s32.f32 %v1982
          %v2047 = vcvt.s32.f32 %v1983
          %v2048 = vcvt.s32.f32 %v1984
          %v2049 = vcvt.s32.f32 %v1985
          %v2050 = vcvt.s32.f32 %v1986
          %v2051 = vcvt.s32.f32 %v1987
          %v2052 = vcvt.s32.f32 %v1988
          %v2053 = vcvt.s32.f32 %v1989
          %v2054 = vcvt.s32.f32 %v1990
          %v2055 = vadd.f32 %v1991, %v1992
          %2056 = vadd.xlane.f32.xlu0 %v2055
          %v2057 = vpop.xlane.xlu0 %2056
          %v2058 = vadd.f32 %v1993, %v1994
          %2059 = vadd.xlane.f32.xlu0 %v2058
          %v2060 = vpop.xlane.xlu0 %2059
          %v2061 = vadd.f32 %v1995, %v1996
          %2062 = vadd.xlane.f32.xlu0 %v2061
          %v2063 = vpop.xlane.xlu0 %2062
          %v2064 = vadd.f32 %v1997, %v1998
          %2065 = vadd.xlane.f32.xlu0 %v2064
          %v2066 = vpop.xlane.xlu0 %2065
          %v2067 = vadd.f32 %v1999, %v2000
          %2068 = vadd.xlane.f32.xlu0 %v2067
          %v2069 = vpop.xlane.xlu0 %2068
          %v2070 = vadd.f32 %v2001, %v2002
          %2071 = vadd.xlane.f32.xlu0 %v2070
          %v2072 = vpop.xlane.xlu0 %2071
          %v2073 = vadd.f32 %v2003, %v2004
          %2074 = vadd.xlane.f32.xlu0 %v2073
          %v2075 = vpop.xlane.xlu0 %2074
          %v2076 = vadd.f32 %v2005, %v2006
          %2077 = vadd.xlane.f32.xlu0 %v2076
          %v2078 = vpop.xlane.xlu0 %2077
          %v2079 = vadd.f32 %v2007, %v2008
          %2080 = vadd.xlane.f32.xlu0 %v2079
          %v2081 = vpop.xlane.xlu0 %2080
          %v2082 = vadd.f32 %v2009, %v2010
          %2083 = vadd.xlane.f32.xlu0 %v2082
          %v2084 = vpop.xlane.xlu0 %2083
          %v2085 = vadd.f32 %v2011, %v2012
          %2086 = vadd.xlane.f32.xlu0 %v2085
          %v2087 = vpop.xlane.xlu0 %2086
          %v2088 = vadd.f32 %v2013, %v2014
          %2089 = vadd.xlane.f32.xlu0 %v2088
          %v2090 = vpop.xlane.xlu0 %2089
          %v2091 = vadd.f32 %v2015, %v2016
          %2092 = vadd.xlane.f32.xlu0 %v2091
          %v2093 = vpop.xlane.xlu0 %2092
          %v2094 = vadd.f32 %v2017, %v2018
          %2095 = vadd.xlane.f32.xlu0 %v2094
          %v2096 = vpop.xlane.xlu0 %2095
          %v2097 = vadd.f32 %v2019, %v2020
          %2098 = vadd.xlane.f32.xlu0 %v2097
          %v2099 = vpop.xlane.xlu0 %2098
          %v2100 = vadd.f32 %v2021, %v2022
          %2101 = vadd.xlane.f32.xlu0 %v2100
          %v2102 = vpop.xlane.xlu0 %2101
          %v2103 = vadd.f32 %v2023, %v2024
          %2104 = vadd.xlane.f32.xlu0 %v2103
          %v2105 = vpop.xlane.xlu0 %2104
          %v2106 = vadd.f32 %v2025, %v2026
          %2107 = vadd.xlane.f32.xlu0 %v2106
          %v2108 = vpop.xlane.xlu0 %2107
          %v2109 = vadd.f32 %v2027, %v2028
          %2110 = vadd.xlane.f32.xlu0 %v2109
          %v2111 = vpop.xlane.xlu0 %2110
          %v2112 = vadd.f32 %v2029, %v2030
          %2113 = vadd.xlane.f32.xlu0 %v2112
          %v2114 = vpop.xlane.xlu0 %2113
          %v2115 = vadd.f32 %v2031, %v2032
          %2116 = vadd.xlane.f32.xlu0 %v2115
          %v2117 = vpop.xlane.xlu0 %2116
          %v2118 = vadd.f32 %v2033, %v2034
          %2119 = vadd.xlane.f32.xlu0 %v2118
          %v2120 = vpop.xlane.xlu0 %2119
          %v2121 = vadd.f32 %v2035, %v2036
          %2122 = vadd.xlane.f32.xlu0 %v2121
          %v2123 = vpop.xlane.xlu0 %2122
          %v2124 = vadd.f32 %v2037, %v2038
          %2125 = vadd.xlane.f32.xlu0 %v2124
          %v2126 = vpop.xlane.xlu0 %2125
          %v2127 = vadd.f32 %v2039, %v2040
          %2128 = vadd.xlane.f32.xlu0 %v2127
          %v2129 = vpop.xlane.xlu0 %2128
          %v2130 = vadd.f32 %v2041, %v2042
          %2131 = vadd.xlane.f32.xlu0 %v2130
          %v2132 = vpop.xlane.xlu0 %2131
          %v2133 = vadd.f32 %v2043, %v2044
          %2134 = vadd.xlane.f32.xlu0 %v2133
          %v2135 = vpop.xlane.xlu0 %2134
          %v2136 = vadd.f32 %v2045, %v2046
          %2137 = vadd.xlane.f32.xlu0 %v2136
          %v2138 = vpop.xlane.xlu0 %2137
          %v2139 = vadd.f32 %v2047, %v2048
          %2140 = vadd.xlane.f32.xlu0 %v2139
          %v2141 = vpop.xlane.xlu0 %2140
          %v2142 = vadd.f32 %v2049, %v2050
          %2143 = vadd.xlane.f32.xlu0 %v2142
          %v2144 = vpop.xlane.xlu0 %2143
          %v2145 = vadd.f32 %v2051, %v2052
          %2146 = vadd.xlane.f32.xlu0 %v2145
          %v2147 = vpop.xlane.xlu0 %2146
          %v2148 = vadd.f32 %v2053, %v2054
          %2149 = vadd.xlane.f32.xlu0 %v2148
          %v2150 = vpop.xlane.xlu0 %2149
          %v2151 = vrcp.pop %v2057
          %v2152 = vrcp.pop %v2060
          %v2153 = vrcp.pop %v2063
          %v2154 = vrcp.pop %v2066
          %v2155 = vrcp.pop %v2069
          %v2156 = vrcp.pop %v2072
          %v2157 = vrcp.pop %v2075
          %v2158 = vrcp.pop %v2078
          %v2159 = vrcp.pop %v2081
          %v2160 = vrcp.pop %v2084
          %v2161 = vrcp.pop %v2087
          %v2162 = vrcp.pop %v2090
          %v2163 = vrcp.pop %v2093
          %v2164 = vrcp.pop %v2096
          %v2165 = vrcp.pop %v2099
          %v2166 = vrcp.pop %v2102
          %v2167 = vrcp.pop %v2105
          %v2168 = vrcp.pop %v2108
          %v2169 = vrcp.pop %v2111
          %v2170 = vrcp.pop %v2114
          %v2171 = vrcp.pop %v2117
          %v2172 = vrcp.pop %v2120
          %v2173 = vrcp.pop %v2123
          %v2174 = vrcp.pop %v2126
          %v2175 = vrcp.pop %v2129
          %v2176 = vrcp.pop %v2132
          %v2177 = vrcp.pop %v2135
          %v2178 = vrcp.pop %v2138
          %v2179 = vrcp.pop %v2141
          %v2180 = vrcp.pop %v2144
          %v2181 = vrcp.pop %v2147
          %v2182 = vrcp.pop %v2150
          %v2215 = vlaneseq
          %v2216 = vand.u32 %v2215, 127
          %v2217 = vlaneseq
          %v2218 = vshrl.u32 %v2217, 7
          %v2219 = vsub.s32 %v2216, %v2218
          %v2220 = vrot.slane %v2151, %v2219
          %v2221 = vadd.s32 %v2216, 4294967288
          %v2222 = vlaneseq
          %v2223 = vshrl.u32 %v2222, 7
          %v2224 = vsub.s32 %v2221, %v2223
          %v2225 = vrot.slane %v2152, %v2224
          %vm2226 = vcmask 130112
          %v2227 = vsel %vm2226, %v2225, %v2220
          %v2228 = vadd.s32 %v2216, 4294967280
          %v2229 = vlaneseq
          %v2230 = vshrl.u32 %v2229, 7
          %v2231 = vsub.s32 %v2228, %v2230
          %v2232 = vrot.slane %v2153, %v2231
          %vm2233 = vcmask 195712
          %v2234 = vsel %vm2233, %v2232, %v2227
          %v2235 = vadd.s32 %v2216, 4294967272
          %v2236 = vlaneseq
          %v2237 = vshrl.u32 %v2236, 7
          %v2238 = vsub.s32 %v2235, %v2237
          %v2239 = vrot.slane %v2154, %v2238
          %vm2240 = vcmask 261312
          %v2241 = vsel %vm2240, %v2239, %v2234
          %v2242 = vadd.s32 %v2216, 4294967264
          %v2243 = vlaneseq
          %v2244 = vshrl.u32 %v2243, 7
          %v2245 = vsub.s32 %v2242, %v2244
          %v2246 = vrot.slane %v2155, %v2245
          %vm2247 = vcmask 326912
          %v2248 = vsel %vm2247, %v2246, %v2241
          %v2249 = vadd.s32 %v2216, 4294967256
          %v2250 = vlaneseq
          %v2251 = vshrl.u32 %v2250, 7
          %v2252 = vsub.s32 %v2249, %v2251
          %v2253 = vrot.slane %v2156, %v2252
          %vm2254 = vcmask 392512
          %v2255 = vsel %vm2254, %v2253, %v2248
          %v2256 = vadd.s32 %v2216, 4294967248
          %v2257 = vlaneseq
          %v2258 = vshrl.u32 %v2257, 7
          %v2259 = vsub.s32 %v2256, %v2258
          %v2260 = vrot.slane %v2157, %v2259
          %vm2261 = vcmask 458112
          %v2262 = vsel %vm2261, %v2260, %v2255
          %v2263 = vadd.s32 %v2216, 4294967240
          %v2264 = vlaneseq
          %v2265 = vshrl.u32 %v2264, 7
          %v2266 = vsub.s32 %v2263, %v2265
          %v2267 = vrot.slane %v2158, %v2266
          %vm2268 = vcmask 523712
          %v2269 = vsel %vm2268, %v2267, %v2262
          %v2270 = vadd.s32 %v2216, 4294967232
          %v2271 = vlaneseq
          %v2272 = vshrl.u32 %v2271, 7
          %v2273 = vsub.s32 %v2270, %v2272
          %v2274 = vrot.slane %v2159, %v2273
          %vm2275 = vcmask 589312
          %v2276 = vsel %vm2275, %v2274, %v2269
          %v2277 = vadd.s32 %v2216, 4294967224
          %v2278 = vlaneseq
          %v2279 = vshrl.u32 %v2278, 7
          %v2280 = vsub.s32 %v2277, %v2279
          %v2281 = vrot.slane %v2160, %v2280
          %vm2282 = vcmask 654912
          %v2283 = vsel %vm2282, %v2281, %v2276
          %v2284 = vadd.s32 %v2216, 4294967216
          %v2285 = vlaneseq
          %v2286 = vshrl.u32 %v2285, 7
          %v2287 = vsub.s32 %v2284, %v2286
          %v2288 = vrot.slane %v2161, %v2287
          %vm2289 = vcmask 720512
          %v2290 = vsel %vm2289, %v2288, %v2283
          %v2291 = vadd.s32 %v2216, 4294967208
          %v2292 = vlaneseq
          %v2293 = vshrl.u32 %v2292, 7
          %v2294 = vsub.s32 %v2291, %v2293
          %v2295 = vrot.slane %v2162, %v2294
          %vm2296 = vcmask 786112
          %v2297 = vsel %vm2296, %v2295, %v2290
          %v2298 = vadd.s32 %v2216, 4294967200
          %v2299 = vlaneseq
          %v2300 = vshrl.u32 %v2299, 7
          %v2301 = vsub.s32 %v2298, %v2300
          %v2302 = vrot.slane %v2163, %v2301
          %vm2303 = vcmask 851712
          %v2304 = vsel %vm2303, %v2302, %v2297
          %v2305 = vadd.s32 %v2216, 4294967192
          %v2306 = vlaneseq
          %v2307 = vshrl.u32 %v2306, 7
          %v2308 = vsub.s32 %v2305, %v2307
          %v2309 = vrot.slane %v2164, %v2308
          %vm2310 = vcmask 917312
          %v2311 = vsel %vm2310, %v2309, %v2304
          %v2312 = vadd.s32 %v2216, 4294967184
          %v2313 = vlaneseq
          %v2314 = vshrl.u32 %v2313, 7
          %v2315 = vsub.s32 %v2312, %v2314
          %v2316 = vrot.slane %v2165, %v2315
          %vm2317 = vcmask 982912
          %v2318 = vsel %vm2317, %v2316, %v2311
          %v2319 = vadd.s32 %v2216, 4294967176
          %v2320 = vlaneseq
          %v2321 = vshrl.u32 %v2320, 7
          %v2322 = vsub.s32 %v2319, %v2321
          %v2323 = vrot.slane %v2166, %v2322
          %vm2324 = vcmask 1048512
          %v2325 = vsel %vm2324, %v2323, %v2318
          %v2326 = vlaneseq
          %v2327 = vshrl.u32 %v2326, 7
          %v2328 = vsub.s32 %v2216, %v2327
          %v2329 = vrot.slane %v2167, %v2328
          %v2330 = vlaneseq
          %v2331 = vshrl.u32 %v2330, 7
          %v2332 = vsub.s32 %v2221, %v2331
          %v2333 = vrot.slane %v2168, %v2332
          %v2334 = vsel %vm2226, %v2333, %v2329
          %v2335 = vlaneseq
          %v2336 = vshrl.u32 %v2335, 7
          %v2337 = vsub.s32 %v2228, %v2336
          %v2338 = vrot.slane %v2169, %v2337
          %v2339 = vsel %vm2233, %v2338, %v2334
          %v2340 = vlaneseq
          %v2341 = vshrl.u32 %v2340, 7
          %v2342 = vsub.s32 %v2235, %v2341
          %v2343 = vrot.slane %v2170, %v2342
          %v2344 = vsel %vm2240, %v2343, %v2339
          %v2345 = vlaneseq
          %v2346 = vshrl.u32 %v2345, 7
          %v2347 = vsub.s32 %v2242, %v2346
          %v2348 = vrot.slane %v2171, %v2347
          %v2349 = vsel %vm2247, %v2348, %v2344
          %v2350 = vlaneseq
          %v2351 = vshrl.u32 %v2350, 7
          %v2352 = vsub.s32 %v2249, %v2351
          %v2353 = vrot.slane %v2172, %v2352
          %v2354 = vsel %vm2254, %v2353, %v2349
          %v2355 = vlaneseq
          %v2356 = vshrl.u32 %v2355, 7
          %v2357 = vsub.s32 %v2256, %v2356
          %v2358 = vrot.slane %v2173, %v2357
          %v2359 = vsel %vm2261, %v2358, %v2354
          %v2360 = vlaneseq
          %v2361 = vshrl.u32 %v2360, 7
          %v2362 = vsub.s32 %v2263, %v2361
          %v2363 = vrot.slane %v2174, %v2362
          %v2364 = vsel %vm2268, %v2363, %v2359
          %v2365 = vlaneseq
          %v2366 = vshrl.u32 %v2365, 7
          %v2367 = vsub.s32 %v2270, %v2366
          %v2368 = vrot.slane %v2175, %v2367
          %v2369 = vsel %vm2275, %v2368, %v2364
          %v2370 = vlaneseq
          %v2371 = vshrl.u32 %v2370, 7
          %v2372 = vsub.s32 %v2277, %v2371
          %v2373 = vrot.slane %v2176, %v2372
          %v2374 = vsel %vm2282, %v2373, %v2369
          %v2375 = vlaneseq
          %v2376 = vshrl.u32 %v2375, 7
          %v2377 = vsub.s32 %v2284, %v2376
          %v2378 = vrot.slane %v2177, %v2377
          %v2379 = vsel %vm2289, %v2378, %v2374
          %v2380 = vlaneseq
          %v2381 = vshrl.u32 %v2380, 7
          %v2382 = vsub.s32 %v2291, %v2381
          %v2383 = vrot.slane %v2178, %v2382
          %v2384 = vsel %vm2296, %v2383, %v2379
          %v2385 = vlaneseq
          %v2386 = vshrl.u32 %v2385, 7
          %v2387 = vsub.s32 %v2298, %v2386
          %v2388 = vrot.slane %v2179, %v2387
          %v2389 = vsel %vm2303, %v2388, %v2384
          %v2390 = vlaneseq
          %v2391 = vshrl.u32 %v2390, 7
          %v2392 = vsub.s32 %v2305, %v2391
          %v2393 = vrot.slane %v2180, %v2392
          %v2394 = vsel %vm2310, %v2393, %v2389
          %v2395 = vlaneseq
          %v2396 = vshrl.u32 %v2395, 7
          %v2397 = vsub.s32 %v2312, %v2396
          %v2398 = vrot.slane %v2181, %v2397
          %v2399 = vsel %vm2317, %v2398, %v2394
          %v2400 = vlaneseq
          %v2401 = vshrl.u32 %v2400, 7
          %v2402 = vsub.s32 %v2319, %v2401
          %v2403 = vrot.slane %v2182, %v2402
          %v2404 = vsel %vm2324, %v2403, %v2399
          %vm2405 = vcmask 1042434
          %v2406 = vsel %vm2405, %v2325, %v2325
          %vm2407 = vcmask 1043459
          %v2408 = vsel %vm2407, %v2325, %v2406
          %vm2409 = vcmask 1044484
          %v2410 = vsel %vm2409, %v2325, %v2408
          %vm2411 = vcmask 1045509
          %v2412 = vsel %vm2411, %v2325, %v2410
          %vm2413 = vcmask 1046534
          %v2414 = vsel %vm2413, %v2325, %v2412
          %vm2415 = vcmask 1047559
          %v2416 = vsel %vm2415, %v2325, %v2414
          %v2417 = vsel %vm2405, %v2404, %v2404
          %v2418 = vsel %vm2407, %v2404, %v2417
          %v2419 = vsel %vm2409, %v2404, %v2418
          %v2420 = vsel %vm2411, %v2404, %v2419
          %v2421 = vsel %vm2413, %v2404, %v2420
          %v2422 = vsel %vm2415, %v2404, %v2421
          %v2425 = vmul.f32 %v1991, %v2416
          %v2426 = vmul.f32 %v1992, %v2422
          %v2427 = vmul.f32 %v1993, %v2416
          %v2428 = vmul.f32 %v1994, %v2422
          %v2429 = vmul.f32 %v1995, %v2416
          %v2430 = vmul.f32 %v1996, %v2422
          %v2431 = vmul.f32 %v1997, %v2416
          %v2432 = vmul.f32 %v1998, %v2422
          %v2433 = vmul.f32 %v1999, %v2416
          %v2434 = vmul.f32 %v2000, %v2422
          %v2435 = vmul.f32 %v2001, %v2416
          %v2436 = vmul.f32 %v2002, %v2422
          %v2437 = vmul.f32 %v2003, %v2416
          %v2438 = vmul.f32 %v2004, %v2422
          %v2439 = vmul.f32 %v2005, %v2416
          %v2440 = vmul.f32 %v2006, %v2422
          %v2441 = vmul.f32 %v2007, %v2416
          %v2442 = vmul.f32 %v2008, %v2422
          %v2443 = vmul.f32 %v2009, %v2416
          %v2444 = vmul.f32 %v2010, %v2422
          %v2445 = vmul.f32 %v2011, %v2416
          %v2446 = vmul.f32 %v2012, %v2422
          %v2447 = vmul.f32 %v2013, %v2416
          %v2448 = vmul.f32 %v2014, %v2422
          %v2449 = vmul.f32 %v2015, %v2416
          %v2450 = vmul.f32 %v2016, %v2422
          %v2451 = vmul.f32 %v2017, %v2416
          %v2452 = vmul.f32 %v2018, %v2422
          %v2453 = vmul.f32 %v2019, %v2416
          %v2454 = vmul.f32 %v2020, %v2422
          %v2455 = vmul.f32 %v2021, %v2416
          %v2456 = vmul.f32 %v2022, %v2422
          %v2457 = vmul.f32 %v2023, %v2416
          %v2458 = vmul.f32 %v2024, %v2422
          %v2459 = vmul.f32 %v2025, %v2416
          %v2460 = vmul.f32 %v2026, %v2422
          %v2461 = vmul.f32 %v2027, %v2416
          %v2462 = vmul.f32 %v2028, %v2422
          %v2463 = vmul.f32 %v2029, %v2416
          %v2464 = vmul.f32 %v2030, %v2422
          %v2465 = vmul.f32 %v2031, %v2416
          %v2466 = vmul.f32 %v2032, %v2422
          %v2467 = vmul.f32 %v2033, %v2416
          %v2468 = vmul.f32 %v2034, %v2422
          %v2469 = vmul.f32 %v2035, %v2416
          %v2470 = vmul.f32 %v2036, %v2422
          %v2471 = vmul.f32 %v2037, %v2416
          %v2472 = vmul.f32 %v2038, %v2422
          %v2473 = vmul.f32 %v2039, %v2416
          %v2474 = vmul.f32 %v2040, %v2422
          %v2475 = vmul.f32 %v2041, %v2416
          %v2476 = vmul.f32 %v2042, %v2422
          %v2477 = vmul.f32 %v2043, %v2416
          %v2478 = vmul.f32 %v2044, %v2422
          %v2479 = vmul.f32 %v2045, %v2416
          %v2480 = vmul.f32 %v2046, %v2422
          %v2481 = vmul.f32 %v2047, %v2416
          %v2482 = vmul.f32 %v2048, %v2422
          %v2483 = vmul.f32 %v2049, %v2416
          %v2484 = vmul.f32 %v2050, %v2422
          %v2485 = vmul.f32 %v2051, %v2416
          %v2486 = vmul.f32 %v2052, %v2422
          %v2487 = vmul.f32 %v2053, %v2416
          %v2488 = vmul.f32 %v2054, %v2422
          %2489 = vst [vmem:[#allocation4] sm:$0xff] %v2425
          %2490 = vst [vmem:[#allocation4 + $0x8] sm:$0xff] %v2426
          %2491 = vst [vmem:[#allocation4 + $0x10] sm:$0xff] %v2427
          %2492 = vst [vmem:[#allocation4 + $0x18] sm:$0xff] %v2428
          %2493 = vst [vmem:[#allocation4 + $0x20] sm:$0xff] %v2429
          %2494 = vst [vmem:[#allocation4 + $0x28] sm:$0xff] %v2430
          %2495 = vst [vmem:[#allocation4 + $0x30] sm:$0xff] %v2431
          %2496 = vst [vmem:[#allocation4 + $0x38] sm:$0xff] %v2432
          %2497 = vst [vmem:[#allocation4 + $0x40] sm:$0xff] %v2433
          %2498 = vst [vmem:[#allocation4 + $0x48] sm:$0xff] %v2434
          %2499 = vst [vmem:[#allocation4 + $0x50] sm:$0xff] %v2435
          %2500 = vst [vmem:[#allocation4 + $0x58] sm:$0xff] %v2436
          %2501 = vst [vmem:[#allocation4 + $0x60] sm:$0xff] %v2437
          %2502 = vst [vmem:[#allocation4 + $0x68] sm:$0xff] %v2438
          %2503 = vst [vmem:[#allocation4 + $0x70] sm:$0xff] %v2439
          %2504 = vst [vmem:[#allocation4 + $0x78] sm:$0xff] %v2440
          %2505 = vst [vmem:[#allocation4 + $0x80] sm:$0xff] %v2441
          %2506 = vst [vmem:[#allocation4 + $0x88] sm:$0xff] %v2442
          %2507 = vst [vmem:[#allocation4 + $0x90] sm:$0xff] %v2443
          %2508 = vst [vmem:[#allocation4 + $0x98] sm:$0xff] %v2444
          %2509 = vst [vmem:[#allocation4 + $0xa0] sm:$0xff] %v2445
          %2510 = vst [vmem:[#allocation4 + $0xa8] sm:$0xff] %v2446
          %2511 = vst [vmem:[#allocation4 + $0xb0] sm:$0xff] %v2447
          %2512 = vst [vmem:[#allocation4 + $0xb8] sm:$0xff] %v2448
          %2513 = vst [vmem:[#allocation4 + $0xc0] sm:$0xff] %v2449
          %2514 = vst [vmem:[#allocation4 + $0xc8] sm:$0xff] %v2450
          %2515 = vst [vmem:[#allocation4 + $0xd0] sm:$0xff] %v2451
          %2516 = vst [vmem:[#allocation4 + $0xd8] sm:$0xff] %v2452
          %2517 = vst [vmem:[#allocation4 + $0xe0] sm:$0xff] %v2453
          %2518 = vst [vmem:[#allocation4 + $0xe8] sm:$0xff] %v2454
          %2519 = vst [vmem:[#allocation4 + $0xf0] sm:$0xff] %v2455
          %2520 = vst [vmem:[#allocation4 + $0xf8] sm:$0xff] %v2456
          %2521 = vst [vmem:[#allocation4 + $0x100] sm:$0xff] %v2457
          %2522 = vst [vmem:[#allocation4 + $0x108] sm:$0xff] %v2458
          %2523 = vst [vmem:[#allocation4 + $0x110] sm:$0xff] %v2459
          %2524 = vst [vmem:[#allocation4 + $0x118] sm:$0xff] %v2460
          %2525 = vst [vmem:[#allocation4 + $0x120] sm:$0xff] %v2461
          %2526 = vst [vmem:[#allocation4 + $0x128] sm:$0xff] %v2462
          %2527 = vst [vmem:[#allocation4 + $0x130] sm:$0xff] %v2463
          %2528 = vst [vmem:[#allocation4 + $0x138] sm:$0xff] %v2464
          %2529 = vst [vmem:[#allocation4 + $0x140] sm:$0xff] %v2465
          %2530 = vst [vmem:[#allocation4 + $0x148] sm:$0xff] %v2466
          %2531 = vst [vmem:[#allocation4 + $0x150] sm:$0xff] %v2467
          %2532 = vst [vmem:[#allocation4 + $0x158] sm:$0xff] %v2468
          %2533 = vst [vmem:[#allocation4 + $0x160] sm:$0xff] %v2469
          %2534 = vst [vmem:[#allocation4 + $0x168] sm:$0xff] %v2470
          %2535 = vst [vmem:[#allocation4 + $0x170] sm:$0xff] %v2471
          %2536 = vst [vmem:[#allocation4 + $0x178] sm:$0xff] %v2472
          %2537 = vst [vmem:[#allocation4 + $0x180] sm:$0xff] %v2473
          %2538 = vst [vmem:[#allocation4 + $0x188] sm:$0xff] %v2474
          %2539 = vst [vmem:[#allocation4 + $0x190] sm:$0xff] %v2475
          %2540 = vst [vmem:[#allocation4 + $0x198] sm:$0xff] %v2476
          %2541 = vst [vmem:[#allocation4 + $0x1a0] sm:$0xff] %v2477
          %2542 = vst [vmem:[#allocation4 + $0x1a8] sm:$0xff] %v2478
          %2543 = vst [vmem:[#allocation4 + $0x1b0] sm:$0xff] %v2479
          %2544 = vst [vmem:[#allocation4 + $0x1b8] sm:$0xff] %v2480
          %2545 = vst [vmem:[#allocation4 + $0x1c0] sm:$0xff] %v2481
          %2546 = vst [vmem:[#allocation4 + $0x1c8] sm:$0xff] %v2482
          %2547 = vst [vmem:[#allocation4 + $0x1d0] sm:$0xff] %v2483
          %2548 = vst [vmem:[#allocation4 + $0x1d8] sm:$0xff] %v2484
          %2549 = vst [vmem:[#allocation4 + $0x1e0] sm:$0xff] %v2485
          %2550 = vst [vmem:[#allocation4 + $0x1e8] sm:$0xff] %v2486
          %2551 = vst [vmem:[#allocation4 + $0x1f0] sm:$0xff] %v2487
          %2552 = vst [vmem:[#allocation4 + $0x1f8] sm:$0xff] %v2488
          %v2553 = vld [vmem:[%s2] sm:$0xff]
          %v2554 = vld [vmem:[%s2 + $0x8] sm:$0xff]
          %v2555 = vld [vmem:[%s2 + $0x10] sm:$0xff]
          %v2556 = vld [vmem:[%s2 + $0x18] sm:$0xff]
          %v2557 = vld [vmem:[%s2 + $0x20] sm:$0xff]
          %v2558 = vld [vmem:[%s2 + $0x28] sm:$0xff]
          %v2559 = vld [vmem:[%s2 + $0x30] sm:$0xff]
          %v2560 = vld [vmem:[%s2 + $0x38] sm:$0xff]
          %v2561 = vld [vmem:[%s2 + $0x40] sm:$0xff]
          %v2562 = vld [vmem:[%s2 + $0x48] sm:$0xff]
          %v2563 = vld [vmem:[%s2 + $0x50] sm:$0xff]
          %v2564 = vld [vmem:[%s2 + $0x58] sm:$0xff]
          %v2565 = vld [vmem:[%s2 + $0x60] sm:$0xff]
          %v2566 = vld [vmem:[%s2 + $0x68] sm:$0xff]
          %v2567 = vld [vmem:[%s2 + $0x70] sm:$0xff]
          %v2568 = vld [vmem:[%s2 + $0x78] sm:$0xff]
          %v2569 = vld [vmem:[%s2 + $0x80] sm:$0xff]
          %v2570 = vld [vmem:[%s2 + $0x88] sm:$0xff]
          %v2571 = vld [vmem:[%s2 + $0x90] sm:$0xff]
          %v2572 = vld [vmem:[%s2 + $0x98] sm:$0xff]
          %v2573 = vld [vmem:[%s2 + $0xa0] sm:$0xff]
          %v2574 = vld [vmem:[%s2 + $0xa8] sm:$0xff]
          %v2575 = vld [vmem:[%s2 + $0xb0] sm:$0xff]
          %v2576 = vld [vmem:[%s2 + $0xb8] sm:$0xff]
          %v2577 = vld [vmem:[%s2 + $0xc0] sm:$0xff]
          %v2578 = vld [vmem:[%s2 + $0xc8] sm:$0xff]
          %v2579 = vld [vmem:[%s2 + $0xd0] sm:$0xff]
          %v2580 = vld [vmem:[%s2 + $0xd8] sm:$0xff]
          %v2581 = vld [vmem:[%s2 + $0xe0] sm:$0xff]
          %v2582 = vld [vmem:[%s2 + $0xe8] sm:$0xff]
          %v2583 = vld [vmem:[%s2 + $0xf0] sm:$0xff]
          %v2584 = vld [vmem:[%s2 + $0xf8] sm:$0xff]
          %v2585 = vld [vmem:[%s3] sm:$0xff]
          %v2586 = vld [vmem:[%s3 + $0x8] sm:$0xff]
          %v2587 = vld [vmem:[%s3 + $0x10] sm:$0xff]
          %v2588 = vld [vmem:[%s3 + $0x18] sm:$0xff]
          %v2589 = vld [vmem:[%s3 + $0x20] sm:$0xff]
          %v2590 = vld [vmem:[%s3 + $0x28] sm:$0xff]
          %v2591 = vld [vmem:[%s3 + $0x30] sm:$0xff]
          %v2592 = vld [vmem:[%s3 + $0x38] sm:$0xff]
          %v2593 = vld [vmem:[%s3 + $0x40] sm:$0xff]
          %v2594 = vld [vmem:[%s3 + $0x48] sm:$0xff]
          %v2595 = vld [vmem:[%s3 + $0x50] sm:$0xff]
          %v2596 = vld [vmem:[%s3 + $0x58] sm:$0xff]
          %v2597 = vld [vmem:[%s3 + $0x60] sm:$0xff]
          %v2598 = vld [vmem:[%s3 + $0x68] sm:$0xff]
          %v2599 = vld [vmem:[%s3 + $0x70] sm:$0xff]
          %v2600 = vld [vmem:[%s3 + $0x78] sm:$0xff]
          %v2601 = vld [vmem:[%s3 + $0x80] sm:$0xff]
          %v2602 = vld [vmem:[%s3 + $0x88] sm:$0xff]
          %v2603 = vld [vmem:[%s3 + $0x90] sm:$0xff]
          %v2604 = vld [vmem:[%s3 + $0x98] sm:$0xff]
          %v2605 = vld [vmem:[%s3 + $0xa0] sm:$0xff]
          %v2606 = vld [vmem:[%s3 + $0xa8] sm:$0xff]
          %v2607 = vld [vmem:[%s3 + $0xb0] sm:$0xff]
          %v2608 = vld [vmem:[%s3 + $0xb8] sm:$0xff]
          %v2609 = vld [vmem:[%s3 + $0xc0] sm:$0xff]
          %v2610 = vld [vmem:[%s3 + $0xc8] sm:$0xff]
          %v2611 = vld [vmem:[%s3 + $0xd0] sm:$0xff]
          %v2612 = vld [vmem:[%s3 + $0xd8] sm:$0xff]
          %v2613 = vld [vmem:[%s3 + $0xe0] sm:$0xff]
          %v2614 = vld [vmem:[%s3 + $0xe8] sm:$0xff]
          %v2615 = vld [vmem:[%s3 + $0xf0] sm:$0xff]
          %v2616 = vld [vmem:[%s3 + $0xf8] sm:$0xff]
          %2618 = vset.pattern.permute.xlu0 0
          %2619 = vperm.xlu0 %2618, %v2585
          %v2620 = vpop.permute.xlu0 %2619
          %2623 = vset.pattern.permute.xlu0 0
          %2624 = vperm.xlu0 %2623, %v2586
          %v2625 = vpop.permute.xlu0 %2624
          %2628 = vset.pattern.permute.xlu0 0
          %2629 = vperm.xlu0 %2628, %v2587
          %v2630 = vpop.permute.xlu0 %2629
          %2633 = vset.pattern.permute.xlu0 0
          %2634 = vperm.xlu0 %2633, %v2588
          %v2635 = vpop.permute.xlu0 %2634
          %2638 = vset.pattern.permute.xlu0 0
          %2639 = vperm.xlu0 %2638, %v2589
          %v2640 = vpop.permute.xlu0 %2639
          %2643 = vset.pattern.permute.xlu0 0
          %2644 = vperm.xlu0 %2643, %v2590
          %v2645 = vpop.permute.xlu0 %2644
          %2648 = vset.pattern.permute.xlu0 0
          %2649 = vperm.xlu0 %2648, %v2591
          %v2650 = vpop.permute.xlu0 %2649
          %2653 = vset.pattern.permute.xlu0 0
          %2654 = vperm.xlu0 %2653, %v2592
          %v2655 = vpop.permute.xlu0 %2654
          %2658 = vset.pattern.permute.xlu0 0
          %2659 = vperm.xlu0 %2658, %v2593
          %v2660 = vpop.permute.xlu0 %2659
          %2663 = vset.pattern.permute.xlu0 0
          %2664 = vperm.xlu0 %2663, %v2594
          %v2665 = vpop.permute.xlu0 %2664
          %2668 = vset.pattern.permute.xlu0 0
          %2669 = vperm.xlu0 %2668, %v2595
          %v2670 = vpop.permute.xlu0 %2669
          %2673 = vset.pattern.permute.xlu0 0
          %2674 = vperm.xlu0 %2673, %v2596
          %v2675 = vpop.permute.xlu0 %2674
          %2678 = vset.pattern.permute.xlu0 0
          %2679 = vperm.xlu0 %2678, %v2597
          %v2680 = vpop.permute.xlu0 %2679
          %2683 = vset.pattern.permute.xlu0 0
          %2684 = vperm.xlu0 %2683, %v2598
          %v2685 = vpop.permute.xlu0 %2684
          %2688 = vset.pattern.permute.xlu0 0
          %2689 = vperm.xlu0 %2688, %v2599
          %v2690 = vpop.permute.xlu0 %2689
          %2693 = vset.pattern.permute.xlu0 0
          %2694 = vperm.xlu0 %2693, %v2600
          %v2695 = vpop.permute.xlu0 %2694
          %2698 = vset.pattern.permute.xlu0 0
          %2699 = vperm.xlu0 %2698, %v2601
          %v2700 = vpop.permute.xlu0 %2699
          %2703 = vset.pattern.permute.xlu0 0
          %2704 = vperm.xlu0 %2703, %v2602
          %v2705 = vpop.permute.xlu0 %2704
          %2708 = vset.pattern.permute.xlu0 0
          %2709 = vperm.xlu0 %2708, %v2603
          %v2710 = vpop.permute.xlu0 %2709
          %2713 = vset.pattern.permute.xlu0 0
          %2714 = vperm.xlu0 %2713, %v2604
          %v2715 = vpop.permute.xlu0 %2714
          %2718 = vset.pattern.permute.xlu0 0
          %2719 = vperm.xlu0 %2718, %v2605
          %v2720 = vpop.permute.xlu0 %2719
          %2723 = vset.pattern.permute.xlu0 0
          %2724 = vperm.xlu0 %2723, %v2606
          %v2725 = vpop.permute.xlu0 %2724
          %2728 = vset.pattern.permute.xlu0 0
          %2729 = vperm.xlu0 %2728, %v2607
          %v2730 = vpop.permute.xlu0 %2729
          %2733 = vset.pattern.permute.xlu0 0
          %2734 = vperm.xlu0 %2733, %v2608
          %v2735 = vpop.permute.xlu0 %2734
          %2738 = vset.pattern.permute.xlu0 0
          %2739 = vperm.xlu0 %2738, %v2609
          %v2740 = vpop.permute.xlu0 %2739
          %2743 = vset.pattern.permute.xlu0 0
          %2744 = vperm.xlu0 %2743, %v2610
          %v2745 = vpop.permute.xlu0 %2744
          %2748 = vset.pattern.permute.xlu0 0
          %2749 = vperm.xlu0 %2748, %v2611
          %v2750 = vpop.permute.xlu0 %2749
          %2753 = vset.pattern.permute.xlu0 0
          %2754 = vperm.xlu0 %2753, %v2612
          %v2755 = vpop.permute.xlu0 %2754
          %2758 = vset.pattern.permute.xlu0 0
          %2759 = vperm.xlu0 %2758, %v2613
          %v2760 = vpop.permute.xlu0 %2759
          %2763 = vset.pattern.permute.xlu0 0
          %2764 = vperm.xlu0 %2763, %v2614
          %v2765 = vpop.permute.xlu0 %2764
          %2768 = vset.pattern.permute.xlu0 0
          %2769 = vperm.xlu0 %2768, %v2615
          %v2770 = vpop.permute.xlu0 %2769
          %2773 = vset.pattern.permute.xlu0 0
          %2774 = vperm.xlu0 %2773, %v2616
          %v2775 = vpop.permute.xlu0 %2774
          %v2777 = vmul.f32 %v2553, %v2620
          %v2778 = vmul.f32 %v2554, %v2625
          %v2779 = vmul.f32 %v2555, %v2630
          %v2780 = vmul.f32 %v2556, %v2635
          %v2781 = vmul.f32 %v2557, %v2640
          %v2782 = vmul.f32 %v2558, %v2645
          %v2783 = vmul.f32 %v2559, %v2650
          %v2784 = vmul.f32 %v2560, %v2655
          %v2785 = vmul.f32 %v2561, %v2660
          %v2786 = vmul.f32 %v2562, %v2665
          %v2787 = vmul.f32 %v2563, %v2670
          %v2788 = vmul.f32 %v2564, %v2675
          %v2789 = vmul.f32 %v2565, %v2680
          %v2790 = vmul.f32 %v2566, %v2685
          %v2791 = vmul.f32 %v2567, %v2690
          %v2792 = vmul.f32 %v2568, %v2695
          %v2793 = vmul.f32 %v2569, %v2700
          %v2794 = vmul.f32 %v2570, %v2705
          %v2795 = vmul.f32 %v2571, %v2710
          %v2796 = vmul.f32 %v2572, %v2715
          %v2797 = vmul.f32 %v2573, %v2720
          %v2798 = vmul.f32 %v2574, %v2725
          %v2799 = vmul.f32 %v2575, %v2730
          %v2800 = vmul.f32 %v2576, %v2735
          %v2801 = vmul.f32 %v2577, %v2740
          %v2802 = vmul.f32 %v2578, %v2745
          %v2803 = vmul.f32 %v2579, %v2750
          %v2804 = vmul.f32 %v2580, %v2755
          %v2805 = vmul.f32 %v2581, %v2760
          %v2806 = vmul.f32 %v2582, %v2765
          %v2807 = vmul.f32 %v2583, %v2770
          %v2808 = vmul.f32 %v2584, %v2775
          %vm2809 = vcmask 523264
          %2810 = vst.msk [vmem:[%s5] sm:$0xff] %vm2809, %v2777
          %2811 = vst.msk [vmem:[%s5 + $0x8] sm:$0xff] %vm2809, %v2778
          %2812 = vst.msk [vmem:[%s5 + $0x10] sm:$0xff] %vm2809, %v2779
          %2813 = vst.msk [vmem:[%s5 + $0x18] sm:$0xff] %vm2809, %v2780
          %2814 = vst.msk [vmem:[%s5 + $0x20] sm:$0xff] %vm2809, %v2781
          %2815 = vst.msk [vmem:[%s5 + $0x28] sm:$0xff] %vm2809, %v2782
          %2816 = vst.msk [vmem:[%s5 + $0x30] sm:$0xff] %vm2809, %v2783
          %2817 = vst.msk [vmem:[%s5 + $0x38] sm:$0xff] %vm2809, %v2784
          %2818 = vst.msk [vmem:[%s5 + $0x40] sm:$0xff] %vm2809, %v2785
          %2819 = vst.msk [vmem:[%s5 + $0x48] sm:$0xff] %vm2809, %v2786
          %2820 = vst.msk [vmem:[%s5 + $0x50] sm:$0xff] %vm2809, %v2787
          %2821 = vst.msk [vmem:[%s5 + $0x58] sm:$0xff] %vm2809, %v2788
          %2822 = vst.msk [vmem:[%s5 + $0x60] sm:$0xff] %vm2809, %v2789
          %2823 = vst.msk [vmem:[%s5 + $0x68] sm:$0xff] %vm2809, %v2790
          %2824 = vst.msk [vmem:[%s5 + $0x70] sm:$0xff] %vm2809, %v2791
          %2825 = vst.msk [vmem:[%s5 + $0x78] sm:$0xff] %vm2809, %v2792
          %2826 = vst.msk [vmem:[%s5 + $0x80] sm:$0xff] %vm2809, %v2793
          %2827 = vst.msk [vmem:[%s5 + $0x88] sm:$0xff] %vm2809, %v2794
          %2828 = vst.msk [vmem:[%s5 + $0x90] sm:$0xff] %vm2809, %v2795
          %2829 = vst.msk [vmem:[%s5 + $0x98] sm:$0xff] %vm2809, %v2796
          %2830 = vst.msk [vmem:[%s5 + $0xa0] sm:$0xff] %vm2809, %v2797
          %2831 = vst.msk [vmem:[%s5 + $0xa8] sm:$0xff] %vm2809, %v2798
          %2832 = vst.msk [vmem:[%s5 + $0xb0] sm:$0xff] %vm2809, %v2799
          %2833 = vst.msk [vmem:[%s5 + $0xb8] sm:$0xff] %vm2809, %v2800
          %2834 = vst.msk [vmem:[%s5 + $0xc0] sm:$0xff] %vm2809, %v2801
          %2835 = vst.msk [vmem:[%s5 + $0xc8] sm:$0xff] %vm2809, %v2802
          %2836 = vst.msk [vmem:[%s5 + $0xd0] sm:$0xff] %vm2809, %v2803
          %2837 = vst.msk [vmem:[%s5 + $0xd8] sm:$0xff] %vm2809, %v2804
          %2838 = vst.msk [vmem:[%s5 + $0xe0] sm:$0xff] %vm2809, %v2805
          %2839 = vst.msk [vmem:[%s5 + $0xe8] sm:$0xff] %vm2809, %v2806
          %2840 = vst.msk [vmem:[%s5 + $0xf0] sm:$0xff] %vm2809, %v2807
          %2841 = vst.msk [vmem:[%s5 + $0xf8] sm:$0xff] %vm2809, %v2808
        $region67: #{pool_forward.3} parent=54 // pred_fallthru
          _
        // Predicated region
        $region68: #{pool_forward.3} parent=54 // pred_check
          %p2842 = pneg %p125
        $region69: #{pool_forward.3} parent=54 // pred_check_branch
          %2844 = sbr.rel (%p2842) target = $region71
        $region70: #{pool_forward.3} parent=54 // pred_region
          %s2846 = ssub.s32 8192, 8192
          %2847 = vsyncadd [#allocation5], %s2846
          %s2848 = sshll.u32 [#allocation4], 4
          %s2849 = int_to_ptr.vmem [resolvable:$true] %s2848
          %2854 = dma.vmem_to_hbm [thread:$0]  %s2849, 8192, %s4, [#allocation5], 256, 256, 16
        $region71: #{pool_forward.3} parent=54 // pred_fallthru
          _
        // Predicated region
        $region72: #{pool_forward.3} parent=54 // pred_check
          %p2855 = pneg %p146
        $region73: #{pool_forward.3} parent=54 // pred_check_branch
          %2857 = sbr.rel (%p2855) target = $region75
        $region74: #{pool_forward.3} parent=54 // pred_region
          _
        $region75: #{pool_forward.3} parent=54 // pred_fallthru
          _
        // Predicated region
        $region76: #{pool_forward.3} parent=54 // pred_check
          %p2858 = pneg %p125
        $region77: #{pool_forward.3} parent=54 // pred_check_branch
          %2860 = sbr.rel (%p2858) target = $region79
        $region78: #{pool_forward.3} parent=54 // pred_region
          %2861 = dma.done [#allocation5], 8192
        $region79: #{pool_forward.3} parent=54 // pred_fallthru
          _
        // Predicated region
        $region80: #{pool_forward.3} parent=54 // pred_check
          %p2862 = pneg %p146
        $region81: #{pool_forward.3} parent=54 // pred_check_branch
          %2864 = sbr.rel (%p2862) target = $region83
        $region82: #{pool_forward.3} parent=54 // pred_region
          _
        $region83: #{pool_forward.3} parent=54 // pred_fallthru
          _
      $region55: #{pool_forward.3} parent=5 // pred_fallthru
        _
      %p2865 = scmp.le.s32.totalorder 2, %s13
      // Predicated region
      $region84: #{pool_forward.3} parent=5 // pred_check
        %p2866 = pneg %p2865
      $region85: #{pool_forward.3} parent=5 // pred_check_branch
        %2868 = sbr.rel (%p2866) target = $region87
      $region86: #{pool_forward.3} parent=5 // pred_region
        %s2869 = ssub.s32 %s13, 2
      $region87: #{pool_forward.3} parent=5 // pred_fallthru
        _
    $region6: #{pool_forward.3} parent=1 // loop_footer
      %s17 = sadd.s32 1, %s13
    $region7: #{pool_forward.3} parent=1 // loop_footer_branch
      %12 = sbr.rel target = $region3
    $region8: #{pool_forward.3} parent=1 // loop_exit
      _
    %2870 = vsyncpa [#allocation5], 1
    %s2871 = scalar_lea.sflag [#allocation5], 1
    %2872 = vsyncpa %s2871, 1

</llo_original>
